<compile_context>
chip_gen: v5e
topology: v5e:2x2
jax: 0.10.0
libtpu: 0.0.40
codegen_flags: <defaults>
</compile_context>

<pallas_src>
import functools

import jax
import jax.numpy as jnp
import numpy as np
from jax import lax
from jax.experimental import pallas as pl
from jax.experimental.pallas import tpu as pltpu


def _round_up(v, m):
    return (v + m - 1) // m * m


def _resblock_kernel(xp_hbm, w1_ref, b1_ref, w2_ref, b2_ref, out_ref,
                     xbuf, sem, *, H, W, TH):
    """One (batch n, row-tile r) grid step produces output rows [r*TH, r*TH+TH).

    The padded image lives in HBM; a (TH+4, Ws, Cp) row slab (1 extra conv1
    halo row/col on each side plus alignment columns) is DMA'd into the
    double-buffered `xbuf`, and the next row tile's slab is prefetched while
    this tile computes.  BN scales are pre-folded into the weights, so only the
    bias add + ReLU (+ residual) run on the VPU.
    """
    Cp = out_ref.shape[-1]          # lane-dense channels (multiple of 128)
    Wa = out_ref.shape[-2]          # sublane-aligned output width (mult. of 8)
    We = Wa + 8                     # conv1 extended-output width (mult. of 8)
    cdt = xbuf.dtype                # MXU / compute dtype

    n = pl.program_id(0)
    r = pl.program_id(1)
    R = pl.num_programs(1)
    slot = lax.rem(r, 2)

    def fetch(row_tile, s):
        row0 = pl.multiple_of(row_tile * TH, TH)
        pltpu.make_async_copy(xp_hbm.at[n, pl.ds(row0, TH + 4)],
                              xbuf.at[s], sem.at[s]).start()

    # Prime this batch element's first slab.  Megacore splitting only happens
    # along the "parallel" N axis, so every per-core chunk starts at r == 0.
    @pl.when(r == 0)
    def _():
        fetch(0, 0)

    # Wait for the current slab, then immediately prefetch the next row tile so
    # its DMA hides under this tile's compute.
    pltpu.make_async_copy(xp_hbm.at[n, pl.ds(0, TH + 4)], xbuf.at[slot],
                          sem.at[slot]).wait()

    @pl.when(r + 1 < R)
    def _():
        fetch(r + 1, 1 - slot)

    xslab = xbuf[slot]                                   # (TH+4, Ws, Cp)

    # ---------------- conv1 (+ folded bn1 scale) + bias + ReLU ----------------
    # Collapse the kw taps ONCE (hoisted out of the kh loop): K = 3*Cp.  Since
    # We % 8 == 0, the per-kh row-slice + flatten below is layout-preserving.
    xcat = jnp.concatenate(
        [xslab[:, 0:We, :], xslab[:, 1:We + 1, :], xslab[:, 2:We + 2, :]],
        axis=-1)                                         # (TH+4, We, 3*Cp)
    M1 = (TH + 2) * We
    acc1 = None
    for kh in range(3):
        patch = xcat[kh:kh + TH + 2].reshape(M1, 3 * Cp)
        d = jnp.dot(patch, w1_ref[kh], preferred_element_type=jnp.float32)
        acc1 = d if acc1 is None else acc1 + d

    y1 = jnp.maximum(acc1 + b1_ref[...], 0.0).reshape(TH + 2, We, Cp)

    # Zero positions outside the image (== conv2's zero padding): columns 0 and
    # W+1..We-1 always, rows only at the first / last row tile.
    R0 = r * TH
    col = lax.broadcasted_iota(jnp.int32, (1, We, 1), 1)
    row = lax.broadcasted_iota(jnp.int32, (TH + 2, 1, 1), 0) + (R0 - 1)
    valid = (col >= 1) & (col <= W) & (row >= 0) & (row < H)
    y1 = jnp.where(valid, y1, 0.0).astype(cdt)

    # --------- conv2 (+ folded bn2 scale) + bias + residual + ReLU ------------
    ycat = jnp.concatenate(
        [y1[:, 0:Wa, :], y1[:, 1:Wa + 1, :], y1[:, 2:Wa + 2, :]], axis=-1)
    M2 = TH * Wa
    acc2 = None
    for kh in range(3):
        patch = ycat[kh:kh + TH].reshape(M2, 3 * Cp)
        d = jnp.dot(patch, w2_ref[kh], preferred_element_type=jnp.float32)
        acc2 = d if acc2 is None else acc2 + d

    resid = xslab[2:TH + 2, 2:Wa + 2, :]                 # identity, no f32 copy
    y2 = acc2.reshape(TH, Wa, Cp) + b2_ref[...] + resid
    out_ref[0] = jnp.maximum(y2, 0.0).astype(out_ref.dtype)


def _fold_bn(gamma, beta, mean, var, eps=1e-5):
    scale = (gamma / jnp.sqrt(var + eps)).astype(jnp.float32)
    bias = (beta - mean * scale).astype(jnp.float32)
    return scale, bias


def _prep_weights(w_hwio, scale, bias, Cp, compute_dtype):
    """Fold BN scale into conv weights, zero-pad channels to Cp, and reshape to
    (3, 3*Cp, Cp) matching the kw-collapsed patch layout [kw*Cp + cin]."""
    C_in, C_out = w_hwio.shape[2], w_hwio.shape[3]
    w = w_hwio.astype(jnp.float32) * scale[None, None, None, :]
    wp = jnp.zeros((3, 3, Cp, Cp), jnp.float32).at[:, :, :C_in, :C_out].set(w)
    wp = wp.reshape(3, 3 * Cp, Cp).astype(compute_dtype)
    bp = jnp.zeros((1, Cp), jnp.float32).at[0, :C_out].set(bias)
    return wp, bp


def residual_block_forward(x_nchw, params, *, mxu_dtype=None):
    """Matches ResidualBlock.forward (stride=1, downsample=None, eval-mode BN).

    mxu_dtype: optional narrower MXU-operand dtype (e.g. jnp.bfloat16) for f32
    networks on v6e/v7x; accumulation stays in f32, output keeps x's dtype.
    """
    N, C, H, W = x_nchw.shape
    kh1, kw1, ci1, co1 = params["w1"].shape
    assert (kh1, kw1) == (3, 3) and ci1 == C and co1 == C, (
        "only the stride=1 / downsample=None / in==out channel ResidualBlock "
        "configuration is supported")

    Cp = _round_up(max(C, 128), 128)        # lane-dense channels
    Wa = _round_up(W, 8)                    # sublane-aligned output width
    We = Wa + 8                             # conv1 extended-output width
    Ws = We + 2                             # input-slab width
    cdt = jnp.dtype(mxu_dtype) if mxu_dtype is not None else x_nchw.dtype

    # ---- VMEM budget -> tile height + explicit scoped-VMEM limit ------------
    try:
        vmem_cap = int(pltpu.get_tpu_info().vmem_capacity_bytes)
    except Exception:
        vmem_cap = 64 * 1024 * 1024         # conservative: v7x physical VMEM
    vmem_limit = max(min(int(vmem_cap * 0.7), 100 * 1024 * 1024),
                     32 * 1024 * 1024)
    budget = int(vmem_limit * 0.7)

    ci = jnp.dtype(cdt).itemsize
    co = jnp.dtype(x_nchw.dtype).itemsize

    def vmem_estimate(th):
        m1, m2 = (th + 2) * We, th * Wa
        inbuf = 2 * (th + 4) * Ws * Cp * ci                 # manual double buffer
        outbuf = 2 * th * Wa * Cp * co                      # pallas output buffers
        wts = 2 * 2 * 3 * 3 * Cp * Cp * ci + 4 * Cp * 4
        scratch = ((th + 4) * We * 3 * Cp * ci              # xcat
                   + m1 * 3 * Cp * ci                       # im2col patch
                   + m1 * Cp * (4 + 4 + ci)                 # acc1 + y1 (f32/cdt)
                   + (th + 2) * Wa * 3 * Cp * ci            # ycat
                   + m2 * Cp * (4 + 4))                     # acc2 + y2
        return inbuf + outbuf + wts + scratch

    TH = 1
    for cand in (64, 32, 16, 8, 4, 2, 1):                   # biggest tile that fits
        if H % cand == 0 and vmem_estimate(cand) <= budget:
            TH = cand
            break

    s1, b1 = _fold_bn(*params["bn1"])
    s2, b2 = _fold_bn(*params["bn2"])
    w1p, b1p = _prep_weights(params["w1"], s1, b1, Cp, cdt)
    w2p, b2p = _prep_weights(params["w2"], s2, b2, Cp, cdt)

    # NCHW -> NHWC, spatial halo/alignment pad, channel pad to Cp.
    # TODO(synk): the C -> Cp channel pad in HBM doubles input bytes for C=64
    #             layers; DMA-ing the raw-C slab and zero-filling the pad lanes
    #             inside the kernel would remove it (needs a lane-sliced DMA
    #             destination).
    # TODO(synk): keeping NHWC end-to-end across the network would drop the two
    #             boundary transposes and the separate pad pass; here we honor
    #             the NCHW interface of the PyTorch module.
    x_nhwc = jnp.transpose(x_nchw, (0, 2, 3, 1))
    xp = jnp.pad(x_nhwc, ((0, 0), (2, 2), (2, We - W), (0, Cp - C))).astype(cdt)

    kernel = functools.partial(_resblock_kernel, H=H, W=W, TH=TH)
    out_p = pl.pallas_call(
        kernel,
        out_shape=jax.ShapeDtypeStruct((N, H, Wa, Cp), x_nchw.dtype),
        grid=(N, H // TH),
        in_specs=[
            pl.BlockSpec(memory_space=pl.ANY),               # image stays in HBM
            pl.BlockSpec((3, 3 * Cp, Cp), lambda n, r: (0, 0, 0)),
            pl.BlockSpec((1, Cp), lambda n, r: (0, 0)),
            pl.BlockSpec((3, 3 * Cp, Cp), lambda n, r: (0, 0, 0)),
            pl.BlockSpec((1, Cp), lambda n, r: (0, 0)),
        ],
        out_specs=pl.BlockSpec((1, TH, Wa, Cp), lambda n, r: (n, r, 0, 0)),
        scratch_shapes=[
            pltpu.VMEM((2, TH + 4, Ws, Cp), cdt),            # input double buffer
            pltpu.SemaphoreType.DMA((2,)),
        ],
        compiler_params=pltpu.CompilerParams(
            dimension_semantics=("parallel", "arbitrary"),
            vmem_limit_bytes=vmem_limit),
    )(xp, w1p, b1p, w2p, b2p)

    out = out_p[:, :, :W, :C]
    return jnp.transpose(out, (0, 3, 1, 2))                  # NHWC -> NCHW


def _reference_forward(x_nchw, params):
    """Plain-JAX reference for the correctness check."""
    x = jnp.transpose(x_nchw, (0, 2, 3, 1))

    def conv(a, w):
        return lax.conv_general_dilated(
            a, w, window_strides=(1, 1), padding="SAME",
            dimension_numbers=("NHWC", "HWIO", "NHWC"))

    s1, b1 = _fold_bn(*params["bn1"])
    s2, b2 = _fold_bn(*params["bn2"])
    out = jnp.maximum(conv(x, params["w1"]) * s1 + b1, 0.0)
    out = jnp.maximum(conv(out, params["w2"]) * s2 + b2 + x, 0.0)
    return jnp.transpose(out, (0, 3, 1, 2))


if __name__ == "__main__":
    key = jax.random.PRNGKey(0)
    N, C, H, W = 2, 4, 16, 16           # in_channels == out_channels, stride=1
    ks = jax.random.split(key, 11)

    x = jax.random.normal(ks[0], (N, C, H, W), jnp.float32)

    # Conv weights created in PyTorch (Cout, Cin, kH, kW) layout, moved to HWIO.
    w1_oihw = jax.random.normal(ks[1], (C, C, 3, 3), jnp.float32) * 0.2
    w2_oihw = jax.random.normal(ks[2], (C, C, 3, 3), jnp.float32) * 0.2
    w1 = jnp.transpose(w1_oihw, (2, 3, 1, 0))
    w2 = jnp.transpose(w2_oihw, (2, 3, 1, 0))

    params = {
        "w1": w1,
        "w2": w2,
        "bn1": (1.0 + 0.1 * jax.random.normal(ks[3], (C,), jnp.float32),      # gamma
                0.1 * jax.random.normal(ks[4], (C,), jnp.float32),            # beta
                0.1 * jax.random.normal(ks[5], (C,), jnp.float32),            # running_mean
                jnp.abs(jax.random.normal(ks[6], (C,), jnp.float32)) + 0.5),  # running_var
        "bn2": (1.0 + 0.1 * jax.random.normal(ks[7], (C,), jnp.float32),
                0.1 * jax.random.normal(ks[8], (C,), jnp.float32),
                0.1 * jax.random.normal(ks[9], (C,), jnp.float32),
                jnp.abs(jax.random.normal(ks[10], (C,), jnp.float32)) + 0.5),
    }

    ref = jax.block_until_ready(_reference_forward(x, params))

    # Default path: MXU operands in the network dtype (f32) -> strict check.
    out = jax.block_until_ready(residual_block_forward(x, params))
    np.testing.assert_allclose(np.asarray(out), np.asarray(ref),
                               rtol=1e-4, atol=1e-4)

    # bf16 MXU-operand fast path (v6e/v7x) with f32 accumulation -> loose check.
    out_bf16 = jax.block_until_ready(
        residual_block_forward(x, params, mxu_dtype=jnp.bfloat16))
    np.testing.assert_allclose(np.asarray(out_bf16), np.asarray(ref),
                               rtol=1e-1, atol=1e-1)

    print("KERNEL_OK")
</pallas_src>

<mosaic_0001>
module attributes {stable_mosaic.version = 11 : i64} {
  func.func @_resblock_kernel(%arg0: i32, %arg1: i32, %arg2: memref<2x20x26x128xf32, #tpu.memory_space<any>>, %arg3: memref<3x384x128xf32, #tpu.memory_space<vmem>>, %arg4: memref<1x128xf32, #tpu.memory_space<vmem>>, %arg5: memref<3x384x128xf32, #tpu.memory_space<vmem>>, %arg6: memref<1x128xf32, #tpu.memory_space<vmem>>, %arg7: memref<1x16x16x128xf32, #tpu.memory_space<vmem>>, %arg8: memref<2x20x26x128xf32, #tpu.memory_space<vmem>>, %arg9: memref<2x!tpu.dma_semaphore, #tpu.memory_space<semaphore_mem>>) attributes {dimension_semantics = [#tpu.dimension_semantics<parallel>, #tpu.dimension_semantics<arbitrary>], iteration_bounds = array<i64: 2, 1>, scalar_prefetch = 0 : i64, scratch_operands = 2 : i64, tpu.core_type = #tpu.core_type<tc>, window_params = [{}, {pipeline_mode = #tpu.pipeline_mode<synchronous>, transform_indices = @transform_1, window_bounds = array<i64: 3, 384, 128>}, {pipeline_mode = #tpu.pipeline_mode<synchronous>, transform_indices = @transform_2, window_bounds = array<i64: 1, 128>}, {pipeline_mode = #tpu.pipeline_mode<synchronous>, transform_indices = @transform_3, window_bounds = array<i64: 3, 384, 128>}, {pipeline_mode = #tpu.pipeline_mode<synchronous>, transform_indices = @transform_4, window_bounds = array<i64: 1, 128>}, {transform_indices = @transform_5, window_bounds = array<i64: 1, 16, 16, 128>}]} {
    %c2_i32 = arith.constant 2 : i32
    %0 = arith.remsi %arg1, %c2_i32 : i32
    %c0_i32 = arith.constant 0 : i32
    %1 = arith.cmpi eq, %arg1, %c0_i32 : i32
    %2 = arith.extui %1 : i1 to i32
    %c0_i32_0 = arith.constant 0 : i32
    %3 = arith.cmpi ne, %2, %c0_i32_0 : i32
    scf.if %3 {
      %c0_i32_48 = arith.constant 0 : i32
      %101 = tpu.assume_multiple %c0_i32_48, 16 : i32
      %c0_i32_49 = arith.constant 0 : i32
      %c0_i32_50 = arith.constant 0 : i32
      %c0_i32_51 = arith.constant 0 : i32
      %c0_i32_52 = arith.constant 0 : i32
      %102 = tpu.memref_slice %arg2[%arg0, %101, %c0_i32_51, %c0_i32_52] : memref<2x20x26x128xf32, #tpu.memory_space<any>> -> memref<1x20x26x128xf32, #tpu.memory_space<any>>
      %103 = tpu.memref_squeeze %102 : memref<1x20x26x128xf32, #tpu.memory_space<any>> -> memref<20x26x128xf32, #tpu.memory_space<any>>
      %c0_i32_53 = arith.constant 0 : i32
      %c0_i32_54 = arith.constant 0 : i32
      %c0_i32_55 = arith.constant 0 : i32
      %104 = tpu.memref_slice %arg8[%c0_i32_49, %c0_i32_53, %c0_i32_54, %c0_i32_55] : memref<2x20x26x128xf32, #tpu.memory_space<vmem>> -> memref<1x20x26x128xf32, #tpu.memory_space<vmem>>
      %105 = tpu.memref_squeeze %104 : memref<1x20x26x128xf32, #tpu.memory_space<vmem>> -> memref<20x26x128xf32, #tpu.memory_space<vmem>>
      %106 = tpu.memref_slice %arg9[%c0_i32_50] : memref<2x!tpu.dma_semaphore, #tpu.memory_space<semaphore_mem>> -> memref<1x!tpu.dma_semaphore, #tpu.memory_space<semaphore_mem>>
      %107 = tpu.memref_squeeze %106 : memref<1x!tpu.dma_semaphore, #tpu.memory_space<semaphore_mem>> -> memref<!tpu.dma_semaphore, #tpu.memory_space<semaphore_mem>>
      tpu.enqueue_dma source(%103 : memref<20x26x128xf32, #tpu.memory_space<any>>) target(%105 : memref<20x26x128xf32, #tpu.memory_space<vmem>>) target_semaphore(%107 : memref<!tpu.dma_semaphore, #tpu.memory_space<semaphore_mem>>)
    } else {
    }
    %c0_i32_1 = arith.constant 0 : i32
    %c0_i32_2 = arith.constant 0 : i32
    %c0_i32_3 = arith.constant 0 : i32
    %4 = tpu.memref_slice %arg2[%arg0, %c0_i32_1, %c0_i32_2, %c0_i32_3] : memref<2x20x26x128xf32, #tpu.memory_space<any>> -> memref<1x20x26x128xf32, #tpu.memory_space<any>>
    %5 = tpu.memref_squeeze %4 : memref<1x20x26x128xf32, #tpu.memory_space<any>> -> memref<20x26x128xf32, #tpu.memory_space<any>>
    %c0_i32_4 = arith.constant 0 : i32
    %c0_i32_5 = arith.constant 0 : i32
    %c0_i32_6 = arith.constant 0 : i32
    %6 = tpu.memref_slice %arg8[%0, %c0_i32_4, %c0_i32_5, %c0_i32_6] : memref<2x20x26x128xf32, #tpu.memory_space<vmem>> -> memref<1x20x26x128xf32, #tpu.memory_space<vmem>>
    %7 = tpu.memref_squeeze %6 : memref<1x20x26x128xf32, #tpu.memory_space<vmem>> -> memref<20x26x128xf32, #tpu.memory_space<vmem>>
    %8 = tpu.memref_slice %arg9[%0] : memref<2x!tpu.dma_semaphore, #tpu.memory_space<semaphore_mem>> -> memref<1x!tpu.dma_semaphore, #tpu.memory_space<semaphore_mem>>
    %9 = tpu.memref_squeeze %8 : memref<1x!tpu.dma_semaphore, #tpu.memory_space<semaphore_mem>> -> memref<!tpu.dma_semaphore, #tpu.memory_space<semaphore_mem>>
    tpu.wait_dma2 semaphore(%9 : memref<!tpu.dma_semaphore, #tpu.memory_space<semaphore_mem>>) src(%5 : memref<20x26x128xf32, #tpu.memory_space<any>>) dst(%7 : memref<20x26x128xf32, #tpu.memory_space<vmem>>)
    %c1_i32 = arith.constant 1 : i32
    %10 = arith.addi %arg1, %c1_i32 : i32
    %c1_i32_7 = arith.constant 1 : i32
    %11 = arith.cmpi slt, %10, %c1_i32_7 : i32
    %12 = arith.extui %11 : i1 to i32
    %c0_i32_8 = arith.constant 0 : i32
    %13 = arith.cmpi ne, %12, %c0_i32_8 : i32
    scf.if %13 {
      %c1_i32_48 = arith.constant 1 : i32
      %101 = arith.addi %arg1, %c1_i32_48 : i32
      %c1_i32_49 = arith.constant 1 : i32
      %102 = arith.subi %c1_i32_49, %0 : i32
      %c16_i32_50 = arith.constant 16 : i32
      %103 = arith.muli %101, %c16_i32_50 : i32
      %104 = tpu.assume_multiple %103, 16 : i32
      %c0_i32_51 = arith.constant 0 : i32
      %c0_i32_52 = arith.constant 0 : i32
      %105 = tpu.memref_slice %arg2[%arg0, %104, %c0_i32_51, %c0_i32_52] : memref<2x20x26x128xf32, #tpu.memory_space<any>> -> memref<1x20x26x128xf32, #tpu.memory_space<any>>
      %106 = tpu.memref_squeeze %105 : memref<1x20x26x128xf32, #tpu.memory_space<any>> -> memref<20x26x128xf32, #tpu.memory_space<any>>
      %c0_i32_53 = arith.constant 0 : i32
      %c0_i32_54 = arith.constant 0 : i32
      %c0_i32_55 = arith.constant 0 : i32
      %107 = tpu.memref_slice %arg8[%102, %c0_i32_53, %c0_i32_54, %c0_i32_55] : memref<2x20x26x128xf32, #tpu.memory_space<vmem>> -> memref<1x20x26x128xf32, #tpu.memory_space<vmem>>
      %108 = tpu.memref_squeeze %107 : memref<1x20x26x128xf32, #tpu.memory_space<vmem>> -> memref<20x26x128xf32, #tpu.memory_space<vmem>>
      %109 = tpu.memref_slice %arg9[%102] : memref<2x!tpu.dma_semaphore, #tpu.memory_space<semaphore_mem>> -> memref<1x!tpu.dma_semaphore, #tpu.memory_space<semaphore_mem>>
      %110 = tpu.memref_squeeze %109 : memref<1x!tpu.dma_semaphore, #tpu.memory_space<semaphore_mem>> -> memref<!tpu.dma_semaphore, #tpu.memory_space<semaphore_mem>>
      tpu.enqueue_dma source(%106 : memref<20x26x128xf32, #tpu.memory_space<any>>) target(%108 : memref<20x26x128xf32, #tpu.memory_space<vmem>>) target_semaphore(%110 : memref<!tpu.dma_semaphore, #tpu.memory_space<semaphore_mem>>)
    } else {
    }
    %14 = arith.index_cast %0 : i32 to index
    %c0 = arith.constant 0 : index
    %c0_9 = arith.constant 0 : index
    %c0_10 = arith.constant 0 : index
    %15 = vector.load %arg8[%14, %c0, %c0_9, %c0_10] : memref<2x20x26x128xf32, #tpu.memory_space<vmem>>, vector<1x20x26x128xf32>
    %16 = vector.shape_cast %15 : vector<1x20x26x128xf32> to vector<20x26x128xf32>
    %17 = vector.extract_strided_slice %16 {offsets = [0, 0, 0], sizes = [20, 24, 128], strides = [1, 1, 1]} : vector<20x26x128xf32> to vector<20x24x128xf32>
    %18 = vector.extract_strided_slice %16 {offsets = [0, 1, 0], sizes = [20, 24, 128], strides = [1, 1, 1]} : vector<20x26x128xf32> to vector<20x24x128xf32>
    %19 = vector.extract_strided_slice %16 {offsets = [0, 2, 0], sizes = [20, 24, 128], strides = [1, 1, 1]} : vector<20x26x128xf32> to vector<20x24x128xf32>
    %20 = tpu.concatenate %17, %18, %19 in 2 : vector<20x24x128xf32>, vector<20x24x128xf32>, vector<20x24x128xf32> -> vector<20x24x384xf32>
    %21 = vector.extract_strided_slice %20 {offsets = [0, 0, 0], sizes = [18, 24, 384], strides = [1, 1, 1]} : vector<20x24x384xf32> to vector<18x24x384xf32>
    %22 = vector.shape_cast %21 : vector<18x24x384xf32> to vector<432x384xf32>
    %c0_11 = arith.constant 0 : index
    %c0_12 = arith.constant 0 : index
    %c0_13 = arith.constant 0 : index
    %23 = vector.load %arg3[%c0_11, %c0_12, %c0_13] : memref<3x384x128xf32, #tpu.memory_space<vmem>>, vector<1x384x128xf32>
    %24 = vector.shape_cast %23 : vector<1x384x128xf32> to vector<384x128xf32>
    %cst = arith.constant dense<0.000000e+00> : vector<432x128xf32>
    %25 = tpu.matmul %22, %24, %cst {dimension_numbers = #tpu.dot_dimension_numbers<[1], [0], [0], [1], [0, 0, 1, 1], [], []>} : vector<432x384xf32>, vector<384x128xf32>, vector<432x128xf32> -> vector<432x128xf32>
    %26 = vector.extract_strided_slice %20 {offsets = [1, 0, 0], sizes = [18, 24, 384], strides = [1, 1, 1]} : vector<20x24x384xf32> to vector<18x24x384xf32>
    %27 = vector.shape_cast %26 : vector<18x24x384xf32> to vector<432x384xf32>
    %c1 = arith.constant 1 : index
    %c0_14 = arith.constant 0 : index
    %c0_15 = arith.constant 0 : index
    %28 = vector.load %arg3[%c1, %c0_14, %c0_15] : memref<3x384x128xf32, #tpu.memory_space<vmem>>, vector<1x384x128xf32>
    %29 = vector.shape_cast %28 : vector<1x384x128xf32> to vector<384x128xf32>
    %cst_16 = arith.constant dense<0.000000e+00> : vector<432x128xf32>
    %30 = tpu.matmul %27, %29, %cst_16 {dimension_numbers = #tpu.dot_dimension_numbers<[1], [0], [0], [1], [0, 0, 1, 1], [], []>} : vector<432x384xf32>, vector<384x128xf32>, vector<432x128xf32> -> vector<432x128xf32>
    %31 = arith.addf %25, %30 : vector<432x128xf32>
    %32 = vector.extract_strided_slice %20 {offsets = [2, 0, 0], sizes = [18, 24, 384], strides = [1, 1, 1]} : vector<20x24x384xf32> to vector<18x24x384xf32>
    %33 = vector.shape_cast %32 : vector<18x24x384xf32> to vector<432x384xf32>
    %c2 = arith.constant 2 : index
    %c0_17 = arith.constant 0 : index
    %c0_18 = arith.constant 0 : index
    %34 = vector.load %arg3[%c2, %c0_17, %c0_18] : memref<3x384x128xf32, #tpu.memory_space<vmem>>, vector<1x384x128xf32>
    %35 = vector.shape_cast %34 : vector<1x384x128xf32> to vector<384x128xf32>
    %cst_19 = arith.constant dense<0.000000e+00> : vector<432x128xf32>
    %36 = tpu.matmul %33, %35, %cst_19 {dimension_numbers = #tpu.dot_dimension_numbers<[1], [0], [0], [1], [0, 0, 1, 1], [], []>} : vector<432x384xf32>, vector<384x128xf32>, vector<432x128xf32> -> vector<432x128xf32>
    %37 = arith.addf %31, %36 : vector<432x128xf32>
    %c0_20 = arith.constant 0 : index
    %c0_21 = arith.constant 0 : index
    %38 = vector.load %arg4[%c0_20, %c0_21] : memref<1x128xf32, #tpu.memory_space<vmem>>, vector<1x128xf32>
    %39 = vector.broadcast %38 : vector<1x128xf32> to vector<432x128xf32>
    %40 = arith.addf %37, %39 : vector<432x128xf32>
    %cst_22 = arith.constant 0.000000e+00 : f32
    %41 = vector.broadcast %cst_22 : f32 to vector<432x128xf32>
    %42 = arith.maximumf %40, %41 : vector<432x128xf32>
    %43 = vector.shape_cast %42 : vector<432x128xf32> to vector<18x24x128xf32>
    %c16_i32 = arith.constant 16 : i32
    %44 = arith.muli %arg1, %c16_i32 : i32
    %45 = tpu.iota {dimensions = array<i32: 1>} : vector<1x24x1xi32>
    %46 = tpu.iota {dimensions = array<i32: 0>} : vector<18x1x1xi32>
    %c1_i32_23 = arith.constant 1 : i32
    %47 = arith.subi %44, %c1_i32_23 : i32
    %48 = vector.broadcast %47 : i32 to vector<18x1x1xi32>
    %49 = arith.addi %46, %48 : vector<18x1x1xi32>
    %c1_i32_24 = arith.constant 1 : i32
    %50 = vector.broadcast %c1_i32_24 : i32 to vector<1x24x1xi32>
    %51 = arith.cmpi sge, %45, %50 : vector<1x24x1xi32>
    %c16_i32_25 = arith.constant 16 : i32
    %52 = vector.broadcast %c16_i32_25 : i32 to vector<1x24x1xi32>
    %53 = arith.cmpi sle, %45, %52 : vector<1x24x1xi32>
    %54 = arith.andi %51, %53 : vector<1x24x1xi1>
    %c0_i32_26 = arith.constant 0 : i32
    %55 = vector.broadcast %c0_i32_26 : i32 to vector<18x1x1xi32>
    %56 = arith.cmpi sge, %49, %55 : vector<18x1x1xi32>
    %57 = vector.broadcast %54 : vector<1x24x1xi1> to vector<18x24x1xi1>
    %58 = vector.broadcast %56 : vector<18x1x1xi1> to vector<18x24x1xi1>
    %59 = arith.andi %57, %58 : vector<18x24x1xi1>
    %c16_i32_27 = arith.constant 16 : i32
    %60 = vector.broadcast %c16_i32_27 : i32 to vector<18x1x1xi32>
    %61 = arith.cmpi slt, %49, %60 : vector<18x1x1xi32>
    %62 = vector.broadcast %61 : vector<18x1x1xi1> to vector<18x24x1xi1>
    %63 = arith.andi %59, %62 : vector<18x24x1xi1>
    %cst_28 = arith.constant 0.000000e+00 : f32
    %64 = vector.shape_cast %63 : vector<18x24x1xi1> to vector<18x24x1xi1>
    %65 = vector.broadcast %64 : vector<18x24x1xi1> to vector<18x24x128xi1>
    %66 = vector.broadcast %cst_28 : f32 to vector<18x24x128xf32>
    %67 = arith.select %65, %43, %66 : vector<18x24x128xi1>, vector<18x24x128xf32>
    %68 = vector.extract_strided_slice %67 {offsets = [0, 0, 0], sizes = [18, 16, 128], strides = [1, 1, 1]} : vector<18x24x128xf32> to vector<18x16x128xf32>
    %69 = vector.extract_strided_slice %67 {offsets = [0, 1, 0], sizes = [18, 16, 128], strides = [1, 1, 1]} : vector<18x24x128xf32> to vector<18x16x128xf32>
    %70 = vector.extract_strided_slice %67 {offsets = [0, 2, 0], sizes = [18, 16, 128], strides = [1, 1, 1]} : vector<18x24x128xf32> to vector<18x16x128xf32>
    %71 = tpu.concatenate %68, %69, %70 in 2 : vector<18x16x128xf32>, vector<18x16x128xf32>, vector<18x16x128xf32> -> vector<18x16x384xf32>
    %72 = vector.extract_strided_slice %71 {offsets = [0, 0, 0], sizes = [16, 16, 384], strides = [1, 1, 1]} : vector<18x16x384xf32> to vector<16x16x384xf32>
    %73 = vector.shape_cast %72 : vector<16x16x384xf32> to vector<256x384xf32>
    %c0_29 = arith.constant 0 : index
    %c0_30 = arith.constant 0 : index
    %c0_31 = arith.constant 0 : index
    %74 = vector.load %arg5[%c0_29, %c0_30, %c0_31] : memref<3x384x128xf32, #tpu.memory_space<vmem>>, vector<1x384x128xf32>
    %75 = vector.shape_cast %74 : vector<1x384x128xf32> to vector<384x128xf32>
    %cst_32 = arith.constant dense<0.000000e+00> : vector<256x128xf32>
    %76 = tpu.matmul %73, %75, %cst_32 {dimension_numbers = #tpu.dot_dimension_numbers<[1], [0], [0], [1], [0, 0, 1, 1], [], []>} : vector<256x384xf32>, vector<384x128xf32>, vector<256x128xf32> -> vector<256x128xf32>
    %77 = vector.extract_strided_slice %71 {offsets = [1, 0, 0], sizes = [16, 16, 384], strides = [1, 1, 1]} : vector<18x16x384xf32> to vector<16x16x384xf32>
    %78 = vector.shape_cast %77 : vector<16x16x384xf32> to vector<256x384xf32>
    %c1_33 = arith.constant 1 : index
    %c0_34 = arith.constant 0 : index
    %c0_35 = arith.constant 0 : index
    %79 = vector.load %arg5[%c1_33, %c0_34, %c0_35] : memref<3x384x128xf32, #tpu.memory_space<vmem>>, vector<1x384x128xf32>
    %80 = vector.shape_cast %79 : vector<1x384x128xf32> to vector<384x128xf32>
    %cst_36 = arith.constant dense<0.000000e+00> : vector<256x128xf32>
    %81 = tpu.matmul %78, %80, %cst_36 {dimension_numbers = #tpu.dot_dimension_numbers<[1], [0], [0], [1], [0, 0, 1, 1], [], []>} : vector<256x384xf32>, vector<384x128xf32>, vector<256x128xf32> -> vector<256x128xf32>
    %82 = arith.addf %76, %81 : vector<256x128xf32>
    %83 = vector.extract_strided_slice %71 {offsets = [2, 0, 0], sizes = [16, 16, 384], strides = [1, 1, 1]} : vector<18x16x384xf32> to vector<16x16x384xf32>
    %84 = vector.shape_cast %83 : vector<16x16x384xf32> to vector<256x384xf32>
    %c2_37 = arith.constant 2 : index
    %c0_38 = arith.constant 0 : index
    %c0_39 = arith.constant 0 : index
    %85 = vector.load %arg5[%c2_37, %c0_38, %c0_39] : memref<3x384x128xf32, #tpu.memory_space<vmem>>, vector<1x384x128xf32>
    %86 = vector.shape_cast %85 : vector<1x384x128xf32> to vector<384x128xf32>
    %cst_40 = arith.constant dense<0.000000e+00> : vector<256x128xf32>
    %87 = tpu.matmul %84, %86, %cst_40 {dimension_numbers = #tpu.dot_dimension_numbers<[1], [0], [0], [1], [0, 0, 1, 1], [], []>} : vector<256x384xf32>, vector<384x128xf32>, vector<256x128xf32> -> vector<256x128xf32>
    %88 = arith.addf %82, %87 : vector<256x128xf32>
    %89 = vector.extract_strided_slice %16 {offsets = [2, 2, 0], sizes = [16, 16, 128], strides = [1, 1, 1]} : vector<20x26x128xf32> to vector<16x16x128xf32>
    %90 = vector.shape_cast %88 : vector<256x128xf32> to vector<16x16x128xf32>
    %c0_41 = arith.constant 0 : index
    %c0_42 = arith.constant 0 : index
    %91 = vector.load %arg6[%c0_41, %c0_42] : memref<1x128xf32, #tpu.memory_space<vmem>>, vector<1x128xf32>
    %92 = vector.shape_cast %91 : vector<1x128xf32> to vector<1x1x128xf32>
    %93 = vector.broadcast %92 : vector<1x1x128xf32> to vector<16x16x128xf32>
    %94 = arith.addf %90, %93 : vector<16x16x128xf32>
    %95 = arith.addf %94, %89 : vector<16x16x128xf32>
    %cst_43 = arith.constant 0.000000e+00 : f32
    %96 = vector.broadcast %cst_43 : f32 to vector<16x16x128xf32>
    %97 = arith.maximumf %95, %96 : vector<16x16x128xf32>
    %c0_44 = arith.constant 0 : index
    %c0_45 = arith.constant 0 : index
    %c0_46 = arith.constant 0 : index
    %c0_47 = arith.constant 0 : index
    %98 = vector.load %arg7[%c0_44, %c0_45, %c0_46, %c0_47] : memref<1x16x16x128xf32, #tpu.memory_space<vmem>>, vector<1x16x16x128xf32>
    %99 = vector.shape_cast %98 : vector<1x16x16x128xf32> to vector<16x16x128xf32>
    %100 = vector.shape_cast %97 : vector<16x16x128xf32> to vector<1x16x16x128xf32>
    tpu.vector_store %arg7[%c0_44, %c0_45, %c0_46, %c0_47], %100 {strides = array<i32>} : memref<1x16x16x128xf32, #tpu.memory_space<vmem>>, vector<1x16x16x128xf32>,
    return
  }
  func.func @transform_1(%arg0: i32, %arg1: i32) -> (i32, i32, i32) {
    %c0_i32 = arith.constant 0 : i32
    %c0_i32_0 = arith.constant 0 : i32
    %c0_i32_1 = arith.constant 0 : i32
    %c0_i32_2 = arith.constant 0 : i32
    return %c0_i32, %c0_i32_0, %c0_i32_1 : i32, i32, i32
  }
  func.func @transform_2(%arg0: i32, %arg1: i32) -> (i32, i32) {
    %c0_i32 = arith.constant 0 : i32
    %c0_i32_0 = arith.constant 0 : i32
    %c0_i32_1 = arith.constant 0 : i32
    return %c0_i32, %c0_i32_0 : i32, i32
  }
  func.func @transform_3(%arg0: i32, %arg1: i32) -> (i32, i32, i32) {
    %c0_i32 = arith.constant 0 : i32
    %c0_i32_0 = arith.constant 0 : i32
    %c0_i32_1 = arith.constant 0 : i32
    %c0_i32_2 = arith.constant 0 : i32
    return %c0_i32, %c0_i32_0, %c0_i32_1 : i32, i32, i32
  }
  func.func @transform_4(%arg0: i32, %arg1: i32) -> (i32, i32) {
    %c0_i32 = arith.constant 0 : i32
    %c0_i32_0 = arith.constant 0 : i32
    %c0_i32_1 = arith.constant 0 : i32
    return %c0_i32, %c0_i32_0 : i32, i32
  }
  func.func @transform_5(%arg0: i32, %arg1: i32) -> (i32, i32, i32, i32) {
    %c0_i32 = arith.constant 0 : i32
    %c0_i32_0 = arith.constant 0 : i32
    %c0_i32_1 = arith.constant 0 : i32
    return %arg0, %arg1, %c0_i32, %c0_i32_0 : i32, i32, i32, i32
  }
}

</mosaic_0001>

<llo_original>
// kernel: tpu_custom_call.1
$region0: #{tpu_custom_call.1}
  #allocation0 [shape = 'u32[]', space=smem, size = 0x4, offset = 0x4, fixed_abs, tag = 'smem constant byte address 0x4 - core index']
  #allocation1 [shape = 'u32[72,128]{1,0:T(1,128)}', space=vmem, size = 0x9000, scoped, tag = 'internal scratch']
  #allocation2 [shape = 'f32[2,20,26,128]{3,2,1,0:T(8,128)}', space=vmem, size = 0xa0000, scoped, tag = 'scratch operand']
  #allocation3 [shape = 's32[2]{0}', space=sflag, size = 0x8, scoped, tag = 'scratch operand']
  #allocation6 [shape = 's32[]', space=sflag, size = 0x4, offset = 0, fixed_abs, tag = 'sflag constant byte address 0x0 - dummy sync flag']
  #allocation7 [shape = 's32[]', space=sflag, size = 0x4, offset = 0, fixed_abs, tag = 'sflag constant byte address 0x0 - dummy sync flag']
  %s0 = inlined_call_operand.vmem [shape: f32[2,20,26,128], index: 0, kind: input, shape index: {}]
  %s1 = inlined_call_operand.vmem [shape: f32[3,384,128], index: 1, kind: input, shape index: {}]
  %s2 = inlined_call_operand.vmem [shape: f32[1,128], index: 2, kind: input, shape index: {}]
  %s3 = inlined_call_operand.vmem [shape: f32[3,384,128], index: 3, kind: input, shape index: {}]
  %s4 = inlined_call_operand.vmem [shape: f32[1,128], index: 4, kind: input, shape index: {}]
  %s5 = inlined_call_operand.hbm [shape: f32[2,16,16,128], index: 5, kind: output, shape index: {}]
  %s6 = sld [smem:[#allocation0]]
  $region101: #{tpu_custom_call.1} parent=0
    _
  %s8 = ssub.s32 1, %s6
  %s9 = scalar_select 0, %s8, %s6
  $region1: #{tpu_custom_call.1} parent=0
    #allocation4 [shape = 'u8[262144]{0}', space=vmem, size = 0x40000, scoped, tag = 'output window, operand 0']
    #allocation5 [shape = 's32[2]{0}', space=sflag, size = 0x8, scoped, tag = 'scoped memory for tpu_custom_call.1']
    %10 = vsyncpa [#allocation5], 0
    %s11 = scalar_lea.sflag [#allocation5], 1
    %12 = vsyncpa %s11, 0
    loop: start=0, step=1, limit=4
    $region2: #{tpu_custom_call.1} parent=1 // loop_pre_header
      _
    $region3: #{tpu_custom_call.1} parent=1 // loop_header
      %s14 = sphi 0, %s18
      %p15 = scmp.ge.s32.totalorder %s14, 4
      %s21 = sphi 0, %s33
      %s22 = sphi 0, %s29
      %s23 = sphi 0, %s21
      %s24 = sphi 0, %s22
      %s25 = sphi 0, %s23
      %s26 = sphi 0, %s24
      %s34 = sphi 0, %s34
      %s36 = sphi 0, %s34
      %s37 = sphi 0, %s36
      %s51 = sphi 0, %s37
      %s55 = sphi 0, %s55
      %s57 = sphi 0, %s55
      %s58 = sphi 0, %s57
      %s72 = sphi 0, %s58
      %s76 = sphi 0, %s76
      %s78 = sphi 0, %s76
      %s79 = sphi 0, %s78
      %s93 = sphi 0, %s79
      %s97 = sphi 0, %s97
      %s99 = sphi 0, %s97
      %s100 = sphi 0, %s99
      %s114 = sphi 0, %s100
      %s122 = sphi 0, %s124
      %s125 = sphi 0, %s122
      %s126 = sphi 0, %s125
      %s142 = sphi 0, %s126
    $region4: #{tpu_custom_call.1} parent=1 // loop_header_branch
      %17 = sbr.rel (%p15) target = $region8
    $region5: #{tpu_custom_call.1} parent=1 // loop_body
      %s19 = ssub.s32 %s14, 1
      %s20 = ssub.s32 %s14, 2
      %s27 = sadd.s32 1, %s22
      %p28 = scmp.ge.s32.totalorder %s27, 1
      %s29 = scalar_select %p28, 0, %s27
      %s30 = sadd.s32 1, %s21
      %s31 = scalar_select %p28, %s30, %s21
      %p32 = scmp.ge.s32.totalorder %s31, 2
      %s33 = scalar_select %p32, 0, %s31
      %s35 = sadd.s32 %s34, 1
      %p38 = scmp.eq.s32.totalorder %s14, 1
      %p39 = scmp.ne.s32.totalorder %s34, %s36
      %p40 = scmp.eq.s32.totalorder %s14, 0
      %p41 = por %p39, %p40
      %p42 = scmp.ne.s32.totalorder %s34, %s36
      %p43 = scmp.eq.s32.totalorder %s19, 1
      %p44 = por %p42, %p43
      %p45 = scmp.ne.s32.totalorder %s36, %s37
      %p46 = scmp.eq.s32.totalorder %s19, 0
      %p47 = por %p45, %p46
      %p48 = scmp.ne.s32.totalorder %s36, %s37
      %p49 = scmp.eq.s32.totalorder %s20, 1
      %p50 = por %p48, %p49
      %p52 = scmp.ne.s32.totalorder %s37, %s51
      %p53 = scmp.eq.s32.totalorder %s20, 0
      %p54 = por %p52, %p53
      %s56 = sadd.s32 %s55, 1
      %p59 = scmp.eq.s32.totalorder %s14, 1
      %p60 = scmp.ne.s32.totalorder %s55, %s57
      %p61 = scmp.eq.s32.totalorder %s14, 0
      %p62 = por %p60, %p61
      %p63 = scmp.ne.s32.totalorder %s55, %s57
      %p64 = scmp.eq.s32.totalorder %s19, 1
      %p65 = por %p63, %p64
      %p66 = scmp.ne.s32.totalorder %s57, %s58
      %p67 = scmp.eq.s32.totalorder %s19, 0
      %p68 = por %p66, %p67
      %p69 = scmp.ne.s32.totalorder %s57, %s58
      %p70 = scmp.eq.s32.totalorder %s20, 1
      %p71 = por %p69, %p70
      %p73 = scmp.ne.s32.totalorder %s58, %s72
      %p74 = scmp.eq.s32.totalorder %s20, 0
      %p75 = por %p73, %p74
      %s77 = sadd.s32 %s76, 1
      %p80 = scmp.eq.s32.totalorder %s14, 1
      %p81 = scmp.ne.s32.totalorder %s76, %s78
      %p82 = scmp.eq.s32.totalorder %s14, 0
      %p83 = por %p81, %p82
      %p84 = scmp.ne.s32.totalorder %s76, %s78
      %p85 = scmp.eq.s32.totalorder %s19, 1
      %p86 = por %p84, %p85
      %p87 = scmp.ne.s32.totalorder %s78, %s79
      %p88 = scmp.eq.s32.totalorder %s19, 0
      %p89 = por %p87, %p88
      %p90 = scmp.ne.s32.totalorder %s78, %s79
      %p91 = scmp.eq.s32.totalorder %s20, 1
      %p92 = por %p90, %p91
      %p94 = scmp.ne.s32.totalorder %s79, %s93
      %p95 = scmp.eq.s32.totalorder %s20, 0
      %p96 = por %p94, %p95
      %s98 = sadd.s32 %s97, 1
      %p101 = scmp.eq.s32.totalorder %s14, 1
      %p102 = scmp.ne.s32.totalorder %s97, %s99
      %p103 = scmp.eq.s32.totalorder %s14, 0
      %p104 = por %p102, %p103
      %p105 = scmp.ne.s32.totalorder %s97, %s99
      %p106 = scmp.eq.s32.totalorder %s19, 1
      %p107 = por %p105, %p106
      %p108 = scmp.ne.s32.totalorder %s99, %s100
      %p109 = scmp.eq.s32.totalorder %s19, 0
      %p110 = por %p108, %p109
      %p111 = scmp.ne.s32.totalorder %s99, %s100
      %p112 = scmp.eq.s32.totalorder %s20, 1
      %p113 = por %p111, %p112
      %p115 = scmp.ne.s32.totalorder %s100, %s114
      %p116 = scmp.eq.s32.totalorder %s20, 0
      %p117 = por %p115, %p116
      %s118 = ssub.s32 %s21, %s33
      %s119 = ssub.s32 %s22, %s29
      %s120 = sor.u32 %s118, %s119
      %p121 = scmp.eq.s32.totalorder %s120, 0
      %s123 = sadd.s32 %s122, 1
      %s124 = scalar_select %p121, %s122, %s123
      %p127 = pneg %p121
      %p128 = scmp.eq.s32.totalorder %s14, 1
      %p129 = por %p127, %p128
      %p130 = scmp.ne.s32.totalorder %s122, %s125
      %p131 = scmp.eq.s32.totalorder %s14, 0
      %p132 = por %p130, %p131
      %p133 = scmp.ne.s32.totalorder %s122, %s125
      %p134 = scmp.eq.s32.totalorder %s19, 1
      %p135 = por %p133, %p134
      %p136 = scmp.ne.s32.totalorder %s125, %s126
      %p137 = scmp.eq.s32.totalorder %s19, 0
      %p138 = por %p136, %p137
      %p139 = scmp.ne.s32.totalorder %s125, %s126
      %p140 = scmp.eq.s32.totalorder %s20, 1
      %p141 = por %p139, %p140
      %p143 = scmp.ne.s32.totalorder %s126, %s142
      %p144 = scmp.eq.s32.totalorder %s20, 0
      %p145 = por %p143, %p144
      %p146 = scmp.le.s32.totalorder 1, %s14
      %p147 = scmp.lt.s32.totalorder %s14, 3
      %p148 = pnand %p146, %p147
      %p149 = pneg %p148
      // Predicated region
      $region9: #{tpu_custom_call.1} parent=5 // pred_check
        _
      $region10: #{tpu_custom_call.1} parent=5 // pred_check_branch
        %151 = sbr.rel (%p148) target = $region12
      $region11: #{tpu_custom_call.1} parent=5 // pred_region
        %s152 = ssub.s32 %s14, 1
        // Predicated region
        $region13: #{tpu_custom_call.1} parent=11 // pred_check
          %p153 = pneg %p47
        $region14: #{tpu_custom_call.1} parent=11 // pred_check_branch
          %155 = sbr.rel (%p153) target = $region16
        $region15: #{tpu_custom_call.1} parent=11 // pred_region
          _
        $region16: #{tpu_custom_call.1} parent=11 // pred_fallthru
          _
        // Predicated region
        $region17: #{tpu_custom_call.1} parent=11 // pred_check
          %p156 = pneg %p68
        $region18: #{tpu_custom_call.1} parent=11 // pred_check_branch
          %158 = sbr.rel (%p156) target = $region20
        $region19: #{tpu_custom_call.1} parent=11 // pred_region
          _
        $region20: #{tpu_custom_call.1} parent=11 // pred_fallthru
          _
        // Predicated region
        $region21: #{tpu_custom_call.1} parent=11 // pred_check
          %p159 = pneg %p89
        $region22: #{tpu_custom_call.1} parent=11 // pred_check_branch
          %161 = sbr.rel (%p159) target = $region24
        $region23: #{tpu_custom_call.1} parent=11 // pred_region
          _
        $region24: #{tpu_custom_call.1} parent=11 // pred_fallthru
          _
        // Predicated region
        $region25: #{tpu_custom_call.1} parent=11 // pred_check
          %p162 = pneg %p110
        $region26: #{tpu_custom_call.1} parent=11 // pred_check_branch
          %164 = sbr.rel (%p162) target = $region28
        $region27: #{tpu_custom_call.1} parent=11 // pred_region
          _
        $region28: #{tpu_custom_call.1} parent=11 // pred_fallthru
          _
      $region12: #{tpu_custom_call.1} parent=5 // pred_fallthru
        _
      %p165 = scmp.lt.s32.totalorder %s14, 2
      // Predicated region
      $region29: #{tpu_custom_call.1} parent=5 // pred_check
        %p166 = pneg %p165
      $region30: #{tpu_custom_call.1} parent=5 // pred_check_branch
        %168 = sbr.rel (%p166) target = $region32
      $region31: #{tpu_custom_call.1} parent=5 // pred_region
        _
      $region32: #{tpu_custom_call.1} parent=5 // pred_fallthru
        _
      %p169 = scmp.le.s32.totalorder 1, %s14
      %p170 = scmp.lt.s32.totalorder %s14, 3
      %p171 = pnand %p169, %p170
      %p172 = pneg %p171
      // Predicated region
      $region33: #{tpu_custom_call.1} parent=5 // pred_check
        _
      $region34: #{tpu_custom_call.1} parent=5 // pred_check_branch
        %174 = sbr.rel (%p171) target = $region36
      $region35: #{tpu_custom_call.1} parent=5 // pred_region
        %s175 = ssub.s32 %s14, 1
        %p176 = pneg %p47
        %p177 = pneg %p44
        %p178 = pneg %p68
        %p179 = pneg %p65
        %p180 = pneg %p89
        %p181 = pneg %p86
        %p182 = pneg %p110
        %p183 = pneg %p107
        %p184 = pneg %p138
        %p185 = pneg %p135
        %s186 = sand.u32 %s125, 1
        %s187 = scalar_lea.sflag [#allocation5], %s186
        %s188 = sand.u32 %s125, 1
        %s189 = smul.addr %s188, 256
        %s190 = scalar_lea.vmem [#allocation4], %s189
        %s191 = smul.u32 16, %s24
        %p192 = scmp.lt.s32.totalorder %s24, 0
        %s193 = ssub.s32 0, %s24
        %s194 = scalar_select %p192, %s193, %s24
        %s195 = sand.u32 %s194, 1
        %s196 = ssub.s32 0, %s195
        %s197 = scalar_select %p192, %s196, %s195
        %p198 = scmp.eq.s32.totalorder %s24, 0
        // Predicated region
        $region37: #{tpu_custom_call.1} parent=35 // pred_check
          %p199 = pneg %p198
        $region38: #{tpu_custom_call.1} parent=35 // pred_check_branch
          %201 = sbr.rel (%p199) target = $region40
        $region39: #{tpu_custom_call.1} parent=35 // pred_region
          %s202 = smul.u32 0, 32
          %s203 = smul.u32 %s23, 640
          %s204 = sadd.s32 %s202, %s203
          %s205 = scalar_lea.vmem %s0, %s204
          // Predicated region
          $region41: #{tpu_custom_call.1} parent=39 // pred_check
            _
          $region42: #{tpu_custom_call.1} parent=39 // pred_check_branch
            %207 = sbr.rel (0) target = $region44
          $region43: #{tpu_custom_call.1} parent=39 // pred_region
            %s208 = scalar_lea.vmem %s205, 24
            %s209 = scalar_lea.vmem [#allocation2], 24
            loop: start=0, step=1, limit=1
            $region45: #{tpu_custom_call.1} parent=43 // loop_pre_header
              _
            $region46: #{tpu_custom_call.1} parent=43 // loop_header
              %s211 = sphi 0, %s215
              %p212 = scmp.ge.s32.totalorder %s211, 1
              %s216 = sphi %s205, %s205
              %s217 = sphi [#allocation2], [#allocation2]
            $region47: #{tpu_custom_call.1} parent=43 // loop_header_branch
              %214 = sbr.rel (%p212) target = $region51
            $region48: #{tpu_custom_call.1} parent=43 // loop_body
              %v218 = vld [vmem:[%s216] sm:$0xff]
              %219 = vst [vmem:[%s217] sm:$0xff] %v218
              %v220 = vld [vmem:[%s216 + $0x8] sm:$0xff]
              %221 = vst [vmem:[%s217 + $0x8] sm:$0xff] %v220
              %v222 = vld [vmem:[%s216 + $0x10] sm:$0xff]
              %223 = vst [vmem:[%s217 + $0x10] sm:$0xff] %v222
              %v224 = vld [vmem:[%s216 + $0x20] sm:$0xff]
              %225 = vst [vmem:[%s217 + $0x20] sm:$0xff] %v224
              %v226 = vld [vmem:[%s216 + $0x28] sm:$0xff]
              %227 = vst [vmem:[%s217 + $0x28] sm:$0xff] %v226
              %v228 = vld [vmem:[%s216 + $0x30] sm:$0xff]
              %229 = vst [vmem:[%s217 + $0x30] sm:$0xff] %v228
              %v230 = vld [vmem:[%s216 + $0x40] sm:$0xff]
              %231 = vst [vmem:[%s217 + $0x40] sm:$0xff] %v230
              %v232 = vld [vmem:[%s216 + $0x48] sm:$0xff]
              %233 = vst [vmem:[%s217 + $0x48] sm:$0xff] %v232
              %v234 = vld [vmem:[%s216 + $0x50] sm:$0xff]
              %235 = vst [vmem:[%s217 + $0x50] sm:$0xff] %v234
              %v236 = vld [vmem:[%s216 + $0x60] sm:$0xff]
              %237 = vst [vmem:[%s217 + $0x60] sm:$0xff] %v236
              %v238 = vld [vmem:[%s216 + $0x68] sm:$0xff]
              %239 = vst [vmem:[%s217 + $0x68] sm:$0xff] %v238
              %v240 = vld [vmem:[%s216 + $0x70] sm:$0xff]
              %241 = vst [vmem:[%s217 + $0x70] sm:$0xff] %v240
              %v242 = vld [vmem:[%s216 + $0x80] sm:$0xff]
              %243 = vst [vmem:[%s217 + $0x80] sm:$0xff] %v242
              %v244 = vld [vmem:[%s216 + $0x88] sm:$0xff]
              %245 = vst [vmem:[%s217 + $0x88] sm:$0xff] %v244
              %v246 = vld [vmem:[%s216 + $0x90] sm:$0xff]
              %247 = vst [vmem:[%s217 + $0x90] sm:$0xff] %v246
              %v248 = vld [vmem:[%s216 + $0xa0] sm:$0xff]
              %249 = vst [vmem:[%s217 + $0xa0] sm:$0xff] %v248
              %v250 = vld [vmem:[%s216 + $0xa8] sm:$0xff]
              %251 = vst [vmem:[%s217 + $0xa8] sm:$0xff] %v250
              %v252 = vld [vmem:[%s216 + $0xb0] sm:$0xff]
              %253 = vst [vmem:[%s217 + $0xb0] sm:$0xff] %v252
              %v254 = vld [vmem:[%s216 + $0xc0] sm:$0xff]
              %255 = vst [vmem:[%s217 + $0xc0] sm:$0xff] %v254
              %v256 = vld [vmem:[%s216 + $0xc8] sm:$0xff]
              %257 = vst [vmem:[%s217 + $0xc8] sm:$0xff] %v256
              %v258 = vld [vmem:[%s216 + $0xd0] sm:$0xff]
              %259 = vst [vmem:[%s217 + $0xd0] sm:$0xff] %v258
              %v260 = vld [vmem:[%s216 + $0xe0] sm:$0xff]
              %261 = vst [vmem:[%s217 + $0xe0] sm:$0xff] %v260
              %v262 = vld [vmem:[%s216 + $0xe8] sm:$0xff]
              %263 = vst [vmem:[%s217 + $0xe8] sm:$0xff] %v262
              %v264 = vld [vmem:[%s216 + $0xf0] sm:$0xff]
              %265 = vst [vmem:[%s217 + $0xf0] sm:$0xff] %v264
              %v266 = vld [vmem:[%s216 + $0x100] sm:$0xff]
              %267 = vst [vmem:[%s217 + $0x100] sm:$0xff] %v266
              %v268 = vld [vmem:[%s216 + $0x108] sm:$0xff]
              %269 = vst [vmem:[%s217 + $0x108] sm:$0xff] %v268
              %v270 = vld [vmem:[%s216 + $0x110] sm:$0xff]
              %271 = vst [vmem:[%s217 + $0x110] sm:$0xff] %v270
              %v272 = vld [vmem:[%s216 + $0x120] sm:$0xff]
              %273 = vst [vmem:[%s217 + $0x120] sm:$0xff] %v272
              %v274 = vld [vmem:[%s216 + $0x128] sm:$0xff]
              %275 = vst [vmem:[%s217 + $0x128] sm:$0xff] %v274
              %v276 = vld [vmem:[%s216 + $0x130] sm:$0xff]
              %277 = vst [vmem:[%s217 + $0x130] sm:$0xff] %v276
              %v278 = vld [vmem:[%s216 + $0x140] sm:$0xff]
              %279 = vst [vmem:[%s217 + $0x140] sm:$0xff] %v278
              %v280 = vld [vmem:[%s216 + $0x148] sm:$0xff]
              %281 = vst [vmem:[%s217 + $0x148] sm:$0xff] %v280
              %v282 = vld [vmem:[%s216 + $0x150] sm:$0xff]
              %283 = vst [vmem:[%s217 + $0x150] sm:$0xff] %v282
              %v284 = vld [vmem:[%s216 + $0x160] sm:$0xff]
              %285 = vst [vmem:[%s217 + $0x160] sm:$0xff] %v284
              %v286 = vld [vmem:[%s216 + $0x168] sm:$0xff]
              %287 = vst [vmem:[%s217 + $0x168] sm:$0xff] %v286
              %v288 = vld [vmem:[%s216 + $0x170] sm:$0xff]
              %289 = vst [vmem:[%s217 + $0x170] sm:$0xff] %v288
              %v290 = vld [vmem:[%s216 + $0x180] sm:$0xff]
              %291 = vst [vmem:[%s217 + $0x180] sm:$0xff] %v290
              %v292 = vld [vmem:[%s216 + $0x188] sm:$0xff]
              %293 = vst [vmem:[%s217 + $0x188] sm:$0xff] %v292
              %v294 = vld [vmem:[%s216 + $0x190] sm:$0xff]
              %295 = vst [vmem:[%s217 + $0x190] sm:$0xff] %v294
              %v296 = vld [vmem:[%s216 + $0x1a0] sm:$0xff]
              %297 = vst [vmem:[%s217 + $0x1a0] sm:$0xff] %v296
              %v298 = vld [vmem:[%s216 + $0x1a8] sm:$0xff]
              %299 = vst [vmem:[%s217 + $0x1a8] sm:$0xff] %v298
              %v300 = vld [vmem:[%s216 + $0x1b0] sm:$0xff]
              %301 = vst [vmem:[%s217 + $0x1b0] sm:$0xff] %v300
              %v302 = vld [vmem:[%s216 + $0x1c0] sm:$0xff]
              %303 = vst [vmem:[%s217 + $0x1c0] sm:$0xff] %v302
              %v304 = vld [vmem:[%s216 + $0x1c8] sm:$0xff]
              %305 = vst [vmem:[%s217 + $0x1c8] sm:$0xff] %v304
              %v306 = vld [vmem:[%s216 + $0x1d0] sm:$0xff]
              %307 = vst [vmem:[%s217 + $0x1d0] sm:$0xff] %v306
              %v308 = vld [vmem:[%s216 + $0x1e0] sm:$0xff]
              %309 = vst [vmem:[%s217 + $0x1e0] sm:$0xff] %v308
              %v310 = vld [vmem:[%s216 + $0x1e8] sm:$0xff]
              %311 = vst [vmem:[%s217 + $0x1e8] sm:$0xff] %v310
              %v312 = vld [vmem:[%s216 + $0x1f0] sm:$0xff]
              %313 = vst [vmem:[%s217 + $0x1f0] sm:$0xff] %v312
              %v314 = vld [vmem:[%s216 + $0x200] sm:$0xff]
              %315 = vst [vmem:[%s217 + $0x200] sm:$0xff] %v314
              %v316 = vld [vmem:[%s216 + $0x208] sm:$0xff]
              %317 = vst [vmem:[%s217 + $0x208] sm:$0xff] %v316
              %v318 = vld [vmem:[%s216 + $0x210] sm:$0xff]
              %319 = vst [vmem:[%s217 + $0x210] sm:$0xff] %v318
              %v320 = vld [vmem:[%s216 + $0x220] sm:$0xff]
              %321 = vst [vmem:[%s217 + $0x220] sm:$0xff] %v320
              %v322 = vld [vmem:[%s216 + $0x228] sm:$0xff]
              %323 = vst [vmem:[%s217 + $0x228] sm:$0xff] %v322
              %v324 = vld [vmem:[%s216 + $0x230] sm:$0xff]
              %325 = vst [vmem:[%s217 + $0x230] sm:$0xff] %v324
              %v326 = vld [vmem:[%s216 + $0x240] sm:$0xff]
              %327 = vst [vmem:[%s217 + $0x240] sm:$0xff] %v326
              %v328 = vld [vmem:[%s216 + $0x248] sm:$0xff]
              %329 = vst [vmem:[%s217 + $0x248] sm:$0xff] %v328
              %v330 = vld [vmem:[%s216 + $0x250] sm:$0xff]
              %331 = vst [vmem:[%s217 + $0x250] sm:$0xff] %v330
              %v332 = vld [vmem:[%s216 + $0x260] sm:$0xff]
              %333 = vst [vmem:[%s217 + $0x260] sm:$0xff] %v332
              %v334 = vld [vmem:[%s216 + $0x268] sm:$0xff]
              %335 = vst [vmem:[%s217 + $0x268] sm:$0xff] %v334
              %v336 = vld [vmem:[%s216 + $0x270] sm:$0xff]
              %337 = vst [vmem:[%s217 + $0x270] sm:$0xff] %v336
            $region49: #{tpu_custom_call.1} parent=43 // loop_footer
              %s215 = sadd.s32 1, %s211
            $region50: #{tpu_custom_call.1} parent=43 // loop_footer_branch
              %210 = sbr.rel target = $region46
            $region51: #{tpu_custom_call.1} parent=43 // loop_exit
              _
            %s339 = ssub.s32 4, 1
            loop: start=0, step=1, limit=1
            $region52: #{tpu_custom_call.1} parent=43 // loop_pre_header
              _
            $region53: #{tpu_custom_call.1} parent=43 // loop_header
              %s341 = sphi 0, %s345
              %p342 = scmp.ge.s32.totalorder %s341, 1
              %s346 = sphi %s208, %s208
              %s347 = sphi %s209, %s209
            $region54: #{tpu_custom_call.1} parent=43 // loop_header_branch
              %344 = sbr.rel (%p342) target = $region58
            $region55: #{tpu_custom_call.1} parent=43 // loop_body
              %v348 = vld [vmem:[%s346] sm:%s339]
              %349 = vst [vmem:[%s347] sm:%s339] %v348
              %v350 = vld [vmem:[%s346 + $0x20] sm:%s339]
              %351 = vst [vmem:[%s347 + $0x20] sm:%s339] %v350
              %v352 = vld [vmem:[%s346 + $0x40] sm:%s339]
              %353 = vst [vmem:[%s347 + $0x40] sm:%s339] %v352
              %v354 = vld [vmem:[%s346 + $0x60] sm:%s339]
              %355 = vst [vmem:[%s347 + $0x60] sm:%s339] %v354
              %v356 = vld [vmem:[%s346 + $0x80] sm:%s339]
              %357 = vst [vmem:[%s347 + $0x80] sm:%s339] %v356
              %v358 = vld [vmem:[%s346 + $0xa0] sm:%s339]
              %359 = vst [vmem:[%s347 + $0xa0] sm:%s339] %v358
              %v360 = vld [vmem:[%s346 + $0xc0] sm:%s339]
              %361 = vst [vmem:[%s347 + $0xc0] sm:%s339] %v360
              %v362 = vld [vmem:[%s346 + $0xe0] sm:%s339]
              %363 = vst [vmem:[%s347 + $0xe0] sm:%s339] %v362
              %v364 = vld [vmem:[%s346 + $0x100] sm:%s339]
              %365 = vst [vmem:[%s347 + $0x100] sm:%s339] %v364
              %v366 = vld [vmem:[%s346 + $0x120] sm:%s339]
              %367 = vst [vmem:[%s347 + $0x120] sm:%s339] %v366
              %v368 = vld [vmem:[%s346 + $0x140] sm:%s339]
              %369 = vst [vmem:[%s347 + $0x140] sm:%s339] %v368
              %v370 = vld [vmem:[%s346 + $0x160] sm:%s339]
              %371 = vst [vmem:[%s347 + $0x160] sm:%s339] %v370
              %v372 = vld [vmem:[%s346 + $0x180] sm:%s339]
              %373 = vst [vmem:[%s347 + $0x180] sm:%s339] %v372
              %v374 = vld [vmem:[%s346 + $0x1a0] sm:%s339]
              %375 = vst [vmem:[%s347 + $0x1a0] sm:%s339] %v374
              %v376 = vld [vmem:[%s346 + $0x1c0] sm:%s339]
              %377 = vst [vmem:[%s347 + $0x1c0] sm:%s339] %v376
              %v378 = vld [vmem:[%s346 + $0x1e0] sm:%s339]
              %379 = vst [vmem:[%s347 + $0x1e0] sm:%s339] %v378
              %v380 = vld [vmem:[%s346 + $0x200] sm:%s339]
              %381 = vst [vmem:[%s347 + $0x200] sm:%s339] %v380
              %v382 = vld [vmem:[%s346 + $0x220] sm:%s339]
              %383 = vst [vmem:[%s347 + $0x220] sm:%s339] %v382
              %v384 = vld [vmem:[%s346 + $0x240] sm:%s339]
              %385 = vst [vmem:[%s347 + $0x240] sm:%s339] %v384
              %v386 = vld [vmem:[%s346 + $0x260] sm:%s339]
              %387 = vst [vmem:[%s347 + $0x260] sm:%s339] %v386
            $region56: #{tpu_custom_call.1} parent=43 // loop_footer
              %s345 = sadd.s32 1, %s341
            $region57: #{tpu_custom_call.1} parent=43 // loop_footer_branch
              %340 = sbr.rel target = $region53
            $region58: #{tpu_custom_call.1} parent=43 // loop_exit
              _
          $region44: #{tpu_custom_call.1} parent=39 // pred_fallthru
            _
          // Predicated region
          $region59: #{tpu_custom_call.1} parent=39 // pred_check
            _
          $region60: #{tpu_custom_call.1} parent=39 // pred_check_branch
            %390 = sbr.rel (0) target = $region62
          $region61: #{tpu_custom_call.1} parent=39 // pred_region
            %391 = vsyncadd [#allocation3], 8320
          $region62: #{tpu_custom_call.1} parent=39 // pred_fallthru
            _
        $region40: #{tpu_custom_call.1} parent=35 // pred_fallthru
          _
        %s392 = smul.u32 %s197, 640
        %s393 = scalar_lea.vmem [#allocation2], %s392
        %s394 = scalar_lea.sflag [#allocation3], %s197
        %s395 = smul.u32 20, 26
        %s396 = smul.u32 %s395, 1
        %s397 = sshll.u32 %s396, 4
        %398 = dma.done %s394, %s397
        %s399 = sadd.s32 %s24, 1
        %p400 = scmp.lt.s32.totalorder %s399, 1
        // Predicated region
        $region63: #{tpu_custom_call.1} parent=35 // pred_check
          %p401 = pneg %p400
        $region64: #{tpu_custom_call.1} parent=35 // pred_check_branch
          %403 = sbr.rel (%p401) target = $region66
        $region65: #{tpu_custom_call.1} parent=35 // pred_region
          %s404 = ssub.s32 1, %s197
          %s405 = smul.u32 %s399, 16
          %s406 = smul.u32 %s405, 32
          %s407 = smul.u32 %s23, 640
          %s408 = sadd.s32 %s406, %s407
          %s409 = scalar_lea.vmem %s0, %s408
          %s410 = smul.u32 %s404, 640
          %s411 = scalar_lea.vmem [#allocation2], %s410
          %s412 = scalar_lea.sflag [#allocation3], %s404
          // Predicated region
          $region67: #{tpu_custom_call.1} parent=65 // pred_check
            _
          $region68: #{tpu_custom_call.1} parent=65 // pred_check_branch
            %414 = sbr.rel (0) target = $region70
          $region69: #{tpu_custom_call.1} parent=65 // pred_region
            %s415 = scalar_lea.vmem %s409, 24
            %s416 = scalar_lea.vmem %s411, 24 [#allocation2]
            loop: start=0, step=1, limit=1
            $region71: #{tpu_custom_call.1} parent=69 // loop_pre_header
              _
            $region72: #{tpu_custom_call.1} parent=69 // loop_header
              %s418 = sphi 0, %s422
              %p419 = scmp.ge.s32.totalorder %s418, 1
              %s423 = sphi %s409, %s409
              %s424 = sphi %s411, %s411
            $region73: #{tpu_custom_call.1} parent=69 // loop_header_branch
              %421 = sbr.rel (%p419) target = $region77
            $region74: #{tpu_custom_call.1} parent=69 // loop_body
              %v425 = vld [vmem:[%s423] sm:$0xff]
              %426 = vst [vmem:[%s424] sm:$0xff] %v425
              %v427 = vld [vmem:[%s423 + $0x8] sm:$0xff]
              %428 = vst [vmem:[%s424 + $0x8] sm:$0xff] %v427
              %v429 = vld [vmem:[%s423 + $0x10] sm:$0xff]
              %430 = vst [vmem:[%s424 + $0x10] sm:$0xff] %v429
              %v431 = vld [vmem:[%s423 + $0x20] sm:$0xff]
              %432 = vst [vmem:[%s424 + $0x20] sm:$0xff] %v431
              %v433 = vld [vmem:[%s423 + $0x28] sm:$0xff]
              %434 = vst [vmem:[%s424 + $0x28] sm:$0xff] %v433
              %v435 = vld [vmem:[%s423 + $0x30] sm:$0xff]
              %436 = vst [vmem:[%s424 + $0x30] sm:$0xff] %v435
              %v437 = vld [vmem:[%s423 + $0x40] sm:$0xff]
              %438 = vst [vmem:[%s424 + $0x40] sm:$0xff] %v437
              %v439 = vld [vmem:[%s423 + $0x48] sm:$0xff]
              %440 = vst [vmem:[%s424 + $0x48] sm:$0xff] %v439
              %v441 = vld [vmem:[%s423 + $0x50] sm:$0xff]
              %442 = vst [vmem:[%s424 + $0x50] sm:$0xff] %v441
              %v443 = vld [vmem:[%s423 + $0x60] sm:$0xff]
              %444 = vst [vmem:[%s424 + $0x60] sm:$0xff] %v443
              %v445 = vld [vmem:[%s423 + $0x68] sm:$0xff]
              %446 = vst [vmem:[%s424 + $0x68] sm:$0xff] %v445
              %v447 = vld [vmem:[%s423 + $0x70] sm:$0xff]
              %448 = vst [vmem:[%s424 + $0x70] sm:$0xff] %v447
              %v449 = vld [vmem:[%s423 + $0x80] sm:$0xff]
              %450 = vst [vmem:[%s424 + $0x80] sm:$0xff] %v449
              %v451 = vld [vmem:[%s423 + $0x88] sm:$0xff]
              %452 = vst [vmem:[%s424 + $0x88] sm:$0xff] %v451
              %v453 = vld [vmem:[%s423 + $0x90] sm:$0xff]
              %454 = vst [vmem:[%s424 + $0x90] sm:$0xff] %v453
              %v455 = vld [vmem:[%s423 + $0xa0] sm:$0xff]
              %456 = vst [vmem:[%s424 + $0xa0] sm:$0xff] %v455
              %v457 = vld [vmem:[%s423 + $0xa8] sm:$0xff]
              %458 = vst [vmem:[%s424 + $0xa8] sm:$0xff] %v457
              %v459 = vld [vmem:[%s423 + $0xb0] sm:$0xff]
              %460 = vst [vmem:[%s424 + $0xb0] sm:$0xff] %v459
              %v461 = vld [vmem:[%s423 + $0xc0] sm:$0xff]
              %462 = vst [vmem:[%s424 + $0xc0] sm:$0xff] %v461
              %v463 = vld [vmem:[%s423 + $0xc8] sm:$0xff]
              %464 = vst [vmem:[%s424 + $0xc8] sm:$0xff] %v463
              %v465 = vld [vmem:[%s423 + $0xd0] sm:$0xff]
              %466 = vst [vmem:[%s424 + $0xd0] sm:$0xff] %v465
              %v467 = vld [vmem:[%s423 + $0xe0] sm:$0xff]
              %468 = vst [vmem:[%s424 + $0xe0] sm:$0xff] %v467
              %v469 = vld [vmem:[%s423 + $0xe8] sm:$0xff]
              %470 = vst [vmem:[%s424 + $0xe8] sm:$0xff] %v469
              %v471 = vld [vmem:[%s423 + $0xf0] sm:$0xff]
              %472 = vst [vmem:[%s424 + $0xf0] sm:$0xff] %v471
              %v473 = vld [vmem:[%s423 + $0x100] sm:$0xff]
              %474 = vst [vmem:[%s424 + $0x100] sm:$0xff] %v473
              %v475 = vld [vmem:[%s423 + $0x108] sm:$0xff]
              %476 = vst [vmem:[%s424 + $0x108] sm:$0xff] %v475
              %v477 = vld [vmem:[%s423 + $0x110] sm:$0xff]
              %478 = vst [vmem:[%s424 + $0x110] sm:$0xff] %v477
              %v479 = vld [vmem:[%s423 + $0x120] sm:$0xff]
              %480 = vst [vmem:[%s424 + $0x120] sm:$0xff] %v479
              %v481 = vld [vmem:[%s423 + $0x128] sm:$0xff]
              %482 = vst [vmem:[%s424 + $0x128] sm:$0xff] %v481
              %v483 = vld [vmem:[%s423 + $0x130] sm:$0xff]
              %484 = vst [vmem:[%s424 + $0x130] sm:$0xff] %v483
              %v485 = vld [vmem:[%s423 + $0x140] sm:$0xff]
              %486 = vst [vmem:[%s424 + $0x140] sm:$0xff] %v485
              %v487 = vld [vmem:[%s423 + $0x148] sm:$0xff]
              %488 = vst [vmem:[%s424 + $0x148] sm:$0xff] %v487
              %v489 = vld [vmem:[%s423 + $0x150] sm:$0xff]
              %490 = vst [vmem:[%s424 + $0x150] sm:$0xff] %v489
              %v491 = vld [vmem:[%s423 + $0x160] sm:$0xff]
              %492 = vst [vmem:[%s424 + $0x160] sm:$0xff] %v491
              %v493 = vld [vmem:[%s423 + $0x168] sm:$0xff]
              %494 = vst [vmem:[%s424 + $0x168] sm:$0xff] %v493
              %v495 = vld [vmem:[%s423 + $0x170] sm:$0xff]
              %496 = vst [vmem:[%s424 + $0x170] sm:$0xff] %v495
              %v497 = vld [vmem:[%s423 + $0x180] sm:$0xff]
              %498 = vst [vmem:[%s424 + $0x180] sm:$0xff] %v497
              %v499 = vld [vmem:[%s423 + $0x188] sm:$0xff]
              %500 = vst [vmem:[%s424 + $0x188] sm:$0xff] %v499
              %v501 = vld [vmem:[%s423 + $0x190] sm:$0xff]
              %502 = vst [vmem:[%s424 + $0x190] sm:$0xff] %v501
              %v503 = vld [vmem:[%s423 + $0x1a0] sm:$0xff]
              %504 = vst [vmem:[%s424 + $0x1a0] sm:$0xff] %v503
              %v505 = vld [vmem:[%s423 + $0x1a8] sm:$0xff]
              %506 = vst [vmem:[%s424 + $0x1a8] sm:$0xff] %v505
              %v507 = vld [vmem:[%s423 + $0x1b0] sm:$0xff]
              %508 = vst [vmem:[%s424 + $0x1b0] sm:$0xff] %v507
              %v509 = vld [vmem:[%s423 + $0x1c0] sm:$0xff]
              %510 = vst [vmem:[%s424 + $0x1c0] sm:$0xff] %v509
              %v511 = vld [vmem:[%s423 + $0x1c8] sm:$0xff]
              %512 = vst [vmem:[%s424 + $0x1c8] sm:$0xff] %v511
              %v513 = vld [vmem:[%s423 + $0x1d0] sm:$0xff]
              %514 = vst [vmem:[%s424 + $0x1d0] sm:$0xff] %v513
              %v515 = vld [vmem:[%s423 + $0x1e0] sm:$0xff]
              %516 = vst [vmem:[%s424 + $0x1e0] sm:$0xff] %v515
              %v517 = vld [vmem:[%s423 + $0x1e8] sm:$0xff]
              %518 = vst [vmem:[%s424 + $0x1e8] sm:$0xff] %v517
              %v519 = vld [vmem:[%s423 + $0x1f0] sm:$0xff]
              %520 = vst [vmem:[%s424 + $0x1f0] sm:$0xff] %v519
              %v521 = vld [vmem:[%s423 + $0x200] sm:$0xff]
              %522 = vst [vmem:[%s424 + $0x200] sm:$0xff] %v521
              %v523 = vld [vmem:[%s423 + $0x208] sm:$0xff]
              %524 = vst [vmem:[%s424 + $0x208] sm:$0xff] %v523
              %v525 = vld [vmem:[%s423 + $0x210] sm:$0xff]
              %526 = vst [vmem:[%s424 + $0x210] sm:$0xff] %v525
              %v527 = vld [vmem:[%s423 + $0x220] sm:$0xff]
              %528 = vst [vmem:[%s424 + $0x220] sm:$0xff] %v527
              %v529 = vld [vmem:[%s423 + $0x228] sm:$0xff]
              %530 = vst [vmem:[%s424 + $0x228] sm:$0xff] %v529
              %v531 = vld [vmem:[%s423 + $0x230] sm:$0xff]
              %532 = vst [vmem:[%s424 + $0x230] sm:$0xff] %v531
              %v533 = vld [vmem:[%s423 + $0x240] sm:$0xff]
              %534 = vst [vmem:[%s424 + $0x240] sm:$0xff] %v533
              %v535 = vld [vmem:[%s423 + $0x248] sm:$0xff]
              %536 = vst [vmem:[%s424 + $0x248] sm:$0xff] %v535
              %v537 = vld [vmem:[%s423 + $0x250] sm:$0xff]
              %538 = vst [vmem:[%s424 + $0x250] sm:$0xff] %v537
              %v539 = vld [vmem:[%s423 + $0x260] sm:$0xff]
              %540 = vst [vmem:[%s424 + $0x260] sm:$0xff] %v539
              %v541 = vld [vmem:[%s423 + $0x268] sm:$0xff]
              %542 = vst [vmem:[%s424 + $0x268] sm:$0xff] %v541
              %v543 = vld [vmem:[%s423 + $0x270] sm:$0xff]
              %544 = vst [vmem:[%s424 + $0x270] sm:$0xff] %v543
            $region75: #{tpu_custom_call.1} parent=69 // loop_footer
              %s422 = sadd.s32 1, %s418
            $region76: #{tpu_custom_call.1} parent=69 // loop_footer_branch
              %417 = sbr.rel target = $region72
            $region77: #{tpu_custom_call.1} parent=69 // loop_exit
              _
            %s546 = ssub.s32 4, 1
            loop: start=0, step=1, limit=1
            $region78: #{tpu_custom_call.1} parent=69 // loop_pre_header
              _
            $region79: #{tpu_custom_call.1} parent=69 // loop_header
              %s548 = sphi 0, %s552
              %p549 = scmp.ge.s32.totalorder %s548, 1
              %s553 = sphi %s415, %s415
              %s554 = sphi %s416, %s416
            $region80: #{tpu_custom_call.1} parent=69 // loop_header_branch
              %551 = sbr.rel (%p549) target = $region84
            $region81: #{tpu_custom_call.1} parent=69 // loop_body
              %v555 = vld [vmem:[%s553] sm:%s546]
              %556 = vst [vmem:[%s554] sm:%s546] %v555
              %v557 = vld [vmem:[%s553 + $0x20] sm:%s546]
              %558 = vst [vmem:[%s554 + $0x20] sm:%s546] %v557
              %v559 = vld [vmem:[%s553 + $0x40] sm:%s546]
              %560 = vst [vmem:[%s554 + $0x40] sm:%s546] %v559
              %v561 = vld [vmem:[%s553 + $0x60] sm:%s546]
              %562 = vst [vmem:[%s554 + $0x60] sm:%s546] %v561
              %v563 = vld [vmem:[%s553 + $0x80] sm:%s546]
              %564 = vst [vmem:[%s554 + $0x80] sm:%s546] %v563
              %v565 = vld [vmem:[%s553 + $0xa0] sm:%s546]
              %566 = vst [vmem:[%s554 + $0xa0] sm:%s546] %v565
              %v567 = vld [vmem:[%s553 + $0xc0] sm:%s546]
              %568 = vst [vmem:[%s554 + $0xc0] sm:%s546] %v567
              %v569 = vld [vmem:[%s553 + $0xe0] sm:%s546]
              %570 = vst [vmem:[%s554 + $0xe0] sm:%s546] %v569
              %v571 = vld [vmem:[%s553 + $0x100] sm:%s546]
              %572 = vst [vmem:[%s554 + $0x100] sm:%s546] %v571
              %v573 = vld [vmem:[%s553 + $0x120] sm:%s546]
              %574 = vst [vmem:[%s554 + $0x120] sm:%s546] %v573
              %v575 = vld [vmem:[%s553 + $0x140] sm:%s546]
              %576 = vst [vmem:[%s554 + $0x140] sm:%s546] %v575
              %v577 = vld [vmem:[%s553 + $0x160] sm:%s546]
              %578 = vst [vmem:[%s554 + $0x160] sm:%s546] %v577
              %v579 = vld [vmem:[%s553 + $0x180] sm:%s546]
              %580 = vst [vmem:[%s554 + $0x180] sm:%s546] %v579
              %v581 = vld [vmem:[%s553 + $0x1a0] sm:%s546]
              %582 = vst [vmem:[%s554 + $0x1a0] sm:%s546] %v581
              %v583 = vld [vmem:[%s553 + $0x1c0] sm:%s546]
              %584 = vst [vmem:[%s554 + $0x1c0] sm:%s546] %v583
              %v585 = vld [vmem:[%s553 + $0x1e0] sm:%s546]
              %586 = vst [vmem:[%s554 + $0x1e0] sm:%s546] %v585
              %v587 = vld [vmem:[%s553 + $0x200] sm:%s546]
              %588 = vst [vmem:[%s554 + $0x200] sm:%s546] %v587
              %v589 = vld [vmem:[%s553 + $0x220] sm:%s546]
              %590 = vst [vmem:[%s554 + $0x220] sm:%s546] %v589
              %v591 = vld [vmem:[%s553 + $0x240] sm:%s546]
              %592 = vst [vmem:[%s554 + $0x240] sm:%s546] %v591
              %v593 = vld [vmem:[%s553 + $0x260] sm:%s546]
              %594 = vst [vmem:[%s554 + $0x260] sm:%s546] %v593
            $region82: #{tpu_custom_call.1} parent=69 // loop_footer
              %s552 = sadd.s32 1, %s548
            $region83: #{tpu_custom_call.1} parent=69 // loop_footer_branch
              %547 = sbr.rel target = $region79
            $region84: #{tpu_custom_call.1} parent=69 // loop_exit
              _
          $region70: #{tpu_custom_call.1} parent=65 // pred_fallthru
            _
          // Predicated region
          $region85: #{tpu_custom_call.1} parent=65 // pred_check
            _
          $region86: #{tpu_custom_call.1} parent=65 // pred_check_branch
            %597 = sbr.rel (0) target = $region88
          $region87: #{tpu_custom_call.1} parent=65 // pred_region
            %598 = vsyncadd %s412, 8320
          $region88: #{tpu_custom_call.1} parent=65 // pred_fallthru
            _
        $region66: #{tpu_custom_call.1} parent=35 // pred_fallthru
          _
        %v599 = vld [vmem:[%s393] sm:$0xff]
        %v600 = vld [vmem:[%s393 + $0x8] sm:$0xff]
        %v601 = vld [vmem:[%s393 + $0x10] sm:$0xff]
        %v602 = vld [vmem:[%s393 + $0x18] sm:$0x3]
        %v603 = vld [vmem:[%s393 + $0x20] sm:$0xff]
        %v604 = vld [vmem:[%s393 + $0x28] sm:$0xff]
        %v605 = vld [vmem:[%s393 + $0x30] sm:$0xff]
        %v606 = vld [vmem:[%s393 + $0x38] sm:$0x3]
        %v607 = vld [vmem:[%s393 + $0x40] sm:$0xff]
        %v608 = vld [vmem:[%s393 + $0x48] sm:$0xff]
        %v609 = vld [vmem:[%s393 + $0x50] sm:$0xff]
        %v610 = vld [vmem:[%s393 + $0x58] sm:$0x3]
        %v611 = vld [vmem:[%s393 + $0x60] sm:$0xff]
        %v612 = vld [vmem:[%s393 + $0x68] sm:$0xff]
        %v613 = vld [vmem:[%s393 + $0x70] sm:$0xff]
        %v614 = vld [vmem:[%s393 + $0x78] sm:$0x3]
        %v615 = vld [vmem:[%s393 + $0x80] sm:$0xff]
        %v616 = vld [vmem:[%s393 + $0x88] sm:$0xff]
        %v617 = vld [vmem:[%s393 + $0x90] sm:$0xff]
        %v618 = vld [vmem:[%s393 + $0x98] sm:$0x3]
        %v619 = vld [vmem:[%s393 + $0xa0] sm:$0xff]
        %v620 = vld [vmem:[%s393 + $0xa8] sm:$0xff]
        %v621 = vld [vmem:[%s393 + $0xb0] sm:$0xff]
        %v622 = vld [vmem:[%s393 + $0xb8] sm:$0x3]
        %v623 = vld [vmem:[%s393 + $0xc0] sm:$0xff]
        %v624 = vld [vmem:[%s393 + $0xc8] sm:$0xff]
        %v625 = vld [vmem:[%s393 + $0xd0] sm:$0xff]
        %v626 = vld [vmem:[%s393 + $0xd8] sm:$0x3]
        %v627 = vld [vmem:[%s393 + $0xe0] sm:$0xff]
        %v628 = vld [vmem:[%s393 + $0xe8] sm:$0xff]
        %v629 = vld [vmem:[%s393 + $0xf0] sm:$0xff]
        %v630 = vld [vmem:[%s393 + $0xf8] sm:$0x3]
        %v631 = vld [vmem:[%s393 + $0x100] sm:$0xff]
        %v632 = vld [vmem:[%s393 + $0x108] sm:$0xff]
        %v633 = vld [vmem:[%s393 + $0x110] sm:$0xff]
        %v634 = vld [vmem:[%s393 + $0x118] sm:$0x3]
        %v635 = vld [vmem:[%s393 + $0x120] sm:$0xff]
        %v636 = vld [vmem:[%s393 + $0x128] sm:$0xff]
        %v637 = vld [vmem:[%s393 + $0x130] sm:$0xff]
        %v638 = vld [vmem:[%s393 + $0x138] sm:$0x3]
        %v639 = vld [vmem:[%s393 + $0x140] sm:$0xff]
        %v640 = vld [vmem:[%s393 + $0x148] sm:$0xff]
        %v641 = vld [vmem:[%s393 + $0x150] sm:$0xff]
        %v642 = vld [vmem:[%s393 + $0x158] sm:$0x3]
        %v643 = vld [vmem:[%s393 + $0x160] sm:$0xff]
        %v644 = vld [vmem:[%s393 + $0x168] sm:$0xff]
        %v645 = vld [vmem:[%s393 + $0x170] sm:$0xff]
        %v646 = vld [vmem:[%s393 + $0x178] sm:$0x3]
        %v647 = vld [vmem:[%s393 + $0x180] sm:$0xff]
        %v648 = vld [vmem:[%s393 + $0x188] sm:$0xff]
        %v649 = vld [vmem:[%s393 + $0x190] sm:$0xff]
        %v650 = vld [vmem:[%s393 + $0x198] sm:$0x3]
        %v651 = vld [vmem:[%s393 + $0x1a0] sm:$0xff]
        %v652 = vld [vmem:[%s393 + $0x1a8] sm:$0xff]
        %v653 = vld [vmem:[%s393 + $0x1b0] sm:$0xff]
        %v654 = vld [vmem:[%s393 + $0x1b8] sm:$0x3]
        %v655 = vld [vmem:[%s393 + $0x1c0] sm:$0xff]
        %v656 = vld [vmem:[%s393 + $0x1c8] sm:$0xff]
        %v657 = vld [vmem:[%s393 + $0x1d0] sm:$0xff]
        %v658 = vld [vmem:[%s393 + $0x1d8] sm:$0x3]
        %v659 = vld [vmem:[%s393 + $0x1e0] sm:$0xff]
        %v660 = vld [vmem:[%s393 + $0x1e8] sm:$0xff]
        %v661 = vld [vmem:[%s393 + $0x1f0] sm:$0xff]
        %v662 = vld [vmem:[%s393 + $0x1f8] sm:$0x3]
        %v663 = vld [vmem:[%s393 + $0x200] sm:$0xff]
        %v664 = vld [vmem:[%s393 + $0x208] sm:$0xff]
        %v665 = vld [vmem:[%s393 + $0x210] sm:$0xff]
        %v666 = vld [vmem:[%s393 + $0x218] sm:$0x3]
        %v667 = vld [vmem:[%s393 + $0x220] sm:$0xff]
        %v668 = vld [vmem:[%s393 + $0x228] sm:$0xff]
        %v669 = vld [vmem:[%s393 + $0x230] sm:$0xff]
        %v670 = vld [vmem:[%s393 + $0x238] sm:$0x3]
        %v671 = vld [vmem:[%s393 + $0x240] sm:$0xff]
        %v672 = vld [vmem:[%s393 + $0x248] sm:$0xff]
        %v673 = vld [vmem:[%s393 + $0x250] sm:$0xff]
        %v674 = vld [vmem:[%s393 + $0x258] sm:$0x3]
        %v675 = vld [vmem:[%s393 + $0x260] sm:$0xff]
        %v676 = vld [vmem:[%s393 + $0x268] sm:$0xff]
        %v677 = vld [vmem:[%s393 + $0x270] sm:$0xff]
        %v678 = vld [vmem:[%s393 + $0x278] sm:$0x3]
        %vm759 = vcmask 1046528
        %v760 = vrot.slane %v599, 1
        %v761 = vrot.slane %v600, 1
        %v762 = vsel %vm759, %v760, %v761
        %v763 = vrot.slane %v601, 1
        %v764 = vsel %vm759, %v761, %v763
        %v765 = vrot.slane %v602, 1
        %v766 = vsel %vm759, %v763, %v765
        %v767 = vrot.slane %v603, 1
        %v768 = vrot.slane %v604, 1
        %v769 = vsel %vm759, %v767, %v768
        %v770 = vrot.slane %v605, 1
        %v771 = vsel %vm759, %v768, %v770
        %v772 = vrot.slane %v606, 1
        %v773 = vsel %vm759, %v770, %v772
        %v774 = vrot.slane %v607, 1
        %v775 = vrot.slane %v608, 1
        %v776 = vsel %vm759, %v774, %v775
        %v777 = vrot.slane %v609, 1
        %v778 = vsel %vm759, %v775, %v777
        %v779 = vrot.slane %v610, 1
        %v780 = vsel %vm759, %v777, %v779
        %v781 = vrot.slane %v611, 1
        %v782 = vrot.slane %v612, 1
        %v783 = vsel %vm759, %v781, %v782
        %v784 = vrot.slane %v613, 1
        %v785 = vsel %vm759, %v782, %v784
        %v786 = vrot.slane %v614, 1
        %v787 = vsel %vm759, %v784, %v786
        %v788 = vrot.slane %v615, 1
        %v789 = vrot.slane %v616, 1
        %v790 = vsel %vm759, %v788, %v789
        %v791 = vrot.slane %v617, 1
        %v792 = vsel %vm759, %v789, %v791
        %v793 = vrot.slane %v618, 1
        %v794 = vsel %vm759, %v791, %v793
        %v795 = vrot.slane %v619, 1
        %v796 = vrot.slane %v620, 1
        %v797 = vsel %vm759, %v795, %v796
        %v798 = vrot.slane %v621, 1
        %v799 = vsel %vm759, %v796, %v798
        %v800 = vrot.slane %v622, 1
        %v801 = vsel %vm759, %v798, %v800
        %v802 = vrot.slane %v623, 1
        %v803 = vrot.slane %v624, 1
        %v804 = vsel %vm759, %v802, %v803
        %v805 = vrot.slane %v625, 1
        %v806 = vsel %vm759, %v803, %v805
        %v807 = vrot.slane %v626, 1
        %v808 = vsel %vm759, %v805, %v807
        %v809 = vrot.slane %v627, 1
        %v810 = vrot.slane %v628, 1
        %v811 = vsel %vm759, %v809, %v810
        %v812 = vrot.slane %v629, 1
        %v813 = vsel %vm759, %v810, %v812
        %v814 = vrot.slane %v630, 1
        %v815 = vsel %vm759, %v812, %v814
        %v816 = vrot.slane %v631, 1
        %v817 = vrot.slane %v632, 1
        %v818 = vsel %vm759, %v816, %v817
        %v819 = vrot.slane %v633, 1
        %v820 = vsel %vm759, %v817, %v819
        %v821 = vrot.slane %v634, 1
        %v822 = vsel %vm759, %v819, %v821
        %v823 = vrot.slane %v635, 1
        %v824 = vrot.slane %v636, 1
        %v825 = vsel %vm759, %v823, %v824
        %v826 = vrot.slane %v637, 1
        %v827 = vsel %vm759, %v824, %v826
        %v828 = vrot.slane %v638, 1
        %v829 = vsel %vm759, %v826, %v828
        %v830 = vrot.slane %v639, 1
        %v831 = vrot.slane %v640, 1
        %v832 = vsel %vm759, %v830, %v831
        %v833 = vrot.slane %v641, 1
        %v834 = vsel %vm759, %v831, %v833
        %v835 = vrot.slane %v642, 1
        %v836 = vsel %vm759, %v833, %v835
        %v837 = vrot.slane %v643, 1
        %v838 = vrot.slane %v644, 1
        %v839 = vsel %vm759, %v837, %v838
        %v840 = vrot.slane %v645, 1
        %v841 = vsel %vm759, %v838, %v840
        %v842 = vrot.slane %v646, 1
        %v843 = vsel %vm759, %v840, %v842
        %v844 = vrot.slane %v647, 1
        %v845 = vrot.slane %v648, 1
        %v846 = vsel %vm759, %v844, %v845
        %v847 = vrot.slane %v649, 1
        %v848 = vsel %vm759, %v845, %v847
        %v849 = vrot.slane %v650, 1
        %v850 = vsel %vm759, %v847, %v849
        %v851 = vrot.slane %v651, 1
        %v852 = vrot.slane %v652, 1
        %v853 = vsel %vm759, %v851, %v852
        %v854 = vrot.slane %v653, 1
        %v855 = vsel %vm759, %v852, %v854
        %v856 = vrot.slane %v654, 1
        %v857 = vsel %vm759, %v854, %v856
        %v858 = vrot.slane %v655, 1
        %v859 = vrot.slane %v656, 1
        %v860 = vsel %vm759, %v858, %v859
        %v861 = vrot.slane %v657, 1
        %v862 = vsel %vm759, %v859, %v861
        %v863 = vrot.slane %v658, 1
        %v864 = vsel %vm759, %v861, %v863
        %v865 = vrot.slane %v659, 1
        %v866 = vrot.slane %v660, 1
        %v867 = vsel %vm759, %v865, %v866
        %v868 = vrot.slane %v661, 1
        %v869 = vsel %vm759, %v866, %v868
        %v870 = vrot.slane %v662, 1
        %v871 = vsel %vm759, %v868, %v870
        %v872 = vrot.slane %v663, 1
        %v873 = vrot.slane %v664, 1
        %v874 = vsel %vm759, %v872, %v873
        %v875 = vrot.slane %v665, 1
        %v876 = vsel %vm759, %v873, %v875
        %v877 = vrot.slane %v666, 1
        %v878 = vsel %vm759, %v875, %v877
        %v879 = vrot.slane %v667, 1
        %v880 = vrot.slane %v668, 1
        %v881 = vsel %vm759, %v879, %v880
        %v882 = vrot.slane %v669, 1
        %v883 = vsel %vm759, %v880, %v882
        %v884 = vrot.slane %v670, 1
        %v885 = vsel %vm759, %v882, %v884
        %v886 = vrot.slane %v671, 1
        %v887 = vrot.slane %v672, 1
        %v888 = vsel %vm759, %v886, %v887
        %v889 = vrot.slane %v673, 1
        %v890 = vsel %vm759, %v887, %v889
        %v891 = vrot.slane %v674, 1
        %v892 = vsel %vm759, %v889, %v891
        %v893 = vrot.slane %v675, 1
        %v894 = vrot.slane %v676, 1
        %v895 = vsel %vm759, %v893, %v894
        %v896 = vrot.slane %v677, 1
        %v897 = vsel %vm759, %v894, %v896
        %v898 = vrot.slane %v678, 1
        %v899 = vsel %vm759, %v896, %v898
        %vm960 = vcmask 1045504
        %v961 = vrot.slane %v599, 2
        %v962 = vrot.slane %v600, 2
        %v963 = vsel %vm960, %v961, %v962
        %v964 = vrot.slane %v601, 2
        %v965 = vsel %vm960, %v962, %v964
        %v966 = vrot.slane %v602, 2
        %v967 = vsel %vm960, %v964, %v966
        %v968 = vrot.slane %v603, 2
        %v969 = vrot.slane %v604, 2
        %v970 = vsel %vm960, %v968, %v969
        %v971 = vrot.slane %v605, 2
        %v972 = vsel %vm960, %v969, %v971
        %v973 = vrot.slane %v606, 2
        %v974 = vsel %vm960, %v971, %v973
        %v975 = vrot.slane %v607, 2
        %v976 = vrot.slane %v608, 2
        %v977 = vsel %vm960, %v975, %v976
        %v978 = vrot.slane %v609, 2
        %v979 = vsel %vm960, %v976, %v978
        %v980 = vrot.slane %v610, 2
        %v981 = vsel %vm960, %v978, %v980
        %v982 = vrot.slane %v611, 2
        %v983 = vrot.slane %v612, 2
        %v984 = vsel %vm960, %v982, %v983
        %v985 = vrot.slane %v613, 2
        %v986 = vsel %vm960, %v983, %v985
        %v987 = vrot.slane %v614, 2
        %v988 = vsel %vm960, %v985, %v987
        %v989 = vrot.slane %v615, 2
        %v990 = vrot.slane %v616, 2
        %v991 = vsel %vm960, %v989, %v990
        %v992 = vrot.slane %v617, 2
        %v993 = vsel %vm960, %v990, %v992
        %v994 = vrot.slane %v618, 2
        %v995 = vsel %vm960, %v992, %v994
        %v996 = vrot.slane %v619, 2
        %v997 = vrot.slane %v620, 2
        %v998 = vsel %vm960, %v996, %v997
        %v999 = vrot.slane %v621, 2
        %v1000 = vsel %vm960, %v997, %v999
        %v1001 = vrot.slane %v622, 2
        %v1002 = vsel %vm960, %v999, %v1001
        %v1003 = vrot.slane %v623, 2
        %v1004 = vrot.slane %v624, 2
        %v1005 = vsel %vm960, %v1003, %v1004
        %v1006 = vrot.slane %v625, 2
        %v1007 = vsel %vm960, %v1004, %v1006
        %v1008 = vrot.slane %v626, 2
        %v1009 = vsel %vm960, %v1006, %v1008
        %v1010 = vrot.slane %v627, 2
        %v1011 = vrot.slane %v628, 2
        %v1012 = vsel %vm960, %v1010, %v1011
        %v1013 = vrot.slane %v629, 2
        %v1014 = vsel %vm960, %v1011, %v1013
        %v1015 = vrot.slane %v630, 2
        %v1016 = vsel %vm960, %v1013, %v1015
        %v1017 = vrot.slane %v631, 2
        %v1018 = vrot.slane %v632, 2
        %v1019 = vsel %vm960, %v1017, %v1018
        %v1020 = vrot.slane %v633, 2
        %v1021 = vsel %vm960, %v1018, %v1020
        %v1022 = vrot.slane %v634, 2
        %v1023 = vsel %vm960, %v1020, %v1022
        %v1024 = vrot.slane %v635, 2
        %v1025 = vrot.slane %v636, 2
        %v1026 = vsel %vm960, %v1024, %v1025
        %v1027 = vrot.slane %v637, 2
        %v1028 = vsel %vm960, %v1025, %v1027
        %v1029 = vrot.slane %v638, 2
        %v1030 = vsel %vm960, %v1027, %v1029
        %v1031 = vrot.slane %v639, 2
        %v1032 = vrot.slane %v640, 2
        %v1033 = vsel %vm960, %v1031, %v1032
        %v1034 = vrot.slane %v641, 2
        %v1035 = vsel %vm960, %v1032, %v1034
        %v1036 = vrot.slane %v642, 2
        %v1037 = vsel %vm960, %v1034, %v1036
        %v1038 = vrot.slane %v643, 2
        %v1039 = vrot.slane %v644, 2
        %v1040 = vsel %vm960, %v1038, %v1039
        %v1041 = vrot.slane %v645, 2
        %v1042 = vsel %vm960, %v1039, %v1041
        %v1043 = vrot.slane %v646, 2
        %v1044 = vsel %vm960, %v1041, %v1043
        %v1045 = vrot.slane %v647, 2
        %v1046 = vrot.slane %v648, 2
        %v1047 = vsel %vm960, %v1045, %v1046
        %v1048 = vrot.slane %v649, 2
        %v1049 = vsel %vm960, %v1046, %v1048
        %v1050 = vrot.slane %v650, 2
        %v1051 = vsel %vm960, %v1048, %v1050
        %v1052 = vrot.slane %v651, 2
        %v1053 = vrot.slane %v652, 2
        %v1054 = vsel %vm960, %v1052, %v1053
        %v1055 = vrot.slane %v653, 2
        %v1056 = vsel %vm960, %v1053, %v1055
        %v1057 = vrot.slane %v654, 2
        %v1058 = vsel %vm960, %v1055, %v1057
        %v1059 = vrot.slane %v655, 2
        %v1060 = vrot.slane %v656, 2
        %v1061 = vsel %vm960, %v1059, %v1060
        %v1062 = vrot.slane %v657, 2
        %v1063 = vsel %vm960, %v1060, %v1062
        %v1064 = vrot.slane %v658, 2
        %v1065 = vsel %vm960, %v1062, %v1064
        %v1066 = vrot.slane %v659, 2
        %v1067 = vrot.slane %v660, 2
        %v1068 = vsel %vm960, %v1066, %v1067
        %v1069 = vrot.slane %v661, 2
        %v1070 = vsel %vm960, %v1067, %v1069
        %v1071 = vrot.slane %v662, 2
        %v1072 = vsel %vm960, %v1069, %v1071
        %v1073 = vrot.slane %v663, 2
        %v1074 = vrot.slane %v664, 2
        %v1075 = vsel %vm960, %v1073, %v1074
        %v1076 = vrot.slane %v665, 2
        %v1077 = vsel %vm960, %v1074, %v1076
        %v1078 = vrot.slane %v666, 2
        %v1079 = vsel %vm960, %v1076, %v1078
        %v1080 = vrot.slane %v667, 2
        %v1081 = vrot.slane %v668, 2
        %v1082 = vsel %vm960, %v1080, %v1081
        %v1083 = vrot.slane %v669, 2
        %v1084 = vsel %vm960, %v1081, %v1083
        %v1085 = vrot.slane %v670, 2
        %v1086 = vsel %vm960, %v1083, %v1085
        %v1087 = vrot.slane %v671, 2
        %v1088 = vrot.slane %v672, 2
        %v1089 = vsel %vm960, %v1087, %v1088
        %v1090 = vrot.slane %v673, 2
        %v1091 = vsel %vm960, %v1088, %v1090
        %v1092 = vrot.slane %v674, 2
        %v1093 = vsel %vm960, %v1090, %v1092
        %v1094 = vrot.slane %v675, 2
        %v1095 = vrot.slane %v676, 2
        %v1096 = vsel %vm960, %v1094, %v1095
        %v1097 = vrot.slane %v677, 2
        %v1098 = vsel %vm960, %v1095, %v1097
        %v1099 = vrot.slane %v678, 2
        %v1100 = vsel %vm960, %v1097, %v1099
        %v1161 = vld [vmem:[%s1] sm:$0xff]
        %v1162 = vld [vmem:[%s1 + $0x8] sm:$0xff]
        %v1163 = vld [vmem:[%s1 + $0x10] sm:$0xff]
        %v1164 = vld [vmem:[%s1 + $0x18] sm:$0xff]
        %v1165 = vld [vmem:[%s1 + $0x20] sm:$0xff]
        %v1166 = vld [vmem:[%s1 + $0x28] sm:$0xff]
        %v1167 = vld [vmem:[%s1 + $0x30] sm:$0xff]
        %v1168 = vld [vmem:[%s1 + $0x38] sm:$0xff]
        %v1169 = vld [vmem:[%s1 + $0x40] sm:$0xff]
        %v1170 = vld [vmem:[%s1 + $0x48] sm:$0xff]
        %v1171 = vld [vmem:[%s1 + $0x50] sm:$0xff]
        %v1172 = vld [vmem:[%s1 + $0x58] sm:$0xff]
        %v1173 = vld [vmem:[%s1 + $0x60] sm:$0xff]
        %v1174 = vld [vmem:[%s1 + $0x68] sm:$0xff]
        %v1175 = vld [vmem:[%s1 + $0x70] sm:$0xff]
        %v1176 = vld [vmem:[%s1 + $0x78] sm:$0xff]
        %v1177 = vld [vmem:[%s1 + $0x80] sm:$0xff]
        %v1178 = vld [vmem:[%s1 + $0x88] sm:$0xff]
        %v1179 = vld [vmem:[%s1 + $0x90] sm:$0xff]
        %v1180 = vld [vmem:[%s1 + $0x98] sm:$0xff]
        %v1181 = vld [vmem:[%s1 + $0xa0] sm:$0xff]
        %v1182 = vld [vmem:[%s1 + $0xa8] sm:$0xff]
        %v1183 = vld [vmem:[%s1 + $0xb0] sm:$0xff]
        %v1184 = vld [vmem:[%s1 + $0xb8] sm:$0xff]
        %v1185 = vld [vmem:[%s1 + $0xc0] sm:$0xff]
        %v1186 = vld [vmem:[%s1 + $0xc8] sm:$0xff]
        %v1187 = vld [vmem:[%s1 + $0xd0] sm:$0xff]
        %v1188 = vld [vmem:[%s1 + $0xd8] sm:$0xff]
        %v1189 = vld [vmem:[%s1 + $0xe0] sm:$0xff]
        %v1190 = vld [vmem:[%s1 + $0xe8] sm:$0xff]
        %v1191 = vld [vmem:[%s1 + $0xf0] sm:$0xff]
        %v1192 = vld [vmem:[%s1 + $0xf8] sm:$0xff]
        %v1193 = vld [vmem:[%s1 + $0x100] sm:$0xff]
        %v1194 = vld [vmem:[%s1 + $0x108] sm:$0xff]
        %v1195 = vld [vmem:[%s1 + $0x110] sm:$0xff]
        %v1196 = vld [vmem:[%s1 + $0x118] sm:$0xff]
        %v1197 = vld [vmem:[%s1 + $0x120] sm:$0xff]
        %v1198 = vld [vmem:[%s1 + $0x128] sm:$0xff]
        %v1199 = vld [vmem:[%s1 + $0x130] sm:$0xff]
        %v1200 = vld [vmem:[%s1 + $0x138] sm:$0xff]
        %v1201 = vld [vmem:[%s1 + $0x140] sm:$0xff]
        %v1202 = vld [vmem:[%s1 + $0x148] sm:$0xff]
        %v1203 = vld [vmem:[%s1 + $0x150] sm:$0xff]
        %v1204 = vld [vmem:[%s1 + $0x158] sm:$0xff]
        %v1205 = vld [vmem:[%s1 + $0x160] sm:$0xff]
        %v1206 = vld [vmem:[%s1 + $0x168] sm:$0xff]
        %v1207 = vld [vmem:[%s1 + $0x170] sm:$0xff]
        %v1208 = vld [vmem:[%s1 + $0x178] sm:$0xff]
        %s1209 = scalar_lea.vmem %s1, 384
        %v1210 = vld [vmem:[%s1209] sm:$0xff]
        %v1211 = vld [vmem:[%s1209 + $0x8] sm:$0xff]
        %v1212 = vld [vmem:[%s1209 + $0x10] sm:$0xff]
        %v1213 = vld [vmem:[%s1209 + $0x18] sm:$0xff]
        %v1214 = vld [vmem:[%s1209 + $0x20] sm:$0xff]
        %v1215 = vld [vmem:[%s1209 + $0x28] sm:$0xff]
        %v1216 = vld [vmem:[%s1209 + $0x30] sm:$0xff]
        %v1217 = vld [vmem:[%s1209 + $0x38] sm:$0xff]
        %v1218 = vld [vmem:[%s1209 + $0x40] sm:$0xff]
        %v1219 = vld [vmem:[%s1209 + $0x48] sm:$0xff]
        %v1220 = vld [vmem:[%s1209 + $0x50] sm:$0xff]
        %v1221 = vld [vmem:[%s1209 + $0x58] sm:$0xff]
        %v1222 = vld [vmem:[%s1209 + $0x60] sm:$0xff]
        %v1223 = vld [vmem:[%s1209 + $0x68] sm:$0xff]
        %v1224 = vld [vmem:[%s1209 + $0x70] sm:$0xff]
        %v1225 = vld [vmem:[%s1209 + $0x78] sm:$0xff]
        %v1226 = vld [vmem:[%s1209 + $0x80] sm:$0xff]
        %v1227 = vld [vmem:[%s1209 + $0x88] sm:$0xff]
        %v1228 = vld [vmem:[%s1209 + $0x90] sm:$0xff]
        %v1229 = vld [vmem:[%s1209 + $0x98] sm:$0xff]
        %v1230 = vld [vmem:[%s1209 + $0xa0] sm:$0xff]
        %v1231 = vld [vmem:[%s1209 + $0xa8] sm:$0xff]
        %v1232 = vld [vmem:[%s1209 + $0xb0] sm:$0xff]
        %v1233 = vld [vmem:[%s1209 + $0xb8] sm:$0xff]
        %v1234 = vld [vmem:[%s1209 + $0xc0] sm:$0xff]
        %v1235 = vld [vmem:[%s1209 + $0xc8] sm:$0xff]
        %v1236 = vld [vmem:[%s1209 + $0xd0] sm:$0xff]
        %v1237 = vld [vmem:[%s1209 + $0xd8] sm:$0xff]
        %v1238 = vld [vmem:[%s1209 + $0xe0] sm:$0xff]
        %v1239 = vld [vmem:[%s1209 + $0xe8] sm:$0xff]
        %v1240 = vld [vmem:[%s1209 + $0xf0] sm:$0xff]
        %v1241 = vld [vmem:[%s1209 + $0xf8] sm:$0xff]
        %v1242 = vld [vmem:[%s1209 + $0x100] sm:$0xff]
        %v1243 = vld [vmem:[%s1209 + $0x108] sm:$0xff]
        %v1244 = vld [vmem:[%s1209 + $0x110] sm:$0xff]
        %v1245 = vld [vmem:[%s1209 + $0x118] sm:$0xff]
        %v1246 = vld [vmem:[%s1209 + $0x120] sm:$0xff]
        %v1247 = vld [vmem:[%s1209 + $0x128] sm:$0xff]
        %v1248 = vld [vmem:[%s1209 + $0x130] sm:$0xff]
        %v1249 = vld [vmem:[%s1209 + $0x138] sm:$0xff]
        %v1250 = vld [vmem:[%s1209 + $0x140] sm:$0xff]
        %v1251 = vld [vmem:[%s1209 + $0x148] sm:$0xff]
        %v1252 = vld [vmem:[%s1209 + $0x150] sm:$0xff]
        %v1253 = vld [vmem:[%s1209 + $0x158] sm:$0xff]
        %v1254 = vld [vmem:[%s1209 + $0x160] sm:$0xff]
        %v1255 = vld [vmem:[%s1209 + $0x168] sm:$0xff]
        %v1256 = vld [vmem:[%s1209 + $0x170] sm:$0xff]
        %v1257 = vld [vmem:[%s1209 + $0x178] sm:$0xff]
        %1258 = vmatpush.msra.mxu0 %v1225
        %1259 = vmatpush.msra.mxu0 %v1224
        %1260 = vmatpush.msra.mxu0 %v1223
        %1261 = vmatpush.msra.mxu0 %v1222
        %1262 = vmatpush.msra.mxu0 %v1221
        %1263 = vmatpush.msra.mxu0 %v1220
        %1264 = vmatpush.msra.mxu0 %v1219
        %1265 = vmatpush.msra.mxu0 %v1218
        %1266 = vmatpush.msra.mxu0 %v1217
        %1267 = vmatpush.msra.mxu0 %v1216
        %1268 = vmatpush.msra.mxu0 %v1215
        %1269 = vmatpush.msra.mxu0 %v1214
        %1270 = vmatpush.msra.mxu0 %v1213
        %1271 = vmatpush.msra.mxu0 %v1212
        %1272 = vmatpush.msra.mxu0 %v1211
        %1273 = vmatpush.msra.mxu0 %v1210
        %1274 = vmatmul.f32.gmra.mxu0 %v603
        %v1275 = vpop.f32.mrf.mxu0
        %v1276 = vadd.f32 0.0, %v1275
        %1277 = vmatmul.f32.gmra.mxu0 %v604
        %v1278 = vpop.f32.mrf.mxu0
        %v1279 = vadd.f32 0.0, %v1278
        %1280 = vmatmul.f32.gmra.mxu0 %v605
        %v1281 = vpop.f32.mrf.mxu0
        %v1282 = vadd.f32 0.0, %v1281
        %1283 = vmatmul.f32.gmra.mxu0 %v607
        %v1284 = vpop.f32.mrf.mxu0
        %v1285 = vadd.f32 0.0, %v1284
        %1286 = vmatmul.f32.gmra.mxu0 %v608
        %v1287 = vpop.f32.mrf.mxu0
        %v1288 = vadd.f32 0.0, %v1287
        %1289 = vmatmul.f32.gmra.mxu0 %v609
        %v1290 = vpop.f32.mrf.mxu0
        %v1291 = vadd.f32 0.0, %v1290
        %1292 = vmatmul.f32.gmra.mxu0 %v611
        %v1293 = vpop.f32.mrf.mxu0
        %v1294 = vadd.f32 0.0, %v1293
        %1295 = vmatmul.f32.gmra.mxu0 %v612
        %v1296 = vpop.f32.mrf.mxu0
        %v1297 = vadd.f32 0.0, %v1296
        %1298 = vmatmul.f32.gmra.mxu0 %v613
        %v1299 = vpop.f32.mrf.mxu0
        %v1300 = vadd.f32 0.0, %v1299
        %1301 = vmatmul.f32.gmra.mxu0 %v615
        %v1302 = vpop.f32.mrf.mxu0
        %v1303 = vadd.f32 0.0, %v1302
        %1304 = vmatmul.f32.gmra.mxu0 %v616
        %v1305 = vpop.f32.mrf.mxu0
        %v1306 = vadd.f32 0.0, %v1305
        %1307 = vmatmul.f32.gmra.mxu0 %v617
        %v1308 = vpop.f32.mrf.mxu0
        %v1309 = vadd.f32 0.0, %v1308
        %1310 = vmatmul.f32.gmra.mxu0 %v619
        %v1311 = vpop.f32.mrf.mxu0
        %v1312 = vadd.f32 0.0, %v1311
        %1313 = vmatmul.f32.gmra.mxu0 %v620
        %v1314 = vpop.f32.mrf.mxu0
        %v1315 = vadd.f32 0.0, %v1314
        %1316 = vmatmul.f32.gmra.mxu0 %v621
        %v1317 = vpop.f32.mrf.mxu0
        %v1318 = vadd.f32 0.0, %v1317
        %1319 = vmatmul.f32.gmra.mxu0 %v623
        %v1320 = vpop.f32.mrf.mxu0
        %v1321 = vadd.f32 0.0, %v1320
        %1322 = vmatmul.f32.gmra.mxu0 %v624
        %v1323 = vpop.f32.mrf.mxu0
        %v1324 = vadd.f32 0.0, %v1323
        %1325 = vmatmul.f32.gmra.mxu0 %v625
        %v1326 = vpop.f32.mrf.mxu0
        %v1327 = vadd.f32 0.0, %v1326
        %1328 = vmatmul.f32.gmra.mxu0 %v627
        %v1329 = vpop.f32.mrf.mxu0
        %v1330 = vadd.f32 0.0, %v1329
        %1331 = vmatmul.f32.gmra.mxu0 %v628
        %v1332 = vpop.f32.mrf.mxu0
        %v1333 = vadd.f32 0.0, %v1332
        %1334 = vmatmul.f32.gmra.mxu0 %v629
        %v1335 = vpop.f32.mrf.mxu0
        %v1336 = vadd.f32 0.0, %v1335
        %1337 = vmatmul.f32.gmra.mxu0 %v631
        %v1338 = vpop.f32.mrf.mxu0
        %v1339 = vadd.f32 0.0, %v1338
        %1340 = vmatmul.f32.gmra.mxu0 %v632
        %v1341 = vpop.f32.mrf.mxu0
        %v1342 = vadd.f32 0.0, %v1341
        %1343 = vmatmul.f32.gmra.mxu0 %v633
        %v1344 = vpop.f32.mrf.mxu0
        %v1345 = vadd.f32 0.0, %v1344
        %1346 = vmatmul.f32.gmra.mxu0 %v635
        %v1347 = vpop.f32.mrf.mxu0
        %v1348 = vadd.f32 0.0, %v1347
        %1349 = vmatmul.f32.gmra.mxu0 %v636
        %v1350 = vpop.f32.mrf.mxu0
        %v1351 = vadd.f32 0.0, %v1350
        %1352 = vmatmul.f32.gmra.mxu0 %v637
        %v1353 = vpop.f32.mrf.mxu0
        %v1354 = vadd.f32 0.0, %v1353
        %1355 = vmatmul.f32.gmra.mxu0 %v639
        %v1356 = vpop.f32.mrf.mxu0
        %v1357 = vadd.f32 0.0, %v1356
        %1358 = vmatmul.f32.gmra.mxu0 %v640
        %v1359 = vpop.f32.mrf.mxu0
        %v1360 = vadd.f32 0.0, %v1359
        %1361 = vmatmul.f32.gmra.mxu0 %v641
        %v1362 = vpop.f32.mrf.mxu0
        %v1363 = vadd.f32 0.0, %v1362
        %1364 = vmatmul.f32.gmra.mxu0 %v643
        %v1365 = vpop.f32.mrf.mxu0
        %v1366 = vadd.f32 0.0, %v1365
        %1367 = vmatmul.f32.gmra.mxu0 %v644
        %v1368 = vpop.f32.mrf.mxu0
        %v1369 = vadd.f32 0.0, %v1368
        %1370 = vmatmul.f32.gmra.mxu0 %v645
        %v1371 = vpop.f32.mrf.mxu0
        %v1372 = vadd.f32 0.0, %v1371
        %1373 = vmatmul.f32.gmra.mxu0 %v647
        %v1374 = vpop.f32.mrf.mxu0
        %v1375 = vadd.f32 0.0, %v1374
        %1376 = vmatmul.f32.gmra.mxu0 %v648
        %v1377 = vpop.f32.mrf.mxu0
        %v1378 = vadd.f32 0.0, %v1377
        %1379 = vmatmul.f32.gmra.mxu0 %v649
        %v1380 = vpop.f32.mrf.mxu0
        %v1381 = vadd.f32 0.0, %v1380
        %1382 = vmatmul.f32.gmra.mxu0 %v651
        %v1383 = vpop.f32.mrf.mxu0
        %v1384 = vadd.f32 0.0, %v1383
        %1385 = vmatmul.f32.gmra.mxu0 %v652
        %v1386 = vpop.f32.mrf.mxu0
        %v1387 = vadd.f32 0.0, %v1386
        %1388 = vmatmul.f32.gmra.mxu0 %v653
        %v1389 = vpop.f32.mrf.mxu0
        %v1390 = vadd.f32 0.0, %v1389
        %1391 = vmatmul.f32.gmra.mxu0 %v655
        %v1392 = vpop.f32.mrf.mxu0
        %v1393 = vadd.f32 0.0, %v1392
        %1394 = vmatmul.f32.gmra.mxu0 %v656
        %v1395 = vpop.f32.mrf.mxu0
        %v1396 = vadd.f32 0.0, %v1395
        %1397 = vmatmul.f32.gmra.mxu0 %v657
        %v1398 = vpop.f32.mrf.mxu0
        %v1399 = vadd.f32 0.0, %v1398
        %1400 = vmatmul.f32.gmra.mxu0 %v659
        %v1401 = vpop.f32.mrf.mxu0
        %v1402 = vadd.f32 0.0, %v1401
        %1403 = vmatmul.f32.gmra.mxu0 %v660
        %v1404 = vpop.f32.mrf.mxu0
        %v1405 = vadd.f32 0.0, %v1404
        %1406 = vmatmul.f32.gmra.mxu0 %v661
        %v1407 = vpop.f32.mrf.mxu0
        %v1408 = vadd.f32 0.0, %v1407
        %1409 = vmatmul.f32.gmra.mxu0 %v663
        %v1410 = vpop.f32.mrf.mxu0
        %v1411 = vadd.f32 0.0, %v1410
        %1412 = vmatmul.f32.gmra.mxu0 %v664
        %v1413 = vpop.f32.mrf.mxu0
        %v1414 = vadd.f32 0.0, %v1413
        %1415 = vmatmul.f32.gmra.mxu0 %v665
        %v1416 = vpop.f32.mrf.mxu0
        %v1417 = vadd.f32 0.0, %v1416
        %1418 = vmatmul.f32.gmra.mxu0 %v667
        %v1419 = vpop.f32.mrf.mxu0
        %v1420 = vadd.f32 0.0, %v1419
        %1421 = vmatmul.f32.gmra.mxu0 %v668
        %v1422 = vpop.f32.mrf.mxu0
        %v1423 = vadd.f32 0.0, %v1422
        %1424 = vmatmul.f32.gmra.mxu0 %v669
        %v1425 = vpop.f32.mrf.mxu0
        %v1426 = vadd.f32 0.0, %v1425
        %1427 = vmatmul.f32.gmra.mxu0 %v671
        %v1428 = vpop.f32.mrf.mxu0
        %v1429 = vadd.f32 0.0, %v1428
        %1430 = vmatmul.f32.gmra.mxu0 %v672
        %v1431 = vpop.f32.mrf.mxu0
        %v1432 = vadd.f32 0.0, %v1431
        %1433 = vmatmul.f32.gmra.mxu0 %v673
        %v1434 = vpop.f32.mrf.mxu0
        %v1435 = vadd.f32 0.0, %v1434
        %1436 = vdwg.mxu0
        %1437 = vmatpush.msra.mxu0 %v1241
        %1438 = vmatpush.msra.mxu0 %v1240
        %1439 = vmatpush.msra.mxu0 %v1239
        %1440 = vmatpush.msra.mxu0 %v1238
        %1441 = vmatpush.msra.mxu0 %v1237
        %1442 = vmatpush.msra.mxu0 %v1236
        %1443 = vmatpush.msra.mxu0 %v1235
        %1444 = vmatpush.msra.mxu0 %v1234
        %1445 = vmatpush.msra.mxu0 %v1233
        %1446 = vmatpush.msra.mxu0 %v1232
        %1447 = vmatpush.msra.mxu0 %v1231
        %1448 = vmatpush.msra.mxu0 %v1230
        %1449 = vmatpush.msra.mxu0 %v1229
        %1450 = vmatpush.msra.mxu0 %v1228
        %1451 = vmatpush.msra.mxu0 %v1227
        %1452 = vmatpush.msra.mxu0 %v1226
        %1453 = vmatmul.f32.gmra.mxu0 %v769
        %v1454 = vpop.f32.mrf.mxu0
        %v1455 = vadd.f32 %v1276, %v1454
        %1456 = vmatmul.f32.gmra.mxu0 %v771
        %v1457 = vpop.f32.mrf.mxu0
        %v1458 = vadd.f32 %v1279, %v1457
        %1459 = vmatmul.f32.gmra.mxu0 %v773
        %v1460 = vpop.f32.mrf.mxu0
        %v1461 = vadd.f32 %v1282, %v1460
        %1462 = vmatmul.f32.gmra.mxu0 %v776
        %v1463 = vpop.f32.mrf.mxu0
        %v1464 = vadd.f32 %v1285, %v1463
        %1465 = vmatmul.f32.gmra.mxu0 %v778
        %v1466 = vpop.f32.mrf.mxu0
        %v1467 = vadd.f32 %v1288, %v1466
        %1468 = vmatmul.f32.gmra.mxu0 %v780
        %v1469 = vpop.f32.mrf.mxu0
        %v1470 = vadd.f32 %v1291, %v1469
        %1471 = vmatmul.f32.gmra.mxu0 %v783
        %v1472 = vpop.f32.mrf.mxu0
        %v1473 = vadd.f32 %v1294, %v1472
        %1474 = vmatmul.f32.gmra.mxu0 %v785
        %v1475 = vpop.f32.mrf.mxu0
        %v1476 = vadd.f32 %v1297, %v1475
        %1477 = vmatmul.f32.gmra.mxu0 %v787
        %v1478 = vpop.f32.mrf.mxu0
        %v1479 = vadd.f32 %v1300, %v1478
        %1480 = vmatmul.f32.gmra.mxu0 %v790
        %v1481 = vpop.f32.mrf.mxu0
        %v1482 = vadd.f32 %v1303, %v1481
        %1483 = vmatmul.f32.gmra.mxu0 %v792
        %v1484 = vpop.f32.mrf.mxu0
        %v1485 = vadd.f32 %v1306, %v1484
        %1486 = vmatmul.f32.gmra.mxu0 %v794
        %v1487 = vpop.f32.mrf.mxu0
        %v1488 = vadd.f32 %v1309, %v1487
        %1489 = vmatmul.f32.gmra.mxu0 %v797
        %v1490 = vpop.f32.mrf.mxu0
        %v1491 = vadd.f32 %v1312, %v1490
        %1492 = vmatmul.f32.gmra.mxu0 %v799
        %v1493 = vpop.f32.mrf.mxu0
        %v1494 = vadd.f32 %v1315, %v1493
        %1495 = vmatmul.f32.gmra.mxu0 %v801
        %v1496 = vpop.f32.mrf.mxu0
        %v1497 = vadd.f32 %v1318, %v1496
        %1498 = vmatmul.f32.gmra.mxu0 %v804
        %v1499 = vpop.f32.mrf.mxu0
        %v1500 = vadd.f32 %v1321, %v1499
        %1501 = vmatmul.f32.gmra.mxu0 %v806
        %v1502 = vpop.f32.mrf.mxu0
        %v1503 = vadd.f32 %v1324, %v1502
        %1504 = vmatmul.f32.gmra.mxu0 %v808
        %v1505 = vpop.f32.mrf.mxu0
        %v1506 = vadd.f32 %v1327, %v1505
        %1507 = vmatmul.f32.gmra.mxu0 %v811
        %v1508 = vpop.f32.mrf.mxu0
        %v1509 = vadd.f32 %v1330, %v1508
        %1510 = vmatmul.f32.gmra.mxu0 %v813
        %v1511 = vpop.f32.mrf.mxu0
        %v1512 = vadd.f32 %v1333, %v1511
        %1513 = vmatmul.f32.gmra.mxu0 %v815
        %v1514 = vpop.f32.mrf.mxu0
        %v1515 = vadd.f32 %v1336, %v1514
        %1516 = vmatmul.f32.gmra.mxu0 %v818
        %v1517 = vpop.f32.mrf.mxu0
        %v1518 = vadd.f32 %v1339, %v1517
        %1519 = vmatmul.f32.gmra.mxu0 %v820
        %v1520 = vpop.f32.mrf.mxu0
        %v1521 = vadd.f32 %v1342, %v1520
        %1522 = vmatmul.f32.gmra.mxu0 %v822
        %v1523 = vpop.f32.mrf.mxu0
        %v1524 = vadd.f32 %v1345, %v1523
        %1525 = vmatmul.f32.gmra.mxu0 %v825
        %v1526 = vpop.f32.mrf.mxu0
        %v1527 = vadd.f32 %v1348, %v1526
        %1528 = vmatmul.f32.gmra.mxu0 %v827
        %v1529 = vpop.f32.mrf.mxu0
        %v1530 = vadd.f32 %v1351, %v1529
        %1531 = vmatmul.f32.gmra.mxu0 %v829
        %v1532 = vpop.f32.mrf.mxu0
        %v1533 = vadd.f32 %v1354, %v1532
        %1534 = vmatmul.f32.gmra.mxu0 %v832
        %v1535 = vpop.f32.mrf.mxu0
        %v1536 = vadd.f32 %v1357, %v1535
        %1537 = vmatmul.f32.gmra.mxu0 %v834
        %v1538 = vpop.f32.mrf.mxu0
        %v1539 = vadd.f32 %v1360, %v1538
        %1540 = vmatmul.f32.gmra.mxu0 %v836
        %v1541 = vpop.f32.mrf.mxu0
        %v1542 = vadd.f32 %v1363, %v1541
        %1543 = vmatmul.f32.gmra.mxu0 %v839
        %v1544 = vpop.f32.mrf.mxu0
        %v1545 = vadd.f32 %v1366, %v1544
        %1546 = vmatmul.f32.gmra.mxu0 %v841
        %v1547 = vpop.f32.mrf.mxu0
        %v1548 = vadd.f32 %v1369, %v1547
        %1549 = vmatmul.f32.gmra.mxu0 %v843
        %v1550 = vpop.f32.mrf.mxu0
        %v1551 = vadd.f32 %v1372, %v1550
        %1552 = vmatmul.f32.gmra.mxu0 %v846
        %v1553 = vpop.f32.mrf.mxu0
        %v1554 = vadd.f32 %v1375, %v1553
        %1555 = vmatmul.f32.gmra.mxu0 %v848
        %v1556 = vpop.f32.mrf.mxu0
        %v1557 = vadd.f32 %v1378, %v1556
        %1558 = vmatmul.f32.gmra.mxu0 %v850
        %v1559 = vpop.f32.mrf.mxu0
        %v1560 = vadd.f32 %v1381, %v1559
        %1561 = vmatmul.f32.gmra.mxu0 %v853
        %v1562 = vpop.f32.mrf.mxu0
        %v1563 = vadd.f32 %v1384, %v1562
        %1564 = vmatmul.f32.gmra.mxu0 %v855
        %v1565 = vpop.f32.mrf.mxu0
        %v1566 = vadd.f32 %v1387, %v1565
        %1567 = vmatmul.f32.gmra.mxu0 %v857
        %v1568 = vpop.f32.mrf.mxu0
        %v1569 = vadd.f32 %v1390, %v1568
        %1570 = vmatmul.f32.gmra.mxu0 %v860
        %v1571 = vpop.f32.mrf.mxu0
        %v1572 = vadd.f32 %v1393, %v1571
        %1573 = vmatmul.f32.gmra.mxu0 %v862
        %v1574 = vpop.f32.mrf.mxu0
        %v1575 = vadd.f32 %v1396, %v1574
        %1576 = vmatmul.f32.gmra.mxu0 %v864
        %v1577 = vpop.f32.mrf.mxu0
        %v1578 = vadd.f32 %v1399, %v1577
        %1579 = vmatmul.f32.gmra.mxu0 %v867
        %v1580 = vpop.f32.mrf.mxu0
        %v1581 = vadd.f32 %v1402, %v1580
        %1582 = vmatmul.f32.gmra.mxu0 %v869
        %v1583 = vpop.f32.mrf.mxu0
        %v1584 = vadd.f32 %v1405, %v1583
        %1585 = vmatmul.f32.gmra.mxu0 %v871
        %v1586 = vpop.f32.mrf.mxu0
        %v1587 = vadd.f32 %v1408, %v1586
        %1588 = vmatmul.f32.gmra.mxu0 %v874
        %v1589 = vpop.f32.mrf.mxu0
        %v1590 = vadd.f32 %v1411, %v1589
        %1591 = vmatmul.f32.gmra.mxu0 %v876
        %v1592 = vpop.f32.mrf.mxu0
        %v1593 = vadd.f32 %v1414, %v1592
        %1594 = vmatmul.f32.gmra.mxu0 %v878
        %v1595 = vpop.f32.mrf.mxu0
        %v1596 = vadd.f32 %v1417, %v1595
        %1597 = vmatmul.f32.gmra.mxu0 %v881
        %v1598 = vpop.f32.mrf.mxu0
        %v1599 = vadd.f32 %v1420, %v1598
        %1600 = vmatmul.f32.gmra.mxu0 %v883
        %v1601 = vpop.f32.mrf.mxu0
        %v1602 = vadd.f32 %v1423, %v1601
        %1603 = vmatmul.f32.gmra.mxu0 %v885
        %v1604 = vpop.f32.mrf.mxu0
        %v1605 = vadd.f32 %v1426, %v1604
        %1606 = vmatmul.f32.gmra.mxu0 %v888
        %v1607 = vpop.f32.mrf.mxu0
        %v1608 = vadd.f32 %v1429, %v1607
        %1609 = vmatmul.f32.gmra.mxu0 %v890
        %v1610 = vpop.f32.mrf.mxu0
        %v1611 = vadd.f32 %v1432, %v1610
        %1612 = vmatmul.f32.gmra.mxu0 %v892
        %v1613 = vpop.f32.mrf.mxu0
        %v1614 = vadd.f32 %v1435, %v1613
        %1615 = vdwg.mxu0
        %1616 = vmatpush.msra.mxu0 %v1257
        %1617 = vmatpush.msra.mxu0 %v1256
        %1618 = vmatpush.msra.mxu0 %v1255
        %1619 = vmatpush.msra.mxu0 %v1254
        %1620 = vmatpush.msra.mxu0 %v1253
        %1621 = vmatpush.msra.mxu0 %v1252
        %1622 = vmatpush.msra.mxu0 %v1251
        %1623 = vmatpush.msra.mxu0 %v1250
        %1624 = vmatpush.msra.mxu0 %v1249
        %1625 = vmatpush.msra.mxu0 %v1248
        %1626 = vmatpush.msra.mxu0 %v1247
        %1627 = vmatpush.msra.mxu0 %v1246
        %1628 = vmatpush.msra.mxu0 %v1245
        %1629 = vmatpush.msra.mxu0 %v1244
        %1630 = vmatpush.msra.mxu0 %v1243
        %1631 = vmatpush.msra.mxu0 %v1242
        %1632 = vmatmul.f32.gmra.mxu0 %v970
        %v1633 = vpop.f32.mrf.mxu0
        %v1634 = vadd.f32 %v1455, %v1633
        %1635 = vmatmul.f32.gmra.mxu0 %v972
        %v1636 = vpop.f32.mrf.mxu0
        %v1637 = vadd.f32 %v1458, %v1636
        %1638 = vmatmul.f32.gmra.mxu0 %v974
        %v1639 = vpop.f32.mrf.mxu0
        %v1640 = vadd.f32 %v1461, %v1639
        %1641 = vmatmul.f32.gmra.mxu0 %v977
        %v1642 = vpop.f32.mrf.mxu0
        %v1643 = vadd.f32 %v1464, %v1642
        %1644 = vmatmul.f32.gmra.mxu0 %v979
        %v1645 = vpop.f32.mrf.mxu0
        %v1646 = vadd.f32 %v1467, %v1645
        %1647 = vmatmul.f32.gmra.mxu0 %v981
        %v1648 = vpop.f32.mrf.mxu0
        %v1649 = vadd.f32 %v1470, %v1648
        %1650 = vmatmul.f32.gmra.mxu0 %v984
        %v1651 = vpop.f32.mrf.mxu0
        %v1652 = vadd.f32 %v1473, %v1651
        %1653 = vmatmul.f32.gmra.mxu0 %v986
        %v1654 = vpop.f32.mrf.mxu0
        %v1655 = vadd.f32 %v1476, %v1654
        %1656 = vmatmul.f32.gmra.mxu0 %v988
        %v1657 = vpop.f32.mrf.mxu0
        %v1658 = vadd.f32 %v1479, %v1657
        %1659 = vmatmul.f32.gmra.mxu0 %v991
        %v1660 = vpop.f32.mrf.mxu0
        %v1661 = vadd.f32 %v1482, %v1660
        %1662 = vmatmul.f32.gmra.mxu0 %v993
        %v1663 = vpop.f32.mrf.mxu0
        %v1664 = vadd.f32 %v1485, %v1663
        %1665 = vmatmul.f32.gmra.mxu0 %v995
        %v1666 = vpop.f32.mrf.mxu0
        %v1667 = vadd.f32 %v1488, %v1666
        %1668 = vmatmul.f32.gmra.mxu0 %v998
        %v1669 = vpop.f32.mrf.mxu0
        %v1670 = vadd.f32 %v1491, %v1669
        %1671 = vmatmul.f32.gmra.mxu0 %v1000
        %v1672 = vpop.f32.mrf.mxu0
        %v1673 = vadd.f32 %v1494, %v1672
        %1674 = vmatmul.f32.gmra.mxu0 %v1002
        %v1675 = vpop.f32.mrf.mxu0
        %v1676 = vadd.f32 %v1497, %v1675
        %1677 = vmatmul.f32.gmra.mxu0 %v1005
        %v1678 = vpop.f32.mrf.mxu0
        %v1679 = vadd.f32 %v1500, %v1678
        %1680 = vmatmul.f32.gmra.mxu0 %v1007
        %v1681 = vpop.f32.mrf.mxu0
        %v1682 = vadd.f32 %v1503, %v1681
        %1683 = vmatmul.f32.gmra.mxu0 %v1009
        %v1684 = vpop.f32.mrf.mxu0
        %v1685 = vadd.f32 %v1506, %v1684
        %1686 = vmatmul.f32.gmra.mxu0 %v1012
        %v1687 = vpop.f32.mrf.mxu0
        %v1688 = vadd.f32 %v1509, %v1687
        %1689 = vmatmul.f32.gmra.mxu0 %v1014
        %v1690 = vpop.f32.mrf.mxu0
        %v1691 = vadd.f32 %v1512, %v1690
        %1692 = vmatmul.f32.gmra.mxu0 %v1016
        %v1693 = vpop.f32.mrf.mxu0
        %v1694 = vadd.f32 %v1515, %v1693
        %1695 = vmatmul.f32.gmra.mxu0 %v1019
        %v1696 = vpop.f32.mrf.mxu0
        %v1697 = vadd.f32 %v1518, %v1696
        %1698 = vmatmul.f32.gmra.mxu0 %v1021
        %v1699 = vpop.f32.mrf.mxu0
        %v1700 = vadd.f32 %v1521, %v1699
        %1701 = vmatmul.f32.gmra.mxu0 %v1023
        %v1702 = vpop.f32.mrf.mxu0
        %v1703 = vadd.f32 %v1524, %v1702
        %1704 = vmatmul.f32.gmra.mxu0 %v1026
        %v1705 = vpop.f32.mrf.mxu0
        %v1706 = vadd.f32 %v1527, %v1705
        %1707 = vmatmul.f32.gmra.mxu0 %v1028
        %v1708 = vpop.f32.mrf.mxu0
        %v1709 = vadd.f32 %v1530, %v1708
        %1710 = vmatmul.f32.gmra.mxu0 %v1030
        %v1711 = vpop.f32.mrf.mxu0
        %v1712 = vadd.f32 %v1533, %v1711
        %1713 = vmatmul.f32.gmra.mxu0 %v1033
        %v1714 = vpop.f32.mrf.mxu0
        %v1715 = vadd.f32 %v1536, %v1714
        %1716 = vmatmul.f32.gmra.mxu0 %v1035
        %v1717 = vpop.f32.mrf.mxu0
        %v1718 = vadd.f32 %v1539, %v1717
        %1719 = vmatmul.f32.gmra.mxu0 %v1037
        %v1720 = vpop.f32.mrf.mxu0
        %v1721 = vadd.f32 %v1542, %v1720
        %1722 = vmatmul.f32.gmra.mxu0 %v1040
        %v1723 = vpop.f32.mrf.mxu0
        %v1724 = vadd.f32 %v1545, %v1723
        %1725 = vmatmul.f32.gmra.mxu0 %v1042
        %v1726 = vpop.f32.mrf.mxu0
        %v1727 = vadd.f32 %v1548, %v1726
        %1728 = vmatmul.f32.gmra.mxu0 %v1044
        %v1729 = vpop.f32.mrf.mxu0
        %v1730 = vadd.f32 %v1551, %v1729
        %1731 = vmatmul.f32.gmra.mxu0 %v1047
        %v1732 = vpop.f32.mrf.mxu0
        %v1733 = vadd.f32 %v1554, %v1732
        %1734 = vmatmul.f32.gmra.mxu0 %v1049
        %v1735 = vpop.f32.mrf.mxu0
        %v1736 = vadd.f32 %v1557, %v1735
        %1737 = vmatmul.f32.gmra.mxu0 %v1051
        %v1738 = vpop.f32.mrf.mxu0
        %v1739 = vadd.f32 %v1560, %v1738
        %1740 = vmatmul.f32.gmra.mxu0 %v1054
        %v1741 = vpop.f32.mrf.mxu0
        %v1742 = vadd.f32 %v1563, %v1741
        %1743 = vmatmul.f32.gmra.mxu0 %v1056
        %v1744 = vpop.f32.mrf.mxu0
        %v1745 = vadd.f32 %v1566, %v1744
        %1746 = vmatmul.f32.gmra.mxu0 %v1058
        %v1747 = vpop.f32.mrf.mxu0
        %v1748 = vadd.f32 %v1569, %v1747
        %1749 = vmatmul.f32.gmra.mxu0 %v1061
        %v1750 = vpop.f32.mrf.mxu0
        %v1751 = vadd.f32 %v1572, %v1750
        %1752 = vmatmul.f32.gmra.mxu0 %v1063
        %v1753 = vpop.f32.mrf.mxu0
        %v1754 = vadd.f32 %v1575, %v1753
        %1755 = vmatmul.f32.gmra.mxu0 %v1065
        %v1756 = vpop.f32.mrf.mxu0
        %v1757 = vadd.f32 %v1578, %v1756
        %1758 = vmatmul.f32.gmra.mxu0 %v1068
        %v1759 = vpop.f32.mrf.mxu0
        %v1760 = vadd.f32 %v1581, %v1759
        %1761 = vmatmul.f32.gmra.mxu0 %v1070
        %v1762 = vpop.f32.mrf.mxu0
        %v1763 = vadd.f32 %v1584, %v1762
        %1764 = vmatmul.f32.gmra.mxu0 %v1072
        %v1765 = vpop.f32.mrf.mxu0
        %v1766 = vadd.f32 %v1587, %v1765
        %1767 = vmatmul.f32.gmra.mxu0 %v1075
        %v1768 = vpop.f32.mrf.mxu0
        %v1769 = vadd.f32 %v1590, %v1768
        %1770 = vmatmul.f32.gmra.mxu0 %v1077
        %v1771 = vpop.f32.mrf.mxu0
        %v1772 = vadd.f32 %v1593, %v1771
        %1773 = vmatmul.f32.gmra.mxu0 %v1079
        %v1774 = vpop.f32.mrf.mxu0
        %v1775 = vadd.f32 %v1596, %v1774
        %1776 = vmatmul.f32.gmra.mxu0 %v1082
        %v1777 = vpop.f32.mrf.mxu0
        %v1778 = vadd.f32 %v1599, %v1777
        %1779 = vmatmul.f32.gmra.mxu0 %v1084
        %v1780 = vpop.f32.mrf.mxu0
        %v1781 = vadd.f32 %v1602, %v1780
        %1782 = vmatmul.f32.gmra.mxu0 %v1086
        %v1783 = vpop.f32.mrf.mxu0
        %v1784 = vadd.f32 %v1605, %v1783
        %1785 = vmatmul.f32.gmra.mxu0 %v1089
        %v1786 = vpop.f32.mrf.mxu0
        %v1787 = vadd.f32 %v1608, %v1786
        %1788 = vmatmul.f32.gmra.mxu0 %v1091
        %v1789 = vpop.f32.mrf.mxu0
        %v1790 = vadd.f32 %v1611, %v1789
        %1791 = vmatmul.f32.gmra.mxu0 %v1093
        %v1792 = vpop.f32.mrf.mxu0
        %v1793 = vadd.f32 %v1614, %v1792
        %1794 = vdwg.mxu0
        %1795 = vmatpush.msra.mxu0 %v1176
        %1796 = vmatpush.msra.mxu0 %v1175
        %1797 = vmatpush.msra.mxu0 %v1174
        %1798 = vmatpush.msra.mxu0 %v1173
        %1799 = vmatpush.msra.mxu0 %v1172
        %1800 = vmatpush.msra.mxu0 %v1171
        %1801 = vmatpush.msra.mxu0 %v1170
        %1802 = vmatpush.msra.mxu0 %v1169
        %1803 = vmatpush.msra.mxu0 %v1168
        %1804 = vmatpush.msra.mxu0 %v1167
        %1805 = vmatpush.msra.mxu0 %v1166
        %1806 = vmatpush.msra.mxu0 %v1165
        %1807 = vmatpush.msra.mxu0 %v1164
        %1808 = vmatpush.msra.mxu0 %v1163
        %1809 = vmatpush.msra.mxu0 %v1162
        %1810 = vmatpush.msra.mxu0 %v1161
        %1811 = vmatmul.f32.gmra.mxu0 %v599
        %v1812 = vpop.f32.mrf.mxu0
        %v1813 = vadd.f32 %v1634, %v1812
        %1814 = vmatmul.f32.gmra.mxu0 %v600
        %v1815 = vpop.f32.mrf.mxu0
        %v1816 = vadd.f32 %v1637, %v1815
        %1817 = vmatmul.f32.gmra.mxu0 %v601
        %v1818 = vpop.f32.mrf.mxu0
        %v1819 = vadd.f32 %v1640, %v1818
        %1820 = vmatmul.f32.gmra.mxu0 %v603
        %v1821 = vpop.f32.mrf.mxu0
        %v1822 = vadd.f32 %v1643, %v1821
        %1823 = vmatmul.f32.gmra.mxu0 %v604
        %v1824 = vpop.f32.mrf.mxu0
        %v1825 = vadd.f32 %v1646, %v1824
        %1826 = vmatmul.f32.gmra.mxu0 %v605
        %v1827 = vpop.f32.mrf.mxu0
        %v1828 = vadd.f32 %v1649, %v1827
        %1829 = vmatmul.f32.gmra.mxu0 %v607
        %v1830 = vpop.f32.mrf.mxu0
        %v1831 = vadd.f32 %v1652, %v1830
        %1832 = vmatmul.f32.gmra.mxu0 %v608
        %v1833 = vpop.f32.mrf.mxu0
        %v1834 = vadd.f32 %v1655, %v1833
        %1835 = vmatmul.f32.gmra.mxu0 %v609
        %v1836 = vpop.f32.mrf.mxu0
        %v1837 = vadd.f32 %v1658, %v1836
        %1838 = vmatmul.f32.gmra.mxu0 %v611
        %v1839 = vpop.f32.mrf.mxu0
        %v1840 = vadd.f32 %v1661, %v1839
        %1841 = vmatmul.f32.gmra.mxu0 %v612
        %v1842 = vpop.f32.mrf.mxu0
        %v1843 = vadd.f32 %v1664, %v1842
        %1844 = vmatmul.f32.gmra.mxu0 %v613
        %v1845 = vpop.f32.mrf.mxu0
        %v1846 = vadd.f32 %v1667, %v1845
        %1847 = vmatmul.f32.gmra.mxu0 %v615
        %v1848 = vpop.f32.mrf.mxu0
        %v1849 = vadd.f32 %v1670, %v1848
        %1850 = vmatmul.f32.gmra.mxu0 %v616
        %v1851 = vpop.f32.mrf.mxu0
        %v1852 = vadd.f32 %v1673, %v1851
        %1853 = vmatmul.f32.gmra.mxu0 %v617
        %v1854 = vpop.f32.mrf.mxu0
        %v1855 = vadd.f32 %v1676, %v1854
        %1856 = vmatmul.f32.gmra.mxu0 %v619
        %v1857 = vpop.f32.mrf.mxu0
        %v1858 = vadd.f32 %v1679, %v1857
        %1859 = vmatmul.f32.gmra.mxu0 %v620
        %v1860 = vpop.f32.mrf.mxu0
        %v1861 = vadd.f32 %v1682, %v1860
        %1862 = vmatmul.f32.gmra.mxu0 %v621
        %v1863 = vpop.f32.mrf.mxu0
        %v1864 = vadd.f32 %v1685, %v1863
        %1865 = vmatmul.f32.gmra.mxu0 %v623
        %v1866 = vpop.f32.mrf.mxu0
        %v1867 = vadd.f32 %v1688, %v1866
        %1868 = vmatmul.f32.gmra.mxu0 %v624
        %v1869 = vpop.f32.mrf.mxu0
        %v1870 = vadd.f32 %v1691, %v1869
        %1871 = vmatmul.f32.gmra.mxu0 %v625
        %v1872 = vpop.f32.mrf.mxu0
        %v1873 = vadd.f32 %v1694, %v1872
        %1874 = vmatmul.f32.gmra.mxu0 %v627
        %v1875 = vpop.f32.mrf.mxu0
        %v1876 = vadd.f32 %v1697, %v1875
        %1877 = vmatmul.f32.gmra.mxu0 %v628
        %v1878 = vpop.f32.mrf.mxu0
        %v1879 = vadd.f32 %v1700, %v1878
        %1880 = vmatmul.f32.gmra.mxu0 %v629
        %v1881 = vpop.f32.mrf.mxu0
        %v1882 = vadd.f32 %v1703, %v1881
        %1883 = vmatmul.f32.gmra.mxu0 %v631
        %v1884 = vpop.f32.mrf.mxu0
        %v1885 = vadd.f32 %v1706, %v1884
        %1886 = vmatmul.f32.gmra.mxu0 %v632
        %v1887 = vpop.f32.mrf.mxu0
        %v1888 = vadd.f32 %v1709, %v1887
        %1889 = vmatmul.f32.gmra.mxu0 %v633
        %v1890 = vpop.f32.mrf.mxu0
        %v1891 = vadd.f32 %v1712, %v1890
        %1892 = vmatmul.f32.gmra.mxu0 %v635
        %v1893 = vpop.f32.mrf.mxu0
        %v1894 = vadd.f32 %v1715, %v1893
        %1895 = vmatmul.f32.gmra.mxu0 %v636
        %v1896 = vpop.f32.mrf.mxu0
        %v1897 = vadd.f32 %v1718, %v1896
        %1898 = vmatmul.f32.gmra.mxu0 %v637
        %v1899 = vpop.f32.mrf.mxu0
        %v1900 = vadd.f32 %v1721, %v1899
        %1901 = vmatmul.f32.gmra.mxu0 %v639
        %v1902 = vpop.f32.mrf.mxu0
        %v1903 = vadd.f32 %v1724, %v1902
        %1904 = vmatmul.f32.gmra.mxu0 %v640
        %v1905 = vpop.f32.mrf.mxu0
        %v1906 = vadd.f32 %v1727, %v1905
        %1907 = vmatmul.f32.gmra.mxu0 %v641
        %v1908 = vpop.f32.mrf.mxu0
        %v1909 = vadd.f32 %v1730, %v1908
        %1910 = vmatmul.f32.gmra.mxu0 %v643
        %v1911 = vpop.f32.mrf.mxu0
        %v1912 = vadd.f32 %v1733, %v1911
        %1913 = vmatmul.f32.gmra.mxu0 %v644
        %v1914 = vpop.f32.mrf.mxu0
        %v1915 = vadd.f32 %v1736, %v1914
        %1916 = vmatmul.f32.gmra.mxu0 %v645
        %v1917 = vpop.f32.mrf.mxu0
        %v1918 = vadd.f32 %v1739, %v1917
        %1919 = vmatmul.f32.gmra.mxu0 %v647
        %v1920 = vpop.f32.mrf.mxu0
        %v1921 = vadd.f32 %v1742, %v1920
        %1922 = vmatmul.f32.gmra.mxu0 %v648
        %v1923 = vpop.f32.mrf.mxu0
        %v1924 = vadd.f32 %v1745, %v1923
        %1925 = vmatmul.f32.gmra.mxu0 %v649
        %v1926 = vpop.f32.mrf.mxu0
        %v1927 = vadd.f32 %v1748, %v1926
        %1928 = vmatmul.f32.gmra.mxu0 %v651
        %v1929 = vpop.f32.mrf.mxu0
        %v1930 = vadd.f32 %v1751, %v1929
        %1931 = vmatmul.f32.gmra.mxu0 %v652
        %v1932 = vpop.f32.mrf.mxu0
        %v1933 = vadd.f32 %v1754, %v1932
        %1934 = vmatmul.f32.gmra.mxu0 %v653
        %v1935 = vpop.f32.mrf.mxu0
        %v1936 = vadd.f32 %v1757, %v1935
        %1937 = vmatmul.f32.gmra.mxu0 %v655
        %v1938 = vpop.f32.mrf.mxu0
        %v1939 = vadd.f32 %v1760, %v1938
        %1940 = vmatmul.f32.gmra.mxu0 %v656
        %v1941 = vpop.f32.mrf.mxu0
        %v1942 = vadd.f32 %v1763, %v1941
        %1943 = vmatmul.f32.gmra.mxu0 %v657
        %v1944 = vpop.f32.mrf.mxu0
        %v1945 = vadd.f32 %v1766, %v1944
        %1946 = vmatmul.f32.gmra.mxu0 %v659
        %v1947 = vpop.f32.mrf.mxu0
        %v1948 = vadd.f32 %v1769, %v1947
        %1949 = vmatmul.f32.gmra.mxu0 %v660
        %v1950 = vpop.f32.mrf.mxu0
        %v1951 = vadd.f32 %v1772, %v1950
        %1952 = vmatmul.f32.gmra.mxu0 %v661
        %v1953 = vpop.f32.mrf.mxu0
        %v1954 = vadd.f32 %v1775, %v1953
        %1955 = vmatmul.f32.gmra.mxu0 %v663
        %v1956 = vpop.f32.mrf.mxu0
        %v1957 = vadd.f32 %v1778, %v1956
        %1958 = vmatmul.f32.gmra.mxu0 %v664
        %v1959 = vpop.f32.mrf.mxu0
        %v1960 = vadd.f32 %v1781, %v1959
        %1961 = vmatmul.f32.gmra.mxu0 %v665
        %v1962 = vpop.f32.mrf.mxu0
        %v1963 = vadd.f32 %v1784, %v1962
        %1964 = vmatmul.f32.gmra.mxu0 %v667
        %v1965 = vpop.f32.mrf.mxu0
        %v1966 = vadd.f32 %v1787, %v1965
        %1967 = vmatmul.f32.gmra.mxu0 %v668
        %v1968 = vpop.f32.mrf.mxu0
        %v1969 = vadd.f32 %v1790, %v1968
        %1970 = vmatmul.f32.gmra.mxu0 %v669
        %v1971 = vpop.f32.mrf.mxu0
        %v1972 = vadd.f32 %v1793, %v1971
        %1973 = vdwg.mxu0
        %1974 = vmatpush.msra.mxu0 %v1192
        %1975 = vmatpush.msra.mxu0 %v1191
        %1976 = vmatpush.msra.mxu0 %v1190
        %1977 = vmatpush.msra.mxu0 %v1189
        %1978 = vmatpush.msra.mxu0 %v1188
        %1979 = vmatpush.msra.mxu0 %v1187
        %1980 = vmatpush.msra.mxu0 %v1186
        %1981 = vmatpush.msra.mxu0 %v1185
        %1982 = vmatpush.msra.mxu0 %v1184
        %1983 = vmatpush.msra.mxu0 %v1183
        %1984 = vmatpush.msra.mxu0 %v1182
        %1985 = vmatpush.msra.mxu0 %v1181
        %1986 = vmatpush.msra.mxu0 %v1180
        %1987 = vmatpush.msra.mxu0 %v1179
        %1988 = vmatpush.msra.mxu0 %v1178
        %1989 = vmatpush.msra.mxu0 %v1177
        %1990 = vmatmul.f32.gmra.mxu0 %v762
        %v1991 = vpop.f32.mrf.mxu0
        %v1992 = vadd.f32 %v1813, %v1991
        %1993 = vmatmul.f32.gmra.mxu0 %v764
        %v1994 = vpop.f32.mrf.mxu0
        %v1995 = vadd.f32 %v1816, %v1994
        %1996 = vmatmul.f32.gmra.mxu0 %v766
        %v1997 = vpop.f32.mrf.mxu0
        %v1998 = vadd.f32 %v1819, %v1997
        %1999 = vmatmul.f32.gmra.mxu0 %v769
        %v2000 = vpop.f32.mrf.mxu0
        %v2001 = vadd.f32 %v1822, %v2000
        %2002 = vmatmul.f32.gmra.mxu0 %v771
        %v2003 = vpop.f32.mrf.mxu0
        %v2004 = vadd.f32 %v1825, %v2003
        %2005 = vmatmul.f32.gmra.mxu0 %v773
        %v2006 = vpop.f32.mrf.mxu0
        %v2007 = vadd.f32 %v1828, %v2006
        %2008 = vmatmul.f32.gmra.mxu0 %v776
        %v2009 = vpop.f32.mrf.mxu0
        %v2010 = vadd.f32 %v1831, %v2009
        %2011 = vmatmul.f32.gmra.mxu0 %v778
        %v2012 = vpop.f32.mrf.mxu0
        %v2013 = vadd.f32 %v1834, %v2012
        %2014 = vmatmul.f32.gmra.mxu0 %v780
        %v2015 = vpop.f32.mrf.mxu0
        %v2016 = vadd.f32 %v1837, %v2015
        %2017 = vmatmul.f32.gmra.mxu0 %v783
        %v2018 = vpop.f32.mrf.mxu0
        %v2019 = vadd.f32 %v1840, %v2018
        %2020 = vmatmul.f32.gmra.mxu0 %v785
        %v2021 = vpop.f32.mrf.mxu0
        %v2022 = vadd.f32 %v1843, %v2021
        %2023 = vmatmul.f32.gmra.mxu0 %v787
        %v2024 = vpop.f32.mrf.mxu0
        %v2025 = vadd.f32 %v1846, %v2024
        %2026 = vmatmul.f32.gmra.mxu0 %v790
        %v2027 = vpop.f32.mrf.mxu0
        %v2028 = vadd.f32 %v1849, %v2027
        %2029 = vmatmul.f32.gmra.mxu0 %v792
        %v2030 = vpop.f32.mrf.mxu0
        %v2031 = vadd.f32 %v1852, %v2030
        %2032 = vmatmul.f32.gmra.mxu0 %v794
        %v2033 = vpop.f32.mrf.mxu0
        %v2034 = vadd.f32 %v1855, %v2033
        %2035 = vmatmul.f32.gmra.mxu0 %v797
        %v2036 = vpop.f32.mrf.mxu0
        %v2037 = vadd.f32 %v1858, %v2036
        %2038 = vmatmul.f32.gmra.mxu0 %v799
        %v2039 = vpop.f32.mrf.mxu0
        %v2040 = vadd.f32 %v1861, %v2039
        %2041 = vmatmul.f32.gmra.mxu0 %v801
        %v2042 = vpop.f32.mrf.mxu0
        %v2043 = vadd.f32 %v1864, %v2042
        %2044 = vmatmul.f32.gmra.mxu0 %v804
        %v2045 = vpop.f32.mrf.mxu0
        %v2046 = vadd.f32 %v1867, %v2045
        %2047 = vmatmul.f32.gmra.mxu0 %v806
        %v2048 = vpop.f32.mrf.mxu0
        %v2049 = vadd.f32 %v1870, %v2048
        %2050 = vmatmul.f32.gmra.mxu0 %v808
        %v2051 = vpop.f32.mrf.mxu0
        %v2052 = vadd.f32 %v1873, %v2051
        %2053 = vmatmul.f32.gmra.mxu0 %v811
        %v2054 = vpop.f32.mrf.mxu0
        %v2055 = vadd.f32 %v1876, %v2054
        %2056 = vmatmul.f32.gmra.mxu0 %v813
        %v2057 = vpop.f32.mrf.mxu0
        %v2058 = vadd.f32 %v1879, %v2057
        %2059 = vmatmul.f32.gmra.mxu0 %v815
        %v2060 = vpop.f32.mrf.mxu0
        %v2061 = vadd.f32 %v1882, %v2060
        %2062 = vmatmul.f32.gmra.mxu0 %v818
        %v2063 = vpop.f32.mrf.mxu0
        %v2064 = vadd.f32 %v1885, %v2063
        %2065 = vmatmul.f32.gmra.mxu0 %v820
        %v2066 = vpop.f32.mrf.mxu0
        %v2067 = vadd.f32 %v1888, %v2066
        %2068 = vmatmul.f32.gmra.mxu0 %v822
        %v2069 = vpop.f32.mrf.mxu0
        %v2070 = vadd.f32 %v1891, %v2069
        %2071 = vmatmul.f32.gmra.mxu0 %v825
        %v2072 = vpop.f32.mrf.mxu0
        %v2073 = vadd.f32 %v1894, %v2072
        %2074 = vmatmul.f32.gmra.mxu0 %v827
        %v2075 = vpop.f32.mrf.mxu0
        %v2076 = vadd.f32 %v1897, %v2075
        %2077 = vmatmul.f32.gmra.mxu0 %v829
        %v2078 = vpop.f32.mrf.mxu0
        %v2079 = vadd.f32 %v1900, %v2078
        %2080 = vmatmul.f32.gmra.mxu0 %v832
        %v2081 = vpop.f32.mrf.mxu0
        %v2082 = vadd.f32 %v1903, %v2081
        %2083 = vmatmul.f32.gmra.mxu0 %v834
        %v2084 = vpop.f32.mrf.mxu0
        %v2085 = vadd.f32 %v1906, %v2084
        %2086 = vmatmul.f32.gmra.mxu0 %v836
        %v2087 = vpop.f32.mrf.mxu0
        %v2088 = vadd.f32 %v1909, %v2087
        %2089 = vmatmul.f32.gmra.mxu0 %v839
        %v2090 = vpop.f32.mrf.mxu0
        %v2091 = vadd.f32 %v1912, %v2090
        %2092 = vmatmul.f32.gmra.mxu0 %v841
        %v2093 = vpop.f32.mrf.mxu0
        %v2094 = vadd.f32 %v1915, %v2093
        %2095 = vmatmul.f32.gmra.mxu0 %v843
        %v2096 = vpop.f32.mrf.mxu0
        %v2097 = vadd.f32 %v1918, %v2096
        %2098 = vmatmul.f32.gmra.mxu0 %v846
        %v2099 = vpop.f32.mrf.mxu0
        %v2100 = vadd.f32 %v1921, %v2099
        %2101 = vmatmul.f32.gmra.mxu0 %v848
        %v2102 = vpop.f32.mrf.mxu0
        %v2103 = vadd.f32 %v1924, %v2102
        %2104 = vmatmul.f32.gmra.mxu0 %v850
        %v2105 = vpop.f32.mrf.mxu0
        %v2106 = vadd.f32 %v1927, %v2105
        %2107 = vmatmul.f32.gmra.mxu0 %v853
        %v2108 = vpop.f32.mrf.mxu0
        %v2109 = vadd.f32 %v1930, %v2108
        %2110 = vmatmul.f32.gmra.mxu0 %v855
        %v2111 = vpop.f32.mrf.mxu0
        %v2112 = vadd.f32 %v1933, %v2111
        %2113 = vmatmul.f32.gmra.mxu0 %v857
        %v2114 = vpop.f32.mrf.mxu0
        %v2115 = vadd.f32 %v1936, %v2114
        %2116 = vmatmul.f32.gmra.mxu0 %v860
        %v2117 = vpop.f32.mrf.mxu0
        %v2118 = vadd.f32 %v1939, %v2117
        %2119 = vmatmul.f32.gmra.mxu0 %v862
        %v2120 = vpop.f32.mrf.mxu0
        %v2121 = vadd.f32 %v1942, %v2120
        %2122 = vmatmul.f32.gmra.mxu0 %v864
        %v2123 = vpop.f32.mrf.mxu0
        %v2124 = vadd.f32 %v1945, %v2123
        %2125 = vmatmul.f32.gmra.mxu0 %v867
        %v2126 = vpop.f32.mrf.mxu0
        %v2127 = vadd.f32 %v1948, %v2126
        %2128 = vmatmul.f32.gmra.mxu0 %v869
        %v2129 = vpop.f32.mrf.mxu0
        %v2130 = vadd.f32 %v1951, %v2129
        %2131 = vmatmul.f32.gmra.mxu0 %v871
        %v2132 = vpop.f32.mrf.mxu0
        %v2133 = vadd.f32 %v1954, %v2132
        %2134 = vmatmul.f32.gmra.mxu0 %v874
        %v2135 = vpop.f32.mrf.mxu0
        %v2136 = vadd.f32 %v1957, %v2135
        %2137 = vmatmul.f32.gmra.mxu0 %v876
        %v2138 = vpop.f32.mrf.mxu0
        %v2139 = vadd.f32 %v1960, %v2138
        %2140 = vmatmul.f32.gmra.mxu0 %v878
        %v2141 = vpop.f32.mrf.mxu0
        %v2142 = vadd.f32 %v1963, %v2141
        %2143 = vmatmul.f32.gmra.mxu0 %v881
        %v2144 = vpop.f32.mrf.mxu0
        %v2145 = vadd.f32 %v1966, %v2144
        %2146 = vmatmul.f32.gmra.mxu0 %v883
        %v2147 = vpop.f32.mrf.mxu0
        %v2148 = vadd.f32 %v1969, %v2147
        %2149 = vmatmul.f32.gmra.mxu0 %v885
        %v2150 = vpop.f32.mrf.mxu0
        %v2151 = vadd.f32 %v1972, %v2150
        %2152 = vdwg.mxu0
        %2153 = vmatpush.msra.mxu0 %v1208
        %2154 = vmatpush.msra.mxu0 %v1207
        %2155 = vmatpush.msra.mxu0 %v1206
        %2156 = vmatpush.msra.mxu0 %v1205
        %2157 = vmatpush.msra.mxu0 %v1204
        %2158 = vmatpush.msra.mxu0 %v1203
        %2159 = vmatpush.msra.mxu0 %v1202
        %2160 = vmatpush.msra.mxu0 %v1201
        %2161 = vmatpush.msra.mxu0 %v1200
        %2162 = vmatpush.msra.mxu0 %v1199
        %2163 = vmatpush.msra.mxu0 %v1198
        %2164 = vmatpush.msra.mxu0 %v1197
        %2165 = vmatpush.msra.mxu0 %v1196
        %2166 = vmatpush.msra.mxu0 %v1195
        %2167 = vmatpush.msra.mxu0 %v1194
        %2168 = vmatpush.msra.mxu0 %v1193
        %2169 = vmatmul.f32.gmra.mxu0 %v963
        %v2170 = vpop.f32.mrf.mxu0
        %v2171 = vadd.f32 %v1992, %v2170
        %2172 = vmatmul.f32.gmra.mxu0 %v965
        %v2173 = vpop.f32.mrf.mxu0
        %v2174 = vadd.f32 %v1995, %v2173
        %2175 = vmatmul.f32.gmra.mxu0 %v967
        %v2176 = vpop.f32.mrf.mxu0
        %v2177 = vadd.f32 %v1998, %v2176
        %2178 = vmatmul.f32.gmra.mxu0 %v970
        %v2179 = vpop.f32.mrf.mxu0
        %v2180 = vadd.f32 %v2001, %v2179
        %2181 = vmatmul.f32.gmra.mxu0 %v972
        %v2182 = vpop.f32.mrf.mxu0
        %v2183 = vadd.f32 %v2004, %v2182
        %2184 = vmatmul.f32.gmra.mxu0 %v974
        %v2185 = vpop.f32.mrf.mxu0
        %v2186 = vadd.f32 %v2007, %v2185
        %2187 = vmatmul.f32.gmra.mxu0 %v977
        %v2188 = vpop.f32.mrf.mxu0
        %v2189 = vadd.f32 %v2010, %v2188
        %2190 = vmatmul.f32.gmra.mxu0 %v979
        %v2191 = vpop.f32.mrf.mxu0
        %v2192 = vadd.f32 %v2013, %v2191
        %2193 = vmatmul.f32.gmra.mxu0 %v981
        %v2194 = vpop.f32.mrf.mxu0
        %v2195 = vadd.f32 %v2016, %v2194
        %2196 = vmatmul.f32.gmra.mxu0 %v984
        %v2197 = vpop.f32.mrf.mxu0
        %v2198 = vadd.f32 %v2019, %v2197
        %2199 = vmatmul.f32.gmra.mxu0 %v986
        %v2200 = vpop.f32.mrf.mxu0
        %v2201 = vadd.f32 %v2022, %v2200
        %2202 = vmatmul.f32.gmra.mxu0 %v988
        %v2203 = vpop.f32.mrf.mxu0
        %v2204 = vadd.f32 %v2025, %v2203
        %2205 = vmatmul.f32.gmra.mxu0 %v991
        %v2206 = vpop.f32.mrf.mxu0
        %v2207 = vadd.f32 %v2028, %v2206
        %2208 = vmatmul.f32.gmra.mxu0 %v993
        %v2209 = vpop.f32.mrf.mxu0
        %v2210 = vadd.f32 %v2031, %v2209
        %2211 = vmatmul.f32.gmra.mxu0 %v995
        %v2212 = vpop.f32.mrf.mxu0
        %v2213 = vadd.f32 %v2034, %v2212
        %2214 = vmatmul.f32.gmra.mxu0 %v998
        %v2215 = vpop.f32.mrf.mxu0
        %v2216 = vadd.f32 %v2037, %v2215
        %2217 = vmatmul.f32.gmra.mxu0 %v1000
        %v2218 = vpop.f32.mrf.mxu0
        %v2219 = vadd.f32 %v2040, %v2218
        %2220 = vmatmul.f32.gmra.mxu0 %v1002
        %v2221 = vpop.f32.mrf.mxu0
        %v2222 = vadd.f32 %v2043, %v2221
        %2223 = vmatmul.f32.gmra.mxu0 %v1005
        %v2224 = vpop.f32.mrf.mxu0
        %v2225 = vadd.f32 %v2046, %v2224
        %2226 = vmatmul.f32.gmra.mxu0 %v1007
        %v2227 = vpop.f32.mrf.mxu0
        %v2228 = vadd.f32 %v2049, %v2227
        %2229 = vmatmul.f32.gmra.mxu0 %v1009
        %v2230 = vpop.f32.mrf.mxu0
        %v2231 = vadd.f32 %v2052, %v2230
        %2232 = vmatmul.f32.gmra.mxu0 %v1012
        %v2233 = vpop.f32.mrf.mxu0
        %v2234 = vadd.f32 %v2055, %v2233
        %2235 = vmatmul.f32.gmra.mxu0 %v1014
        %v2236 = vpop.f32.mrf.mxu0
        %v2237 = vadd.f32 %v2058, %v2236
        %2238 = vmatmul.f32.gmra.mxu0 %v1016
        %v2239 = vpop.f32.mrf.mxu0
        %v2240 = vadd.f32 %v2061, %v2239
        %2241 = vmatmul.f32.gmra.mxu0 %v1019
        %v2242 = vpop.f32.mrf.mxu0
        %v2243 = vadd.f32 %v2064, %v2242
        %2244 = vmatmul.f32.gmra.mxu0 %v1021
        %v2245 = vpop.f32.mrf.mxu0
        %v2246 = vadd.f32 %v2067, %v2245
        %2247 = vmatmul.f32.gmra.mxu0 %v1023
        %v2248 = vpop.f32.mrf.mxu0
        %v2249 = vadd.f32 %v2070, %v2248
        %2250 = vmatmul.f32.gmra.mxu0 %v1026
        %v2251 = vpop.f32.mrf.mxu0
        %v2252 = vadd.f32 %v2073, %v2251
        %2253 = vmatmul.f32.gmra.mxu0 %v1028
        %v2254 = vpop.f32.mrf.mxu0
        %v2255 = vadd.f32 %v2076, %v2254
        %2256 = vmatmul.f32.gmra.mxu0 %v1030
        %v2257 = vpop.f32.mrf.mxu0
        %v2258 = vadd.f32 %v2079, %v2257
        %2259 = vmatmul.f32.gmra.mxu0 %v1033
        %v2260 = vpop.f32.mrf.mxu0
        %v2261 = vadd.f32 %v2082, %v2260
        %2262 = vmatmul.f32.gmra.mxu0 %v1035
        %v2263 = vpop.f32.mrf.mxu0
        %v2264 = vadd.f32 %v2085, %v2263
        %2265 = vmatmul.f32.gmra.mxu0 %v1037
        %v2266 = vpop.f32.mrf.mxu0
        %v2267 = vadd.f32 %v2088, %v2266
        %2268 = vmatmul.f32.gmra.mxu0 %v1040
        %v2269 = vpop.f32.mrf.mxu0
        %v2270 = vadd.f32 %v2091, %v2269
        %2271 = vmatmul.f32.gmra.mxu0 %v1042
        %v2272 = vpop.f32.mrf.mxu0
        %v2273 = vadd.f32 %v2094, %v2272
        %2274 = vmatmul.f32.gmra.mxu0 %v1044
        %v2275 = vpop.f32.mrf.mxu0
        %v2276 = vadd.f32 %v2097, %v2275
        %2277 = vmatmul.f32.gmra.mxu0 %v1047
        %v2278 = vpop.f32.mrf.mxu0
        %v2279 = vadd.f32 %v2100, %v2278
        %2280 = vmatmul.f32.gmra.mxu0 %v1049
        %v2281 = vpop.f32.mrf.mxu0
        %v2282 = vadd.f32 %v2103, %v2281
        %2283 = vmatmul.f32.gmra.mxu0 %v1051
        %v2284 = vpop.f32.mrf.mxu0
        %v2285 = vadd.f32 %v2106, %v2284
        %2286 = vmatmul.f32.gmra.mxu0 %v1054
        %v2287 = vpop.f32.mrf.mxu0
        %v2288 = vadd.f32 %v2109, %v2287
        %2289 = vmatmul.f32.gmra.mxu0 %v1056
        %v2290 = vpop.f32.mrf.mxu0
        %v2291 = vadd.f32 %v2112, %v2290
        %2292 = vmatmul.f32.gmra.mxu0 %v1058
        %v2293 = vpop.f32.mrf.mxu0
        %v2294 = vadd.f32 %v2115, %v2293
        %2295 = vmatmul.f32.gmra.mxu0 %v1061
        %v2296 = vpop.f32.mrf.mxu0
        %v2297 = vadd.f32 %v2118, %v2296
        %2298 = vmatmul.f32.gmra.mxu0 %v1063
        %v2299 = vpop.f32.mrf.mxu0
        %v2300 = vadd.f32 %v2121, %v2299
        %2301 = vmatmul.f32.gmra.mxu0 %v1065
        %v2302 = vpop.f32.mrf.mxu0
        %v2303 = vadd.f32 %v2124, %v2302
        %2304 = vmatmul.f32.gmra.mxu0 %v1068
        %v2305 = vpop.f32.mrf.mxu0
        %v2306 = vadd.f32 %v2127, %v2305
        %2307 = vmatmul.f32.gmra.mxu0 %v1070
        %v2308 = vpop.f32.mrf.mxu0
        %v2309 = vadd.f32 %v2130, %v2308
        %2310 = vmatmul.f32.gmra.mxu0 %v1072
        %v2311 = vpop.f32.mrf.mxu0
        %v2312 = vadd.f32 %v2133, %v2311
        %2313 = vmatmul.f32.gmra.mxu0 %v1075
        %v2314 = vpop.f32.mrf.mxu0
        %v2315 = vadd.f32 %v2136, %v2314
        %2316 = vmatmul.f32.gmra.mxu0 %v1077
        %v2317 = vpop.f32.mrf.mxu0
        %v2318 = vadd.f32 %v2139, %v2317
        %2319 = vmatmul.f32.gmra.mxu0 %v1079
        %v2320 = vpop.f32.mrf.mxu0
        %v2321 = vadd.f32 %v2142, %v2320
        %2322 = vmatmul.f32.gmra.mxu0 %v1082
        %v2323 = vpop.f32.mrf.mxu0
        %v2324 = vadd.f32 %v2145, %v2323
        %2325 = vmatmul.f32.gmra.mxu0 %v1084
        %v2326 = vpop.f32.mrf.mxu0
        %v2327 = vadd.f32 %v2148, %v2326
        %2328 = vmatmul.f32.gmra.mxu0 %v1086
        %v2329 = vpop.f32.mrf.mxu0
        %v2330 = vadd.f32 %v2151, %v2329
        %2331 = vdwg.mxu0
        %s2332 = scalar_lea.vmem %s1, 768
        %v2333 = vld [vmem:[%s2332] sm:$0xff]
        %v2334 = vld [vmem:[%s2332 + $0x8] sm:$0xff]
        %v2335 = vld [vmem:[%s2332 + $0x10] sm:$0xff]
        %v2336 = vld [vmem:[%s2332 + $0x18] sm:$0xff]
        %v2337 = vld [vmem:[%s2332 + $0x20] sm:$0xff]
        %v2338 = vld [vmem:[%s2332 + $0x28] sm:$0xff]
        %v2339 = vld [vmem:[%s2332 + $0x30] sm:$0xff]
        %v2340 = vld [vmem:[%s2332 + $0x38] sm:$0xff]
        %v2341 = vld [vmem:[%s2332 + $0x40] sm:$0xff]
        %v2342 = vld [vmem:[%s2332 + $0x48] sm:$0xff]
        %v2343 = vld [vmem:[%s2332 + $0x50] sm:$0xff]
        %v2344 = vld [vmem:[%s2332 + $0x58] sm:$0xff]
        %v2345 = vld [vmem:[%s2332 + $0x60] sm:$0xff]
        %v2346 = vld [vmem:[%s2332 + $0x68] sm:$0xff]
        %v2347 = vld [vmem:[%s2332 + $0x70] sm:$0xff]
        %v2348 = vld [vmem:[%s2332 + $0x78] sm:$0xff]
        %v2349 = vld [vmem:[%s2332 + $0x80] sm:$0xff]
        %v2350 = vld [vmem:[%s2332 + $0x88] sm:$0xff]
        %v2351 = vld [vmem:[%s2332 + $0x90] sm:$0xff]
        %v2352 = vld [vmem:[%s2332 + $0x98] sm:$0xff]
        %v2353 = vld [vmem:[%s2332 + $0xa0] sm:$0xff]
        %v2354 = vld [vmem:[%s2332 + $0xa8] sm:$0xff]
        %v2355 = vld [vmem:[%s2332 + $0xb0] sm:$0xff]
        %v2356 = vld [vmem:[%s2332 + $0xb8] sm:$0xff]
        %v2357 = vld [vmem:[%s2332 + $0xc0] sm:$0xff]
        %v2358 = vld [vmem:[%s2332 + $0xc8] sm:$0xff]
        %v2359 = vld [vmem:[%s2332 + $0xd0] sm:$0xff]
        %v2360 = vld [vmem:[%s2332 + $0xd8] sm:$0xff]
        %v2361 = vld [vmem:[%s2332 + $0xe0] sm:$0xff]
        %v2362 = vld [vmem:[%s2332 + $0xe8] sm:$0xff]
        %v2363 = vld [vmem:[%s2332 + $0xf0] sm:$0xff]
        %v2364 = vld [vmem:[%s2332 + $0xf8] sm:$0xff]
        %v2365 = vld [vmem:[%s2332 + $0x100] sm:$0xff]
        %v2366 = vld [vmem:[%s2332 + $0x108] sm:$0xff]
        %v2367 = vld [vmem:[%s2332 + $0x110] sm:$0xff]
        %v2368 = vld [vmem:[%s2332 + $0x118] sm:$0xff]
        %v2369 = vld [vmem:[%s2332 + $0x120] sm:$0xff]
        %v2370 = vld [vmem:[%s2332 + $0x128] sm:$0xff]
        %v2371 = vld [vmem:[%s2332 + $0x130] sm:$0xff]
        %v2372 = vld [vmem:[%s2332 + $0x138] sm:$0xff]
        %v2373 = vld [vmem:[%s2332 + $0x140] sm:$0xff]
        %v2374 = vld [vmem:[%s2332 + $0x148] sm:$0xff]
        %v2375 = vld [vmem:[%s2332 + $0x150] sm:$0xff]
        %v2376 = vld [vmem:[%s2332 + $0x158] sm:$0xff]
        %v2377 = vld [vmem:[%s2332 + $0x160] sm:$0xff]
        %v2378 = vld [vmem:[%s2332 + $0x168] sm:$0xff]
        %v2379 = vld [vmem:[%s2332 + $0x170] sm:$0xff]
        %v2380 = vld [vmem:[%s2332 + $0x178] sm:$0xff]
        %2381 = vmatpush.msra.mxu0 %v2348
        %2382 = vmatpush.msra.mxu0 %v2347
        %2383 = vmatpush.msra.mxu0 %v2346
        %2384 = vmatpush.msra.mxu0 %v2345
        %2385 = vmatpush.msra.mxu0 %v2344
        %2386 = vmatpush.msra.mxu0 %v2343
        %2387 = vmatpush.msra.mxu0 %v2342
        %2388 = vmatpush.msra.mxu0 %v2341
        %2389 = vmatpush.msra.mxu0 %v2340
        %2390 = vmatpush.msra.mxu0 %v2339
        %2391 = vmatpush.msra.mxu0 %v2338
        %2392 = vmatpush.msra.mxu0 %v2337
        %2393 = vmatpush.msra.mxu0 %v2336
        %2394 = vmatpush.msra.mxu0 %v2335
        %2395 = vmatpush.msra.mxu0 %v2334
        %2396 = vmatpush.msra.mxu0 %v2333
        %2397 = vmatmul.f32.gmra.mxu0 %v607
        %v2398 = vpop.f32.mrf.mxu0
        %v2399 = vadd.f32 0.0, %v2398
        %2400 = vmatmul.f32.gmra.mxu0 %v608
        %v2401 = vpop.f32.mrf.mxu0
        %v2402 = vadd.f32 0.0, %v2401
        %2403 = vmatmul.f32.gmra.mxu0 %v609
        %v2404 = vpop.f32.mrf.mxu0
        %v2405 = vadd.f32 0.0, %v2404
        %2406 = vmatmul.f32.gmra.mxu0 %v611
        %v2407 = vpop.f32.mrf.mxu0
        %v2408 = vadd.f32 0.0, %v2407
        %2409 = vmatmul.f32.gmra.mxu0 %v612
        %v2410 = vpop.f32.mrf.mxu0
        %v2411 = vadd.f32 0.0, %v2410
        %2412 = vmatmul.f32.gmra.mxu0 %v613
        %v2413 = vpop.f32.mrf.mxu0
        %v2414 = vadd.f32 0.0, %v2413
        %2415 = vmatmul.f32.gmra.mxu0 %v615
        %v2416 = vpop.f32.mrf.mxu0
        %v2417 = vadd.f32 0.0, %v2416
        %2418 = vmatmul.f32.gmra.mxu0 %v616
        %v2419 = vpop.f32.mrf.mxu0
        %v2420 = vadd.f32 0.0, %v2419
        %2421 = vmatmul.f32.gmra.mxu0 %v617
        %v2422 = vpop.f32.mrf.mxu0
        %v2423 = vadd.f32 0.0, %v2422
        %2424 = vmatmul.f32.gmra.mxu0 %v619
        %v2425 = vpop.f32.mrf.mxu0
        %v2426 = vadd.f32 0.0, %v2425
        %2427 = vmatmul.f32.gmra.mxu0 %v620
        %v2428 = vpop.f32.mrf.mxu0
        %v2429 = vadd.f32 0.0, %v2428
        %2430 = vmatmul.f32.gmra.mxu0 %v621
        %v2431 = vpop.f32.mrf.mxu0
        %v2432 = vadd.f32 0.0, %v2431
        %2433 = vmatmul.f32.gmra.mxu0 %v623
        %v2434 = vpop.f32.mrf.mxu0
        %v2435 = vadd.f32 0.0, %v2434
        %2436 = vmatmul.f32.gmra.mxu0 %v624
        %v2437 = vpop.f32.mrf.mxu0
        %v2438 = vadd.f32 0.0, %v2437
        %2439 = vmatmul.f32.gmra.mxu0 %v625
        %v2440 = vpop.f32.mrf.mxu0
        %v2441 = vadd.f32 0.0, %v2440
        %2442 = vmatmul.f32.gmra.mxu0 %v627
        %v2443 = vpop.f32.mrf.mxu0
        %v2444 = vadd.f32 0.0, %v2443
        %2445 = vmatmul.f32.gmra.mxu0 %v628
        %v2446 = vpop.f32.mrf.mxu0
        %v2447 = vadd.f32 0.0, %v2446
        %2448 = vmatmul.f32.gmra.mxu0 %v629
        %v2449 = vpop.f32.mrf.mxu0
        %v2450 = vadd.f32 0.0, %v2449
        %2451 = vmatmul.f32.gmra.mxu0 %v631
        %v2452 = vpop.f32.mrf.mxu0
        %v2453 = vadd.f32 0.0, %v2452
        %2454 = vmatmul.f32.gmra.mxu0 %v632
        %v2455 = vpop.f32.mrf.mxu0
        %v2456 = vadd.f32 0.0, %v2455
        %2457 = vmatmul.f32.gmra.mxu0 %v633
        %v2458 = vpop.f32.mrf.mxu0
        %v2459 = vadd.f32 0.0, %v2458
        %2460 = vmatmul.f32.gmra.mxu0 %v635
        %v2461 = vpop.f32.mrf.mxu0
        %v2462 = vadd.f32 0.0, %v2461
        %2463 = vmatmul.f32.gmra.mxu0 %v636
        %v2464 = vpop.f32.mrf.mxu0
        %v2465 = vadd.f32 0.0, %v2464
        %2466 = vmatmul.f32.gmra.mxu0 %v637
        %v2467 = vpop.f32.mrf.mxu0
        %v2468 = vadd.f32 0.0, %v2467
        %2469 = vmatmul.f32.gmra.mxu0 %v639
        %v2470 = vpop.f32.mrf.mxu0
        %v2471 = vadd.f32 0.0, %v2470
        %2472 = vmatmul.f32.gmra.mxu0 %v640
        %v2473 = vpop.f32.mrf.mxu0
        %v2474 = vadd.f32 0.0, %v2473
        %2475 = vmatmul.f32.gmra.mxu0 %v641
        %v2476 = vpop.f32.mrf.mxu0
        %v2477 = vadd.f32 0.0, %v2476
        %2478 = vmatmul.f32.gmra.mxu0 %v643
        %v2479 = vpop.f32.mrf.mxu0
        %v2480 = vadd.f32 0.0, %v2479
        %2481 = vmatmul.f32.gmra.mxu0 %v644
        %v2482 = vpop.f32.mrf.mxu0
        %v2483 = vadd.f32 0.0, %v2482
        %2484 = vmatmul.f32.gmra.mxu0 %v645
        %v2485 = vpop.f32.mrf.mxu0
        %v2486 = vadd.f32 0.0, %v2485
        %2487 = vmatmul.f32.gmra.mxu0 %v647
        %v2488 = vpop.f32.mrf.mxu0
        %v2489 = vadd.f32 0.0, %v2488
        %2490 = vmatmul.f32.gmra.mxu0 %v648
        %v2491 = vpop.f32.mrf.mxu0
        %v2492 = vadd.f32 0.0, %v2491
        %2493 = vmatmul.f32.gmra.mxu0 %v649
        %v2494 = vpop.f32.mrf.mxu0
        %v2495 = vadd.f32 0.0, %v2494
        %2496 = vmatmul.f32.gmra.mxu0 %v651
        %v2497 = vpop.f32.mrf.mxu0
        %v2498 = vadd.f32 0.0, %v2497
        %2499 = vmatmul.f32.gmra.mxu0 %v652
        %v2500 = vpop.f32.mrf.mxu0
        %v2501 = vadd.f32 0.0, %v2500
        %2502 = vmatmul.f32.gmra.mxu0 %v653
        %v2503 = vpop.f32.mrf.mxu0
        %v2504 = vadd.f32 0.0, %v2503
        %2505 = vmatmul.f32.gmra.mxu0 %v655
        %v2506 = vpop.f32.mrf.mxu0
        %v2507 = vadd.f32 0.0, %v2506
        %2508 = vmatmul.f32.gmra.mxu0 %v656
        %v2509 = vpop.f32.mrf.mxu0
        %v2510 = vadd.f32 0.0, %v2509
        %2511 = vmatmul.f32.gmra.mxu0 %v657
        %v2512 = vpop.f32.mrf.mxu0
        %v2513 = vadd.f32 0.0, %v2512
        %2514 = vmatmul.f32.gmra.mxu0 %v659
        %v2515 = vpop.f32.mrf.mxu0
        %v2516 = vadd.f32 0.0, %v2515
        %2517 = vmatmul.f32.gmra.mxu0 %v660
        %v2518 = vpop.f32.mrf.mxu0
        %v2519 = vadd.f32 0.0, %v2518
        %2520 = vmatmul.f32.gmra.mxu0 %v661
        %v2521 = vpop.f32.mrf.mxu0
        %v2522 = vadd.f32 0.0, %v2521
        %2523 = vmatmul.f32.gmra.mxu0 %v663
        %v2524 = vpop.f32.mrf.mxu0
        %v2525 = vadd.f32 0.0, %v2524
        %2526 = vmatmul.f32.gmra.mxu0 %v664
        %v2527 = vpop.f32.mrf.mxu0
        %v2528 = vadd.f32 0.0, %v2527
        %2529 = vmatmul.f32.gmra.mxu0 %v665
        %v2530 = vpop.f32.mrf.mxu0
        %v2531 = vadd.f32 0.0, %v2530
        %2532 = vmatmul.f32.gmra.mxu0 %v667
        %v2533 = vpop.f32.mrf.mxu0
        %v2534 = vadd.f32 0.0, %v2533
        %2535 = vmatmul.f32.gmra.mxu0 %v668
        %v2536 = vpop.f32.mrf.mxu0
        %v2537 = vadd.f32 0.0, %v2536
        %2538 = vmatmul.f32.gmra.mxu0 %v669
        %v2539 = vpop.f32.mrf.mxu0
        %v2540 = vadd.f32 0.0, %v2539
        %2541 = vmatmul.f32.gmra.mxu0 %v671
        %v2542 = vpop.f32.mrf.mxu0
        %v2543 = vadd.f32 0.0, %v2542
        %2544 = vmatmul.f32.gmra.mxu0 %v672
        %v2545 = vpop.f32.mrf.mxu0
        %v2546 = vadd.f32 0.0, %v2545
        %2547 = vmatmul.f32.gmra.mxu0 %v673
        %v2548 = vpop.f32.mrf.mxu0
        %v2549 = vadd.f32 0.0, %v2548
        %2550 = vmatmul.f32.gmra.mxu0 %v675
        %v2551 = vpop.f32.mrf.mxu0
        %v2552 = vadd.f32 0.0, %v2551
        %2553 = vmatmul.f32.gmra.mxu0 %v676
        %v2554 = vpop.f32.mrf.mxu0
        %v2555 = vadd.f32 0.0, %v2554
        %2556 = vmatmul.f32.gmra.mxu0 %v677
        %v2557 = vpop.f32.mrf.mxu0
        %v2558 = vadd.f32 0.0, %v2557
        %2559 = vdwg.mxu0
        %2560 = vmatpush.msra.mxu0 %v2364
        %2561 = vmatpush.msra.mxu0 %v2363
        %2562 = vmatpush.msra.mxu0 %v2362
        %2563 = vmatpush.msra.mxu0 %v2361
        %2564 = vmatpush.msra.mxu0 %v2360
        %2565 = vmatpush.msra.mxu0 %v2359
        %2566 = vmatpush.msra.mxu0 %v2358
        %2567 = vmatpush.msra.mxu0 %v2357
        %2568 = vmatpush.msra.mxu0 %v2356
        %2569 = vmatpush.msra.mxu0 %v2355
        %2570 = vmatpush.msra.mxu0 %v2354
        %2571 = vmatpush.msra.mxu0 %v2353
        %2572 = vmatpush.msra.mxu0 %v2352
        %2573 = vmatpush.msra.mxu0 %v2351
        %2574 = vmatpush.msra.mxu0 %v2350
        %2575 = vmatpush.msra.mxu0 %v2349
        %2576 = vmatmul.f32.gmra.mxu0 %v776
        %v2577 = vpop.f32.mrf.mxu0
        %v2578 = vadd.f32 %v2399, %v2577
        %2579 = vmatmul.f32.gmra.mxu0 %v778
        %v2580 = vpop.f32.mrf.mxu0
        %v2581 = vadd.f32 %v2402, %v2580
        %2582 = vmatmul.f32.gmra.mxu0 %v780
        %v2583 = vpop.f32.mrf.mxu0
        %v2584 = vadd.f32 %v2405, %v2583
        %2585 = vmatmul.f32.gmra.mxu0 %v783
        %v2586 = vpop.f32.mrf.mxu0
        %v2587 = vadd.f32 %v2408, %v2586
        %2588 = vmatmul.f32.gmra.mxu0 %v785
        %v2589 = vpop.f32.mrf.mxu0
        %v2590 = vadd.f32 %v2411, %v2589
        %2591 = vmatmul.f32.gmra.mxu0 %v787
        %v2592 = vpop.f32.mrf.mxu0
        %v2593 = vadd.f32 %v2414, %v2592
        %2594 = vmatmul.f32.gmra.mxu0 %v790
        %v2595 = vpop.f32.mrf.mxu0
        %v2596 = vadd.f32 %v2417, %v2595
        %2597 = vmatmul.f32.gmra.mxu0 %v792
        %v2598 = vpop.f32.mrf.mxu0
        %v2599 = vadd.f32 %v2420, %v2598
        %2600 = vmatmul.f32.gmra.mxu0 %v794
        %v2601 = vpop.f32.mrf.mxu0
        %v2602 = vadd.f32 %v2423, %v2601
        %2603 = vmatmul.f32.gmra.mxu0 %v797
        %v2604 = vpop.f32.mrf.mxu0
        %v2605 = vadd.f32 %v2426, %v2604
        %2606 = vmatmul.f32.gmra.mxu0 %v799
        %v2607 = vpop.f32.mrf.mxu0
        %v2608 = vadd.f32 %v2429, %v2607
        %2609 = vmatmul.f32.gmra.mxu0 %v801
        %v2610 = vpop.f32.mrf.mxu0
        %v2611 = vadd.f32 %v2432, %v2610
        %2612 = vmatmul.f32.gmra.mxu0 %v804
        %v2613 = vpop.f32.mrf.mxu0
        %v2614 = vadd.f32 %v2435, %v2613
        %2615 = vmatmul.f32.gmra.mxu0 %v806
        %v2616 = vpop.f32.mrf.mxu0
        %v2617 = vadd.f32 %v2438, %v2616
        %2618 = vmatmul.f32.gmra.mxu0 %v808
        %v2619 = vpop.f32.mrf.mxu0
        %v2620 = vadd.f32 %v2441, %v2619
        %2621 = vmatmul.f32.gmra.mxu0 %v811
        %v2622 = vpop.f32.mrf.mxu0
        %v2623 = vadd.f32 %v2444, %v2622
        %2624 = vmatmul.f32.gmra.mxu0 %v813
        %v2625 = vpop.f32.mrf.mxu0
        %v2626 = vadd.f32 %v2447, %v2625
        %2627 = vmatmul.f32.gmra.mxu0 %v815
        %v2628 = vpop.f32.mrf.mxu0
        %v2629 = vadd.f32 %v2450, %v2628
        %2630 = vmatmul.f32.gmra.mxu0 %v818
        %v2631 = vpop.f32.mrf.mxu0
        %v2632 = vadd.f32 %v2453, %v2631
        %2633 = vmatmul.f32.gmra.mxu0 %v820
        %v2634 = vpop.f32.mrf.mxu0
        %v2635 = vadd.f32 %v2456, %v2634
        %2636 = vmatmul.f32.gmra.mxu0 %v822
        %v2637 = vpop.f32.mrf.mxu0
        %v2638 = vadd.f32 %v2459, %v2637
        %2639 = vmatmul.f32.gmra.mxu0 %v825
        %v2640 = vpop.f32.mrf.mxu0
        %v2641 = vadd.f32 %v2462, %v2640
        %2642 = vmatmul.f32.gmra.mxu0 %v827
        %v2643 = vpop.f32.mrf.mxu0
        %v2644 = vadd.f32 %v2465, %v2643
        %2645 = vmatmul.f32.gmra.mxu0 %v829
        %v2646 = vpop.f32.mrf.mxu0
        %v2647 = vadd.f32 %v2468, %v2646
        %2648 = vmatmul.f32.gmra.mxu0 %v832
        %v2649 = vpop.f32.mrf.mxu0
        %v2650 = vadd.f32 %v2471, %v2649
        %2651 = vmatmul.f32.gmra.mxu0 %v834
        %v2652 = vpop.f32.mrf.mxu0
        %v2653 = vadd.f32 %v2474, %v2652
        %2654 = vmatmul.f32.gmra.mxu0 %v836
        %v2655 = vpop.f32.mrf.mxu0
        %v2656 = vadd.f32 %v2477, %v2655
        %2657 = vmatmul.f32.gmra.mxu0 %v839
        %v2658 = vpop.f32.mrf.mxu0
        %v2659 = vadd.f32 %v2480, %v2658
        %2660 = vmatmul.f32.gmra.mxu0 %v841
        %v2661 = vpop.f32.mrf.mxu0
        %v2662 = vadd.f32 %v2483, %v2661
        %2663 = vmatmul.f32.gmra.mxu0 %v843
        %v2664 = vpop.f32.mrf.mxu0
        %v2665 = vadd.f32 %v2486, %v2664
        %2666 = vmatmul.f32.gmra.mxu0 %v846
        %v2667 = vpop.f32.mrf.mxu0
        %v2668 = vadd.f32 %v2489, %v2667
        %2669 = vmatmul.f32.gmra.mxu0 %v848
        %v2670 = vpop.f32.mrf.mxu0
        %v2671 = vadd.f32 %v2492, %v2670
        %2672 = vmatmul.f32.gmra.mxu0 %v850
        %v2673 = vpop.f32.mrf.mxu0
        %v2674 = vadd.f32 %v2495, %v2673
        %2675 = vmatmul.f32.gmra.mxu0 %v853
        %v2676 = vpop.f32.mrf.mxu0
        %v2677 = vadd.f32 %v2498, %v2676
        %2678 = vmatmul.f32.gmra.mxu0 %v855
        %v2679 = vpop.f32.mrf.mxu0
        %v2680 = vadd.f32 %v2501, %v2679
        %2681 = vmatmul.f32.gmra.mxu0 %v857
        %v2682 = vpop.f32.mrf.mxu0
        %v2683 = vadd.f32 %v2504, %v2682
        %2684 = vmatmul.f32.gmra.mxu0 %v860
        %v2685 = vpop.f32.mrf.mxu0
        %v2686 = vadd.f32 %v2507, %v2685
        %2687 = vmatmul.f32.gmra.mxu0 %v862
        %v2688 = vpop.f32.mrf.mxu0
        %v2689 = vadd.f32 %v2510, %v2688
        %2690 = vmatmul.f32.gmra.mxu0 %v864
        %v2691 = vpop.f32.mrf.mxu0
        %v2692 = vadd.f32 %v2513, %v2691
        %2693 = vmatmul.f32.gmra.mxu0 %v867
        %v2694 = vpop.f32.mrf.mxu0
        %v2695 = vadd.f32 %v2516, %v2694
        %2696 = vmatmul.f32.gmra.mxu0 %v869
        %v2697 = vpop.f32.mrf.mxu0
        %v2698 = vadd.f32 %v2519, %v2697
        %2699 = vmatmul.f32.gmra.mxu0 %v871
        %v2700 = vpop.f32.mrf.mxu0
        %v2701 = vadd.f32 %v2522, %v2700
        %2702 = vmatmul.f32.gmra.mxu0 %v874
        %v2703 = vpop.f32.mrf.mxu0
        %v2704 = vadd.f32 %v2525, %v2703
        %2705 = vmatmul.f32.gmra.mxu0 %v876
        %v2706 = vpop.f32.mrf.mxu0
        %v2707 = vadd.f32 %v2528, %v2706
        %2708 = vmatmul.f32.gmra.mxu0 %v878
        %v2709 = vpop.f32.mrf.mxu0
        %v2710 = vadd.f32 %v2531, %v2709
        %2711 = vmatmul.f32.gmra.mxu0 %v881
        %v2712 = vpop.f32.mrf.mxu0
        %v2713 = vadd.f32 %v2534, %v2712
        %2714 = vmatmul.f32.gmra.mxu0 %v883
        %v2715 = vpop.f32.mrf.mxu0
        %v2716 = vadd.f32 %v2537, %v2715
        %2717 = vmatmul.f32.gmra.mxu0 %v885
        %v2718 = vpop.f32.mrf.mxu0
        %v2719 = vadd.f32 %v2540, %v2718
        %2720 = vmatmul.f32.gmra.mxu0 %v888
        %v2721 = vpop.f32.mrf.mxu0
        %v2722 = vadd.f32 %v2543, %v2721
        %2723 = vmatmul.f32.gmra.mxu0 %v890
        %v2724 = vpop.f32.mrf.mxu0
        %v2725 = vadd.f32 %v2546, %v2724
        %2726 = vmatmul.f32.gmra.mxu0 %v892
        %v2727 = vpop.f32.mrf.mxu0
        %v2728 = vadd.f32 %v2549, %v2727
        %2729 = vmatmul.f32.gmra.mxu0 %v895
        %v2730 = vpop.f32.mrf.mxu0
        %v2731 = vadd.f32 %v2552, %v2730
        %2732 = vmatmul.f32.gmra.mxu0 %v897
        %v2733 = vpop.f32.mrf.mxu0
        %v2734 = vadd.f32 %v2555, %v2733
        %2735 = vmatmul.f32.gmra.mxu0 %v899
        %v2736 = vpop.f32.mrf.mxu0
        %v2737 = vadd.f32 %v2558, %v2736
        %2738 = vdwg.mxu0
        %2739 = vmatpush.msra.mxu0 %v2380
        %2740 = vmatpush.msra.mxu0 %v2379
        %2741 = vmatpush.msra.mxu0 %v2378
        %2742 = vmatpush.msra.mxu0 %v2377
        %2743 = vmatpush.msra.mxu0 %v2376
        %2744 = vmatpush.msra.mxu0 %v2375
        %2745 = vmatpush.msra.mxu0 %v2374
        %2746 = vmatpush.msra.mxu0 %v2373
        %2747 = vmatpush.msra.mxu0 %v2372
        %2748 = vmatpush.msra.mxu0 %v2371
        %2749 = vmatpush.msra.mxu0 %v2370
        %2750 = vmatpush.msra.mxu0 %v2369
        %2751 = vmatpush.msra.mxu0 %v2368
        %2752 = vmatpush.msra.mxu0 %v2367
        %2753 = vmatpush.msra.mxu0 %v2366
        %2754 = vmatpush.msra.mxu0 %v2365
        %2755 = vmatmul.f32.gmra.mxu0 %v977
        %v2756 = vpop.f32.mrf.mxu0
        %v2757 = vadd.f32 %v2578, %v2756
        %2758 = vmatmul.f32.gmra.mxu0 %v979
        %v2759 = vpop.f32.mrf.mxu0
        %v2760 = vadd.f32 %v2581, %v2759
        %2761 = vmatmul.f32.gmra.mxu0 %v981
        %v2762 = vpop.f32.mrf.mxu0
        %v2763 = vadd.f32 %v2584, %v2762
        %2764 = vmatmul.f32.gmra.mxu0 %v984
        %v2765 = vpop.f32.mrf.mxu0
        %v2766 = vadd.f32 %v2587, %v2765
        %2767 = vmatmul.f32.gmra.mxu0 %v986
        %v2768 = vpop.f32.mrf.mxu0
        %v2769 = vadd.f32 %v2590, %v2768
        %2770 = vmatmul.f32.gmra.mxu0 %v988
        %v2771 = vpop.f32.mrf.mxu0
        %v2772 = vadd.f32 %v2593, %v2771
        %2773 = vmatmul.f32.gmra.mxu0 %v991
        %v2774 = vpop.f32.mrf.mxu0
        %v2775 = vadd.f32 %v2596, %v2774
        %2776 = vmatmul.f32.gmra.mxu0 %v993
        %v2777 = vpop.f32.mrf.mxu0
        %v2778 = vadd.f32 %v2599, %v2777
        %2779 = vmatmul.f32.gmra.mxu0 %v995
        %v2780 = vpop.f32.mrf.mxu0
        %v2781 = vadd.f32 %v2602, %v2780
        %2782 = vmatmul.f32.gmra.mxu0 %v998
        %v2783 = vpop.f32.mrf.mxu0
        %v2784 = vadd.f32 %v2605, %v2783
        %2785 = vmatmul.f32.gmra.mxu0 %v1000
        %v2786 = vpop.f32.mrf.mxu0
        %v2787 = vadd.f32 %v2608, %v2786
        %2788 = vmatmul.f32.gmra.mxu0 %v1002
        %v2789 = vpop.f32.mrf.mxu0
        %v2790 = vadd.f32 %v2611, %v2789
        %2791 = vmatmul.f32.gmra.mxu0 %v1005
        %v2792 = vpop.f32.mrf.mxu0
        %v2793 = vadd.f32 %v2614, %v2792
        %2794 = vmatmul.f32.gmra.mxu0 %v1007
        %v2795 = vpop.f32.mrf.mxu0
        %v2796 = vadd.f32 %v2617, %v2795
        %2797 = vmatmul.f32.gmra.mxu0 %v1009
        %v2798 = vpop.f32.mrf.mxu0
        %v2799 = vadd.f32 %v2620, %v2798
        %2800 = vmatmul.f32.gmra.mxu0 %v1012
        %v2801 = vpop.f32.mrf.mxu0
        %v2802 = vadd.f32 %v2623, %v2801
        %2803 = vmatmul.f32.gmra.mxu0 %v1014
        %v2804 = vpop.f32.mrf.mxu0
        %v2805 = vadd.f32 %v2626, %v2804
        %2806 = vmatmul.f32.gmra.mxu0 %v1016
        %v2807 = vpop.f32.mrf.mxu0
        %v2808 = vadd.f32 %v2629, %v2807
        %2809 = vmatmul.f32.gmra.mxu0 %v1019
        %v2810 = vpop.f32.mrf.mxu0
        %v2811 = vadd.f32 %v2632, %v2810
        %2812 = vmatmul.f32.gmra.mxu0 %v1021
        %v2813 = vpop.f32.mrf.mxu0
        %v2814 = vadd.f32 %v2635, %v2813
        %2815 = vmatmul.f32.gmra.mxu0 %v1023
        %v2816 = vpop.f32.mrf.mxu0
        %v2817 = vadd.f32 %v2638, %v2816
        %2818 = vmatmul.f32.gmra.mxu0 %v1026
        %v2819 = vpop.f32.mrf.mxu0
        %v2820 = vadd.f32 %v2641, %v2819
        %2821 = vmatmul.f32.gmra.mxu0 %v1028
        %v2822 = vpop.f32.mrf.mxu0
        %v2823 = vadd.f32 %v2644, %v2822
        %2824 = vmatmul.f32.gmra.mxu0 %v1030
        %v2825 = vpop.f32.mrf.mxu0
        %v2826 = vadd.f32 %v2647, %v2825
        %2827 = vmatmul.f32.gmra.mxu0 %v1033
        %v2828 = vpop.f32.mrf.mxu0
        %v2829 = vadd.f32 %v2650, %v2828
        %2830 = vmatmul.f32.gmra.mxu0 %v1035
        %v2831 = vpop.f32.mrf.mxu0
        %v2832 = vadd.f32 %v2653, %v2831
        %2833 = vmatmul.f32.gmra.mxu0 %v1037
        %v2834 = vpop.f32.mrf.mxu0
        %v2835 = vadd.f32 %v2656, %v2834
        %2836 = vmatmul.f32.gmra.mxu0 %v1040
        %v2837 = vpop.f32.mrf.mxu0
        %v2838 = vadd.f32 %v2659, %v2837
        %2839 = vmatmul.f32.gmra.mxu0 %v1042
        %v2840 = vpop.f32.mrf.mxu0
        %v2841 = vadd.f32 %v2662, %v2840
        %2842 = vmatmul.f32.gmra.mxu0 %v1044
        %v2843 = vpop.f32.mrf.mxu0
        %v2844 = vadd.f32 %v2665, %v2843
        %2845 = vmatmul.f32.gmra.mxu0 %v1047
        %v2846 = vpop.f32.mrf.mxu0
        %v2847 = vadd.f32 %v2668, %v2846
        %2848 = vmatmul.f32.gmra.mxu0 %v1049
        %v2849 = vpop.f32.mrf.mxu0
        %v2850 = vadd.f32 %v2671, %v2849
        %2851 = vmatmul.f32.gmra.mxu0 %v1051
        %v2852 = vpop.f32.mrf.mxu0
        %v2853 = vadd.f32 %v2674, %v2852
        %2854 = vmatmul.f32.gmra.mxu0 %v1054
        %v2855 = vpop.f32.mrf.mxu0
        %v2856 = vadd.f32 %v2677, %v2855
        %2857 = vmatmul.f32.gmra.mxu0 %v1056
        %v2858 = vpop.f32.mrf.mxu0
        %v2859 = vadd.f32 %v2680, %v2858
        %2860 = vmatmul.f32.gmra.mxu0 %v1058
        %v2861 = vpop.f32.mrf.mxu0
        %v2862 = vadd.f32 %v2683, %v2861
        %2863 = vmatmul.f32.gmra.mxu0 %v1061
        %v2864 = vpop.f32.mrf.mxu0
        %v2865 = vadd.f32 %v2686, %v2864
        %2866 = vmatmul.f32.gmra.mxu0 %v1063
        %v2867 = vpop.f32.mrf.mxu0
        %v2868 = vadd.f32 %v2689, %v2867
        %2869 = vmatmul.f32.gmra.mxu0 %v1065
        %v2870 = vpop.f32.mrf.mxu0
        %v2871 = vadd.f32 %v2692, %v2870
        %2872 = vmatmul.f32.gmra.mxu0 %v1068
        %v2873 = vpop.f32.mrf.mxu0
        %v2874 = vadd.f32 %v2695, %v2873
        %2875 = vmatmul.f32.gmra.mxu0 %v1070
        %v2876 = vpop.f32.mrf.mxu0
        %v2877 = vadd.f32 %v2698, %v2876
        %2878 = vmatmul.f32.gmra.mxu0 %v1072
        %v2879 = vpop.f32.mrf.mxu0
        %v2880 = vadd.f32 %v2701, %v2879
        %2881 = vmatmul.f32.gmra.mxu0 %v1075
        %v2882 = vpop.f32.mrf.mxu0
        %v2883 = vadd.f32 %v2704, %v2882
        %2884 = vmatmul.f32.gmra.mxu0 %v1077
        %v2885 = vpop.f32.mrf.mxu0
        %v2886 = vadd.f32 %v2707, %v2885
        %2887 = vmatmul.f32.gmra.mxu0 %v1079
        %v2888 = vpop.f32.mrf.mxu0
        %v2889 = vadd.f32 %v2710, %v2888
        %2890 = vmatmul.f32.gmra.mxu0 %v1082
        %v2891 = vpop.f32.mrf.mxu0
        %v2892 = vadd.f32 %v2713, %v2891
        %2893 = vmatmul.f32.gmra.mxu0 %v1084
        %v2894 = vpop.f32.mrf.mxu0
        %v2895 = vadd.f32 %v2716, %v2894
        %2896 = vmatmul.f32.gmra.mxu0 %v1086
        %v2897 = vpop.f32.mrf.mxu0
        %v2898 = vadd.f32 %v2719, %v2897
        %2899 = vmatmul.f32.gmra.mxu0 %v1089
        %v2900 = vpop.f32.mrf.mxu0
        %v2901 = vadd.f32 %v2722, %v2900
        %2902 = vmatmul.f32.gmra.mxu0 %v1091
        %v2903 = vpop.f32.mrf.mxu0
        %v2904 = vadd.f32 %v2725, %v2903
        %2905 = vmatmul.f32.gmra.mxu0 %v1093
        %v2906 = vpop.f32.mrf.mxu0
        %v2907 = vadd.f32 %v2728, %v2906
        %2908 = vmatmul.f32.gmra.mxu0 %v1096
        %v2909 = vpop.f32.mrf.mxu0
        %v2910 = vadd.f32 %v2731, %v2909
        %2911 = vmatmul.f32.gmra.mxu0 %v1098
        %v2912 = vpop.f32.mrf.mxu0
        %v2913 = vadd.f32 %v2734, %v2912
        %2914 = vmatmul.f32.gmra.mxu0 %v1100
        %v2915 = vpop.f32.mrf.mxu0
        %v2916 = vadd.f32 %v2737, %v2915
        %2917 = vdwg.mxu0
        %v2918 = vadd.f32 %v2171, %v2757
        %v2919 = vadd.f32 %v2174, %v2760
        %v2920 = vadd.f32 %v2177, %v2763
        %v2921 = vadd.f32 %v2180, %v2766
        %v2922 = vadd.f32 %v2183, %v2769
        %v2923 = vadd.f32 %v2186, %v2772
        %v2924 = vadd.f32 %v2189, %v2775
        %v2925 = vadd.f32 %v2192, %v2778
        %v2926 = vadd.f32 %v2195, %v2781
        %v2927 = vadd.f32 %v2198, %v2784
        %v2928 = vadd.f32 %v2201, %v2787
        %v2929 = vadd.f32 %v2204, %v2790
        %v2930 = vadd.f32 %v2207, %v2793
        %v2931 = vadd.f32 %v2210, %v2796
        %v2932 = vadd.f32 %v2213, %v2799
        %v2933 = vadd.f32 %v2216, %v2802
        %v2934 = vadd.f32 %v2219, %v2805
        %v2935 = vadd.f32 %v2222, %v2808
        %v2936 = vadd.f32 %v2225, %v2811
        %v2937 = vadd.f32 %v2228, %v2814
        %v2938 = vadd.f32 %v2231, %v2817
        %v2939 = vadd.f32 %v2234, %v2820
        %v2940 = vadd.f32 %v2237, %v2823
        %v2941 = vadd.f32 %v2240, %v2826
        %v2942 = vadd.f32 %v2243, %v2829
        %v2943 = vadd.f32 %v2246, %v2832
        %v2944 = vadd.f32 %v2249, %v2835
        %v2945 = vadd.f32 %v2252, %v2838
        %v2946 = vadd.f32 %v2255, %v2841
        %v2947 = vadd.f32 %v2258, %v2844
        %v2948 = vadd.f32 %v2261, %v2847
        %v2949 = vadd.f32 %v2264, %v2850
        %v2950 = vadd.f32 %v2267, %v2853
        %v2951 = vadd.f32 %v2270, %v2856
        %v2952 = vadd.f32 %v2273, %v2859
        %v2953 = vadd.f32 %v2276, %v2862
        %v2954 = vadd.f32 %v2279, %v2865
        %v2955 = vadd.f32 %v2282, %v2868
        %v2956 = vadd.f32 %v2285, %v2871
        %v2957 = vadd.f32 %v2288, %v2874
        %v2958 = vadd.f32 %v2291, %v2877
        %v2959 = vadd.f32 %v2294, %v2880
        %v2960 = vadd.f32 %v2297, %v2883
        %v2961 = vadd.f32 %v2300, %v2886
        %v2962 = vadd.f32 %v2303, %v2889
        %v2963 = vadd.f32 %v2306, %v2892
        %v2964 = vadd.f32 %v2309, %v2895
        %v2965 = vadd.f32 %v2312, %v2898
        %v2966 = vadd.f32 %v2315, %v2901
        %v2967 = vadd.f32 %v2318, %v2904
        %v2968 = vadd.f32 %v2321, %v2907
        %v2969 = vadd.f32 %v2324, %v2910
        %v2970 = vadd.f32 %v2327, %v2913
        %v2971 = vadd.f32 %v2330, %v2916
        %v2972 = vld [vmem:[%s2] sm:$0x1]
        %v2974 = vperm.slane %v2972, 0
        %v2976 = vadd.f32 %v2918, %v2974
        %v2977 = vadd.f32 %v2919, %v2974
        %v2978 = vadd.f32 %v2920, %v2974
        %v2979 = vadd.f32 %v2921, %v2974
        %v2980 = vadd.f32 %v2922, %v2974
        %v2981 = vadd.f32 %v2923, %v2974
        %v2982 = vadd.f32 %v2924, %v2974
        %v2983 = vadd.f32 %v2925, %v2974
        %v2984 = vadd.f32 %v2926, %v2974
        %v2985 = vadd.f32 %v2927, %v2974
        %v2986 = vadd.f32 %v2928, %v2974
        %v2987 = vadd.f32 %v2929, %v2974
        %v2988 = vadd.f32 %v2930, %v2974
        %v2989 = vadd.f32 %v2931, %v2974
        %v2990 = vadd.f32 %v2932, %v2974
        %v2991 = vadd.f32 %v2933, %v2974
        %v2992 = vadd.f32 %v2934, %v2974
        %v2993 = vadd.f32 %v2935, %v2974
        %v2994 = vadd.f32 %v2936, %v2974
        %v2995 = vadd.f32 %v2937, %v2974
        %v2996 = vadd.f32 %v2938, %v2974
        %v2997 = vadd.f32 %v2939, %v2974
        %v2998 = vadd.f32 %v2940, %v2974
        %v2999 = vadd.f32 %v2941, %v2974
        %v3000 = vadd.f32 %v2942, %v2974
        %v3001 = vadd.f32 %v2943, %v2974
        %v3002 = vadd.f32 %v2944, %v2974
        %v3003 = vadd.f32 %v2945, %v2974
        %v3004 = vadd.f32 %v2946, %v2974
        %v3005 = vadd.f32 %v2947, %v2974
        %v3006 = vadd.f32 %v2948, %v2974
        %v3007 = vadd.f32 %v2949, %v2974
        %v3008 = vadd.f32 %v2950, %v2974
        %v3009 = vadd.f32 %v2951, %v2974
        %v3010 = vadd.f32 %v2952, %v2974
        %v3011 = vadd.f32 %v2953, %v2974
        %v3012 = vadd.f32 %v2954, %v2974
        %v3013 = vadd.f32 %v2955, %v2974
        %v3014 = vadd.f32 %v2956, %v2974
        %v3015 = vadd.f32 %v2957, %v2974
        %v3016 = vadd.f32 %v2958, %v2974
        %v3017 = vadd.f32 %v2959, %v2974
        %v3018 = vadd.f32 %v2960, %v2974
        %v3019 = vadd.f32 %v2961, %v2974
        %v3020 = vadd.f32 %v2962, %v2974
        %v3021 = vadd.f32 %v2963, %v2974
        %v3022 = vadd.f32 %v2964, %v2974
        %v3023 = vadd.f32 %v2965, %v2974
        %v3024 = vadd.f32 %v2966, %v2974
        %v3025 = vadd.f32 %v2967, %v2974
        %v3026 = vadd.f32 %v2968, %v2974
        %v3027 = vadd.f32 %v2969, %v2974
        %v3028 = vadd.f32 %v2970, %v2974
        %v3029 = vadd.f32 %v2971, %v2974
        %v3030 = vmax.f32 %v2976, 0.0
        %v3031 = vmax.f32 %v2977, 0.0
        %v3032 = vmax.f32 %v2978, 0.0
        %v3033 = vmax.f32 %v2979, 0.0
        %v3034 = vmax.f32 %v2980, 0.0
        %v3035 = vmax.f32 %v2981, 0.0
        %v3036 = vmax.f32 %v2982, 0.0
        %v3037 = vmax.f32 %v2983, 0.0
        %v3038 = vmax.f32 %v2984, 0.0
        %v3039 = vmax.f32 %v2985, 0.0
        %v3040 = vmax.f32 %v2986, 0.0
        %v3041 = vmax.f32 %v2987, 0.0
        %v3042 = vmax.f32 %v2988, 0.0
        %v3043 = vmax.f32 %v2989, 0.0
        %v3044 = vmax.f32 %v2990, 0.0
        %v3045 = vmax.f32 %v2991, 0.0
        %v3046 = vmax.f32 %v2992, 0.0
        %v3047 = vmax.f32 %v2993, 0.0
        %v3048 = vmax.f32 %v2994, 0.0
        %v3049 = vmax.f32 %v2995, 0.0
        %v3050 = vmax.f32 %v2996, 0.0
        %v3051 = vmax.f32 %v2997, 0.0
        %v3052 = vmax.f32 %v2998, 0.0
        %v3053 = vmax.f32 %v2999, 0.0
        %v3054 = vmax.f32 %v3000, 0.0
        %v3055 = vmax.f32 %v3001, 0.0
        %v3056 = vmax.f32 %v3002, 0.0
        %v3057 = vmax.f32 %v3003, 0.0
        %v3058 = vmax.f32 %v3004, 0.0
        %v3059 = vmax.f32 %v3005, 0.0
        %v3060 = vmax.f32 %v3006, 0.0
        %v3061 = vmax.f32 %v3007, 0.0
        %v3062 = vmax.f32 %v3008, 0.0
        %v3063 = vmax.f32 %v3009, 0.0
        %v3064 = vmax.f32 %v3010, 0.0
        %v3065 = vmax.f32 %v3011, 0.0
        %v3066 = vmax.f32 %v3012, 0.0
        %v3067 = vmax.f32 %v3013, 0.0
        %v3068 = vmax.f32 %v3014, 0.0
        %v3069 = vmax.f32 %v3015, 0.0
        %v3070 = vmax.f32 %v3016, 0.0
        %v3071 = vmax.f32 %v3017, 0.0
        %v3072 = vmax.f32 %v3018, 0.0
        %v3073 = vmax.f32 %v3019, 0.0
        %v3074 = vmax.f32 %v3020, 0.0
        %v3075 = vmax.f32 %v3021, 0.0
        %v3076 = vmax.f32 %v3022, 0.0
        %v3077 = vmax.f32 %v3023, 0.0
        %v3078 = vmax.f32 %v3024, 0.0
        %v3079 = vmax.f32 %v3025, 0.0
        %v3080 = vmax.f32 %v3026, 0.0
        %v3081 = vmax.f32 %v3027, 0.0
        %v3082 = vmax.f32 %v3028, 0.0
        %v3083 = vmax.f32 %v3029, 0.0
        %s3084 = smul.u32 %s24, 16
        %v3085 = vlaneseq
        %v3086 = vshrl.u32 %v3085, 7
        %v3087 = vadd.s32 %v3086, 8
        %v3088 = vadd.s32 %v3086, 16
        %s3089 = ssub.s32 %s3084, 1
        %v3090 = vstv %s3089
        %v3091 = vadd.s32 %v3090, 1
        %v3092 = vadd.s32 %v3090, 2
        %v3093 = vadd.s32 %v3090, 3
        %v3094 = vadd.s32 %v3090, 4
        %v3095 = vadd.s32 %v3090, 5
        %v3096 = vadd.s32 %v3090, 6
        %v3097 = vadd.s32 %v3090, 7
        %v3098 = vadd.s32 %v3090, 8
        %v3099 = vadd.s32 %v3090, 9
        %v3100 = vadd.s32 %v3090, 10
        %v3101 = vadd.s32 %v3090, 11
        %v3102 = vadd.s32 %v3090, 12
        %v3103 = vadd.s32 %v3090, 13
        %v3104 = vadd.s32 %v3090, 14
        %v3105 = vadd.s32 %v3090, 15
        %v3106 = vadd.s32 %v3090, 16
        %v3107 = vadd.s32 %v3090, 17
        %vm3108 = vcmp.ge.s32.totalorder %v3086, 1
        %vm3109 = vcmp.ge.s32.totalorder %v3087, 1
        %vm3110 = vcmp.ge.s32.totalorder %v3088, 1
        %vm3111 = vcmp.le.s32.totalorder %v3086, 16
        %vm3112 = vcmp.le.s32.totalorder %v3087, 16
        %vm3113 = vcmp.le.s32.totalorder %v3088, 16
        %vm3114 = vmand %vm3108, %vm3111
        %vm3115 = vmand %vm3109, %vm3112
        %vm3116 = vmand %vm3110, %vm3113
        %vm3117 = vcmp.ge.s32.totalorder %v3090, 0
        %vm3118 = vcmp.ge.s32.totalorder %v3091, 0
        %vm3119 = vcmp.ge.s32.totalorder %v3092, 0
        %vm3120 = vcmp.ge.s32.totalorder %v3093, 0
        %vm3121 = vcmp.ge.s32.totalorder %v3094, 0
        %vm3122 = vcmp.ge.s32.totalorder %v3095, 0
        %vm3123 = vcmp.ge.s32.totalorder %v3096, 0
        %vm3124 = vcmp.ge.s32.totalorder %v3097, 0
        %vm3125 = vcmp.ge.s32.totalorder %v3098, 0
        %vm3126 = vcmp.ge.s32.totalorder %v3099, 0
        %vm3127 = vcmp.ge.s32.totalorder %v3100, 0
        %vm3128 = vcmp.ge.s32.totalorder %v3101, 0
        %vm3129 = vcmp.ge.s32.totalorder %v3102, 0
        %vm3130 = vcmp.ge.s32.totalorder %v3103, 0
        %vm3131 = vcmp.ge.s32.totalorder %v3104, 0
        %vm3132 = vcmp.ge.s32.totalorder %v3105, 0
        %vm3133 = vcmp.ge.s32.totalorder %v3106, 0
        %vm3134 = vcmp.ge.s32.totalorder %v3107, 0
        %v3135 = vsel %vm3114, 1, 0
        %v3136 = vsel %vm3115, 1, 0
        %v3137 = vsel %vm3116, 1, 0
        %vm3138 = vcmp.eq.s32.totalorder %v3135, 1
        %vm3139 = vcmp.eq.s32.totalorder %v3136, 1
        %vm3140 = vcmp.eq.s32.totalorder %v3137, 1
        %v3141 = vsel %vm3117, 1, 0
        %v3142 = vsel %vm3118, 1, 0
        %v3143 = vsel %vm3119, 1, 0
        %v3144 = vsel %vm3120, 1, 0
        %v3145 = vsel %vm3121, 1, 0
        %v3146 = vsel %vm3122, 1, 0
        %v3147 = vsel %vm3123, 1, 0
        %v3148 = vsel %vm3124, 1, 0
        %v3149 = vsel %vm3125, 1, 0
        %v3150 = vsel %vm3126, 1, 0
        %v3151 = vsel %vm3127, 1, 0
        %v3152 = vsel %vm3128, 1, 0
        %v3153 = vsel %vm3129, 1, 0
        %v3154 = vsel %vm3130, 1, 0
        %v3155 = vsel %vm3131, 1, 0
        %v3156 = vsel %vm3132, 1, 0
        %v3157 = vsel %vm3133, 1, 0
        %v3158 = vsel %vm3134, 1, 0
        %vm3159 = vcmp.eq.s32.totalorder %v3141, 1
        %vm3160 = vcmp.eq.s32.totalorder %v3142, 1
        %vm3161 = vcmp.eq.s32.totalorder %v3143, 1
        %vm3162 = vcmp.eq.s32.totalorder %v3144, 1
        %vm3163 = vcmp.eq.s32.totalorder %v3145, 1
        %vm3164 = vcmp.eq.s32.totalorder %v3146, 1
        %vm3165 = vcmp.eq.s32.totalorder %v3147, 1
        %vm3166 = vcmp.eq.s32.totalorder %v3148, 1
        %vm3167 = vcmp.eq.s32.totalorder %v3149, 1
        %vm3168 = vcmp.eq.s32.totalorder %v3150, 1
        %vm3169 = vcmp.eq.s32.totalorder %v3151, 1
        %vm3170 = vcmp.eq.s32.totalorder %v3152, 1
        %vm3171 = vcmp.eq.s32.totalorder %v3153, 1
        %vm3172 = vcmp.eq.s32.totalorder %v3154, 1
        %vm3173 = vcmp.eq.s32.totalorder %v3155, 1
        %vm3174 = vcmp.eq.s32.totalorder %v3156, 1
        %vm3175 = vcmp.eq.s32.totalorder %v3157, 1
        %vm3176 = vcmp.eq.s32.totalorder %v3158, 1
        %vm3177 = vmand %vm3138, %vm3159
        %vm3178 = vmand %vm3139, %vm3159
        %vm3179 = vmand %vm3140, %vm3159
        %vm3180 = vmand %vm3138, %vm3160
        %vm3181 = vmand %vm3139, %vm3160
        %vm3182 = vmand %vm3140, %vm3160
        %vm3183 = vmand %vm3138, %vm3161
        %vm3184 = vmand %vm3139, %vm3161
        %vm3185 = vmand %vm3140, %vm3161
        %vm3186 = vmand %vm3138, %vm3162
        %vm3187 = vmand %vm3139, %vm3162
        %vm3188 = vmand %vm3140, %vm3162
        %vm3189 = vmand %vm3138, %vm3163
        %vm3190 = vmand %vm3139, %vm3163
        %vm3191 = vmand %vm3140, %vm3163
        %vm3192 = vmand %vm3138, %vm3164
        %vm3193 = vmand %vm3139, %vm3164
        %vm3194 = vmand %vm3140, %vm3164
        %vm3195 = vmand %vm3138, %vm3165
        %vm3196 = vmand %vm3139, %vm3165
        %vm3197 = vmand %vm3140, %vm3165
        %vm3198 = vmand %vm3138, %vm3166
        %vm3199 = vmand %vm3139, %vm3166
        %vm3200 = vmand %vm3140, %vm3166
        %vm3201 = vmand %vm3138, %vm3167
        %vm3202 = vmand %vm3139, %vm3167
        %vm3203 = vmand %vm3140, %vm3167
        %vm3204 = vmand %vm3138, %vm3168
        %vm3205 = vmand %vm3139, %vm3168
        %vm3206 = vmand %vm3140, %vm3168
        %vm3207 = vmand %vm3138, %vm3169
        %vm3208 = vmand %vm3139, %vm3169
        %vm3209 = vmand %vm3140, %vm3169
        %vm3210 = vmand %vm3138, %vm3170
        %vm3211 = vmand %vm3139, %vm3170
        %vm3212 = vmand %vm3140, %vm3170
        %vm3213 = vmand %vm3138, %vm3171
        %vm3214 = vmand %vm3139, %vm3171
        %vm3215 = vmand %vm3140, %vm3171
        %vm3216 = vmand %vm3138, %vm3172
        %vm3217 = vmand %vm3139, %vm3172
        %vm3218 = vmand %vm3140, %vm3172
        %vm3219 = vmand %vm3138, %vm3173
        %vm3220 = vmand %vm3139, %vm3173
        %vm3221 = vmand %vm3140, %vm3173
        %vm3222 = vmand %vm3138, %vm3174
        %vm3223 = vmand %vm3139, %vm3174
        %vm3224 = vmand %vm3140, %vm3174
        %vm3225 = vmand %vm3138, %vm3175
        %vm3226 = vmand %vm3139, %vm3175
        %vm3227 = vmand %vm3140, %vm3175
        %vm3228 = vmand %vm3138, %vm3176
        %vm3229 = vmand %vm3139, %vm3176
        %vm3230 = vmand %vm3140, %vm3176
        %vm3231 = vcmp.lt.s32.totalorder %v3090, 16
        %vm3232 = vcmp.lt.s32.totalorder %v3091, 16
        %vm3233 = vcmp.lt.s32.totalorder %v3092, 16
        %vm3234 = vcmp.lt.s32.totalorder %v3093, 16
        %vm3235 = vcmp.lt.s32.totalorder %v3094, 16
        %vm3236 = vcmp.lt.s32.totalorder %v3095, 16
        %vm3237 = vcmp.lt.s32.totalorder %v3096, 16
        %vm3238 = vcmp.lt.s32.totalorder %v3097, 16
        %vm3239 = vcmp.lt.s32.totalorder %v3098, 16
        %vm3240 = vcmp.lt.s32.totalorder %v3099, 16
        %vm3241 = vcmp.lt.s32.totalorder %v3100, 16
        %vm3242 = vcmp.lt.s32.totalorder %v3101, 16
        %vm3243 = vcmp.lt.s32.totalorder %v3102, 16
        %vm3244 = vcmp.lt.s32.totalorder %v3103, 16
        %vm3245 = vcmp.lt.s32.totalorder %v3104, 16
        %vm3246 = vcmp.lt.s32.totalorder %v3105, 16
        %vm3247 = vcmp.lt.s32.totalorder %v3106, 16
        %vm3248 = vcmp.lt.s32.totalorder %v3107, 16
        %v3249 = vsel %vm3231, 1, 0
        %v3250 = vsel %vm3232, 1, 0
        %v3251 = vsel %vm3233, 1, 0
        %v3252 = vsel %vm3234, 1, 0
        %v3253 = vsel %vm3235, 1, 0
        %v3254 = vsel %vm3236, 1, 0
        %v3255 = vsel %vm3237, 1, 0
        %v3256 = vsel %vm3238, 1, 0
        %v3257 = vsel %vm3239, 1, 0
        %v3258 = vsel %vm3240, 1, 0
        %v3259 = vsel %vm3241, 1, 0
        %v3260 = vsel %vm3242, 1, 0
        %v3261 = vsel %vm3243, 1, 0
        %v3262 = vsel %vm3244, 1, 0
        %v3263 = vsel %vm3245, 1, 0
        %v3264 = vsel %vm3246, 1, 0
        %v3265 = vsel %vm3247, 1, 0
        %v3266 = vsel %vm3248, 1, 0
        %vm3267 = vcmp.eq.s32.totalorder %v3249, 1
        %vm3268 = vcmp.eq.s32.totalorder %v3250, 1
        %vm3269 = vcmp.eq.s32.totalorder %v3251, 1
        %vm3270 = vcmp.eq.s32.totalorder %v3252, 1
        %vm3271 = vcmp.eq.s32.totalorder %v3253, 1
        %vm3272 = vcmp.eq.s32.totalorder %v3254, 1
        %vm3273 = vcmp.eq.s32.totalorder %v3255, 1
        %vm3274 = vcmp.eq.s32.totalorder %v3256, 1
        %vm3275 = vcmp.eq.s32.totalorder %v3257, 1
        %vm3276 = vcmp.eq.s32.totalorder %v3258, 1
        %vm3277 = vcmp.eq.s32.totalorder %v3259, 1
        %vm3278 = vcmp.eq.s32.totalorder %v3260, 1
        %vm3279 = vcmp.eq.s32.totalorder %v3261, 1
        %vm3280 = vcmp.eq.s32.totalorder %v3262, 1
        %vm3281 = vcmp.eq.s32.totalorder %v3263, 1
        %vm3282 = vcmp.eq.s32.totalorder %v3264, 1
        %vm3283 = vcmp.eq.s32.totalorder %v3265, 1
        %vm3284 = vcmp.eq.s32.totalorder %v3266, 1
        %vm3285 = vmand %vm3177, %vm3267
        %vm3286 = vmand %vm3178, %vm3267
        %vm3287 = vmand %vm3179, %vm3267
        %vm3288 = vmand %vm3180, %vm3268
        %vm3289 = vmand %vm3181, %vm3268
        %vm3290 = vmand %vm3182, %vm3268
        %vm3291 = vmand %vm3183, %vm3269
        %vm3292 = vmand %vm3184, %vm3269
        %vm3293 = vmand %vm3185, %vm3269
        %vm3294 = vmand %vm3186, %vm3270
        %vm3295 = vmand %vm3187, %vm3270
        %vm3296 = vmand %vm3188, %vm3270
        %vm3297 = vmand %vm3189, %vm3271
        %vm3298 = vmand %vm3190, %vm3271
        %vm3299 = vmand %vm3191, %vm3271
        %vm3300 = vmand %vm3192, %vm3272
        %vm3301 = vmand %vm3193, %vm3272
        %vm3302 = vmand %vm3194, %vm3272
        %vm3303 = vmand %vm3195, %vm3273
        %vm3304 = vmand %vm3196, %vm3273
        %vm3305 = vmand %vm3197, %vm3273
        %vm3306 = vmand %vm3198, %vm3274
        %vm3307 = vmand %vm3199, %vm3274
        %vm3308 = vmand %vm3200, %vm3274
        %vm3309 = vmand %vm3201, %vm3275
        %vm3310 = vmand %vm3202, %vm3275
        %vm3311 = vmand %vm3203, %vm3275
        %vm3312 = vmand %vm3204, %vm3276
        %vm3313 = vmand %vm3205, %vm3276
        %vm3314 = vmand %vm3206, %vm3276
        %vm3315 = vmand %vm3207, %vm3277
        %vm3316 = vmand %vm3208, %vm3277
        %vm3317 = vmand %vm3209, %vm3277
        %vm3318 = vmand %vm3210, %vm3278
        %vm3319 = vmand %vm3211, %vm3278
        %vm3320 = vmand %vm3212, %vm3278
        %vm3321 = vmand %vm3213, %vm3279
        %vm3322 = vmand %vm3214, %vm3279
        %vm3323 = vmand %vm3215, %vm3279
        %vm3324 = vmand %vm3216, %vm3280
        %vm3325 = vmand %vm3217, %vm3280
        %vm3326 = vmand %vm3218, %vm3280
        %vm3327 = vmand %vm3219, %vm3281
        %vm3328 = vmand %vm3220, %vm3281
        %vm3329 = vmand %vm3221, %vm3281
        %vm3330 = vmand %vm3222, %vm3282
        %vm3331 = vmand %vm3223, %vm3282
        %vm3332 = vmand %vm3224, %vm3282
        %vm3333 = vmand %vm3225, %vm3283
        %vm3334 = vmand %vm3226, %vm3283
        %vm3335 = vmand %vm3227, %vm3283
        %vm3336 = vmand %vm3228, %vm3284
        %vm3337 = vmand %vm3229, %vm3284
        %vm3338 = vmand %vm3230, %vm3284
        %v3339 = vsel %vm3285, 1, 0
        %v3340 = vsel %vm3286, 1, 0
        %v3341 = vsel %vm3287, 1, 0
        %v3342 = vsel %vm3288, 1, 0
        %v3343 = vsel %vm3289, 1, 0
        %v3344 = vsel %vm3290, 1, 0
        %v3345 = vsel %vm3291, 1, 0
        %v3346 = vsel %vm3292, 1, 0
        %v3347 = vsel %vm3293, 1, 0
        %v3348 = vsel %vm3294, 1, 0
        %v3349 = vsel %vm3295, 1, 0
        %v3350 = vsel %vm3296, 1, 0
        %v3351 = vsel %vm3297, 1, 0
        %v3352 = vsel %vm3298, 1, 0
        %v3353 = vsel %vm3299, 1, 0
        %v3354 = vsel %vm3300, 1, 0
        %v3355 = vsel %vm3301, 1, 0
        %v3356 = vsel %vm3302, 1, 0
        %v3357 = vsel %vm3303, 1, 0
        %v3358 = vsel %vm3304, 1, 0
        %v3359 = vsel %vm3305, 1, 0
        %v3360 = vsel %vm3306, 1, 0
        %v3361 = vsel %vm3307, 1, 0
        %v3362 = vsel %vm3308, 1, 0
        %v3363 = vsel %vm3309, 1, 0
        %v3364 = vsel %vm3310, 1, 0
        %v3365 = vsel %vm3311, 1, 0
        %v3366 = vsel %vm3312, 1, 0
        %v3367 = vsel %vm3313, 1, 0
        %v3368 = vsel %vm3314, 1, 0
        %v3369 = vsel %vm3315, 1, 0
        %v3370 = vsel %vm3316, 1, 0
        %v3371 = vsel %vm3317, 1, 0
        %v3372 = vsel %vm3318, 1, 0
        %v3373 = vsel %vm3319, 1, 0
        %v3374 = vsel %vm3320, 1, 0
        %v3375 = vsel %vm3321, 1, 0
        %v3376 = vsel %vm3322, 1, 0
        %v3377 = vsel %vm3323, 1, 0
        %v3378 = vsel %vm3324, 1, 0
        %v3379 = vsel %vm3325, 1, 0
        %v3380 = vsel %vm3326, 1, 0
        %v3381 = vsel %vm3327, 1, 0
        %v3382 = vsel %vm3328, 1, 0
        %v3383 = vsel %vm3329, 1, 0
        %v3384 = vsel %vm3330, 1, 0
        %v3385 = vsel %vm3331, 1, 0
        %v3386 = vsel %vm3332, 1, 0
        %v3387 = vsel %vm3333, 1, 0
        %v3388 = vsel %vm3334, 1, 0
        %v3389 = vsel %vm3335, 1, 0
        %v3390 = vsel %vm3336, 1, 0
        %v3391 = vsel %vm3337, 1, 0
        %v3392 = vsel %vm3338, 1, 0
        %vm3393 = vcmp.eq.s32.totalorder %v3339, 1
        %vm3394 = vcmp.eq.s32.totalorder %v3340, 1
        %vm3395 = vcmp.eq.s32.totalorder %v3341, 1
        %vm3396 = vcmp.eq.s32.totalorder %v3342, 1
        %vm3397 = vcmp.eq.s32.totalorder %v3343, 1
        %vm3398 = vcmp.eq.s32.totalorder %v3344, 1
        %vm3399 = vcmp.eq.s32.totalorder %v3345, 1
        %vm3400 = vcmp.eq.s32.totalorder %v3346, 1
        %vm3401 = vcmp.eq.s32.totalorder %v3347, 1
        %vm3402 = vcmp.eq.s32.totalorder %v3348, 1
        %vm3403 = vcmp.eq.s32.totalorder %v3349, 1
        %vm3404 = vcmp.eq.s32.totalorder %v3350, 1
        %vm3405 = vcmp.eq.s32.totalorder %v3351, 1
        %vm3406 = vcmp.eq.s32.totalorder %v3352, 1
        %vm3407 = vcmp.eq.s32.totalorder %v3353, 1
        %vm3408 = vcmp.eq.s32.totalorder %v3354, 1
        %vm3409 = vcmp.eq.s32.totalorder %v3355, 1
        %vm3410 = vcmp.eq.s32.totalorder %v3356, 1
        %vm3411 = vcmp.eq.s32.totalorder %v3357, 1
        %vm3412 = vcmp.eq.s32.totalorder %v3358, 1
        %vm3413 = vcmp.eq.s32.totalorder %v3359, 1
        %vm3414 = vcmp.eq.s32.totalorder %v3360, 1
        %vm3415 = vcmp.eq.s32.totalorder %v3361, 1
        %vm3416 = vcmp.eq.s32.totalorder %v3362, 1
        %vm3417 = vcmp.eq.s32.totalorder %v3363, 1
        %vm3418 = vcmp.eq.s32.totalorder %v3364, 1
        %vm3419 = vcmp.eq.s32.totalorder %v3365, 1
        %vm3420 = vcmp.eq.s32.totalorder %v3366, 1
        %vm3421 = vcmp.eq.s32.totalorder %v3367, 1
        %vm3422 = vcmp.eq.s32.totalorder %v3368, 1
        %vm3423 = vcmp.eq.s32.totalorder %v3369, 1
        %vm3424 = vcmp.eq.s32.totalorder %v3370, 1
        %vm3425 = vcmp.eq.s32.totalorder %v3371, 1
        %vm3426 = vcmp.eq.s32.totalorder %v3372, 1
        %vm3427 = vcmp.eq.s32.totalorder %v3373, 1
        %vm3428 = vcmp.eq.s32.totalorder %v3374, 1
        %vm3429 = vcmp.eq.s32.totalorder %v3375, 1
        %vm3430 = vcmp.eq.s32.totalorder %v3376, 1
        %vm3431 = vcmp.eq.s32.totalorder %v3377, 1
        %vm3432 = vcmp.eq.s32.totalorder %v3378, 1
        %vm3433 = vcmp.eq.s32.totalorder %v3379, 1
        %vm3434 = vcmp.eq.s32.totalorder %v3380, 1
        %vm3435 = vcmp.eq.s32.totalorder %v3381, 1
        %vm3436 = vcmp.eq.s32.totalorder %v3382, 1
        %vm3437 = vcmp.eq.s32.totalorder %v3383, 1
        %vm3438 = vcmp.eq.s32.totalorder %v3384, 1
        %vm3439 = vcmp.eq.s32.totalorder %v3385, 1
        %vm3440 = vcmp.eq.s32.totalorder %v3386, 1
        %vm3441 = vcmp.eq.s32.totalorder %v3387, 1
        %vm3442 = vcmp.eq.s32.totalorder %v3388, 1
        %vm3443 = vcmp.eq.s32.totalorder %v3389, 1
        %vm3444 = vcmp.eq.s32.totalorder %v3390, 1
        %vm3445 = vcmp.eq.s32.totalorder %v3391, 1
        %vm3446 = vcmp.eq.s32.totalorder %v3392, 1
        %v3447 = vsel %vm3393, %v3030, 0.0
        %v3448 = vsel %vm3394, %v3031, 0.0
        %v3449 = vsel %vm3395, %v3032, 0.0
        %v3450 = vsel %vm3396, %v3033, 0.0
        %v3451 = vsel %vm3397, %v3034, 0.0
        %v3452 = vsel %vm3398, %v3035, 0.0
        %v3453 = vsel %vm3399, %v3036, 0.0
        %v3454 = vsel %vm3400, %v3037, 0.0
        %v3455 = vsel %vm3401, %v3038, 0.0
        %v3456 = vsel %vm3402, %v3039, 0.0
        %v3457 = vsel %vm3403, %v3040, 0.0
        %v3458 = vsel %vm3404, %v3041, 0.0
        %v3459 = vsel %vm3405, %v3042, 0.0
        %v3460 = vsel %vm3406, %v3043, 0.0
        %v3461 = vsel %vm3407, %v3044, 0.0
        %v3462 = vsel %vm3408, %v3045, 0.0
        %v3463 = vsel %vm3409, %v3046, 0.0
        %v3464 = vsel %vm3410, %v3047, 0.0
        %v3465 = vsel %vm3411, %v3048, 0.0
        %v3466 = vsel %vm3412, %v3049, 0.0
        %v3467 = vsel %vm3413, %v3050, 0.0
        %v3468 = vsel %vm3414, %v3051, 0.0
        %v3469 = vsel %vm3415, %v3052, 0.0
        %v3470 = vsel %vm3416, %v3053, 0.0
        %v3471 = vsel %vm3417, %v3054, 0.0
        %v3472 = vsel %vm3418, %v3055, 0.0
        %v3473 = vsel %vm3419, %v3056, 0.0
        %v3474 = vsel %vm3420, %v3057, 0.0
        %v3475 = vsel %vm3421, %v3058, 0.0
        %v3476 = vsel %vm3422, %v3059, 0.0
        %v3477 = vsel %vm3423, %v3060, 0.0
        %v3478 = vsel %vm3424, %v3061, 0.0
        %v3479 = vsel %vm3425, %v3062, 0.0
        %v3480 = vsel %vm3426, %v3063, 0.0
        %v3481 = vsel %vm3427, %v3064, 0.0
        %v3482 = vsel %vm3428, %v3065, 0.0
        %v3483 = vsel %vm3429, %v3066, 0.0
        %v3484 = vsel %vm3430, %v3067, 0.0
        %v3485 = vsel %vm3431, %v3068, 0.0
        %v3486 = vsel %vm3432, %v3069, 0.0
        %v3487 = vsel %vm3433, %v3070, 0.0
        %v3488 = vsel %vm3434, %v3071, 0.0
        %v3489 = vsel %vm3435, %v3072, 0.0
        %v3490 = vsel %vm3436, %v3073, 0.0
        %v3491 = vsel %vm3437, %v3074, 0.0
        %v3492 = vsel %vm3438, %v3075, 0.0
        %v3493 = vsel %vm3439, %v3076, 0.0
        %v3494 = vsel %vm3440, %v3077, 0.0
        %v3495 = vsel %vm3441, %v3078, 0.0
        %v3496 = vsel %vm3442, %v3079, 0.0
        %v3497 = vsel %vm3443, %v3080, 0.0
        %v3498 = vsel %vm3444, %v3081, 0.0
        %v3499 = vsel %vm3445, %v3082, 0.0
        %v3500 = vsel %vm3446, %v3083, 0.0
        %v3555 = vrot.slane %v3447, 1
        %v3556 = vrot.slane %v3448, 1
        %v3557 = vsel %vm759, %v3555, %v3556
        %v3558 = vrot.slane %v3449, 1
        %v3559 = vsel %vm759, %v3556, %v3558
        %v3560 = vrot.slane %v3450, 1
        %v3561 = vrot.slane %v3451, 1
        %v3562 = vsel %vm759, %v3560, %v3561
        %v3563 = vrot.slane %v3452, 1
        %v3564 = vsel %vm759, %v3561, %v3563
        %v3565 = vrot.slane %v3453, 1
        %v3566 = vrot.slane %v3454, 1
        %v3567 = vsel %vm759, %v3565, %v3566
        %v3568 = vrot.slane %v3455, 1
        %v3569 = vsel %vm759, %v3566, %v3568
        %v3570 = vrot.slane %v3456, 1
        %v3571 = vrot.slane %v3457, 1
        %v3572 = vsel %vm759, %v3570, %v3571
        %v3573 = vrot.slane %v3458, 1
        %v3574 = vsel %vm759, %v3571, %v3573
        %v3575 = vrot.slane %v3459, 1
        %v3576 = vrot.slane %v3460, 1
        %v3577 = vsel %vm759, %v3575, %v3576
        %v3578 = vrot.slane %v3461, 1
        %v3579 = vsel %vm759, %v3576, %v3578
        %v3580 = vrot.slane %v3462, 1
        %v3581 = vrot.slane %v3463, 1
        %v3582 = vsel %vm759, %v3580, %v3581
        %v3583 = vrot.slane %v3464, 1
        %v3584 = vsel %vm759, %v3581, %v3583
        %v3585 = vrot.slane %v3465, 1
        %v3586 = vrot.slane %v3466, 1
        %v3587 = vsel %vm759, %v3585, %v3586
        %v3588 = vrot.slane %v3467, 1
        %v3589 = vsel %vm759, %v3586, %v3588
        %v3590 = vrot.slane %v3468, 1
        %v3591 = vrot.slane %v3469, 1
        %v3592 = vsel %vm759, %v3590, %v3591
        %v3593 = vrot.slane %v3470, 1
        %v3594 = vsel %vm759, %v3591, %v3593
        %v3595 = vrot.slane %v3471, 1
        %v3596 = vrot.slane %v3472, 1
        %v3597 = vsel %vm759, %v3595, %v3596
        %v3598 = vrot.slane %v3473, 1
        %v3599 = vsel %vm759, %v3596, %v3598
        %v3600 = vrot.slane %v3474, 1
        %v3601 = vrot.slane %v3475, 1
        %v3602 = vsel %vm759, %v3600, %v3601
        %v3603 = vrot.slane %v3476, 1
        %v3604 = vsel %vm759, %v3601, %v3603
        %v3605 = vrot.slane %v3477, 1
        %v3606 = vrot.slane %v3478, 1
        %v3607 = vsel %vm759, %v3605, %v3606
        %v3608 = vrot.slane %v3479, 1
        %v3609 = vsel %vm759, %v3606, %v3608
        %v3610 = vrot.slane %v3480, 1
        %v3611 = vrot.slane %v3481, 1
        %v3612 = vsel %vm759, %v3610, %v3611
        %v3613 = vrot.slane %v3482, 1
        %v3614 = vsel %vm759, %v3611, %v3613
        %v3615 = vrot.slane %v3483, 1
        %v3616 = vrot.slane %v3484, 1
        %v3617 = vsel %vm759, %v3615, %v3616
        %v3618 = vrot.slane %v3485, 1
        %v3619 = vsel %vm759, %v3616, %v3618
        %v3620 = vrot.slane %v3486, 1
        %v3621 = vrot.slane %v3487, 1
        %v3622 = vsel %vm759, %v3620, %v3621
        %v3623 = vrot.slane %v3488, 1
        %v3624 = vsel %vm759, %v3621, %v3623
        %v3625 = vrot.slane %v3489, 1
        %v3626 = vrot.slane %v3490, 1
        %v3627 = vsel %vm759, %v3625, %v3626
        %v3628 = vrot.slane %v3491, 1
        %v3629 = vsel %vm759, %v3626, %v3628
        %v3630 = vrot.slane %v3492, 1
        %v3631 = vrot.slane %v3493, 1
        %v3632 = vsel %vm759, %v3630, %v3631
        %v3633 = vrot.slane %v3494, 1
        %v3634 = vsel %vm759, %v3631, %v3633
        %v3635 = vrot.slane %v3495, 1
        %v3636 = vrot.slane %v3496, 1
        %v3637 = vsel %vm759, %v3635, %v3636
        %v3638 = vrot.slane %v3497, 1
        %v3639 = vsel %vm759, %v3636, %v3638
        %v3640 = vrot.slane %v3498, 1
        %v3641 = vrot.slane %v3499, 1
        %v3642 = vsel %vm759, %v3640, %v3641
        %v3643 = vrot.slane %v3500, 1
        %v3644 = vsel %vm759, %v3641, %v3643
        %v3681 = vrot.slane %v3447, 2
        %v3682 = vrot.slane %v3448, 2
        %v3683 = vsel %vm960, %v3681, %v3682
        %v3684 = vrot.slane %v3449, 2
        %v3685 = vsel %vm960, %v3682, %v3684
        %v3686 = vrot.slane %v3450, 2
        %v3687 = vrot.slane %v3451, 2
        %v3688 = vsel %vm960, %v3686, %v3687
        %v3689 = vrot.slane %v3452, 2
        %v3690 = vsel %vm960, %v3687, %v3689
        %v3691 = vrot.slane %v3453, 2
        %v3692 = vrot.slane %v3454, 2
        %v3693 = vsel %vm960, %v3691, %v3692
        %v3694 = vrot.slane %v3455, 2
        %v3695 = vsel %vm960, %v3692, %v3694
        %v3696 = vrot.slane %v3456, 2
        %v3697 = vrot.slane %v3457, 2
        %v3698 = vsel %vm960, %v3696, %v3697
        %v3699 = vrot.slane %v3458, 2
        %v3700 = vsel %vm960, %v3697, %v3699
        %v3701 = vrot.slane %v3459, 2
        %v3702 = vrot.slane %v3460, 2
        %v3703 = vsel %vm960, %v3701, %v3702
        %v3704 = vrot.slane %v3461, 2
        %v3705 = vsel %vm960, %v3702, %v3704
        %v3706 = vrot.slane %v3462, 2
        %v3707 = vrot.slane %v3463, 2
        %v3708 = vsel %vm960, %v3706, %v3707
        %v3709 = vrot.slane %v3464, 2
        %v3710 = vsel %vm960, %v3707, %v3709
        %v3711 = vrot.slane %v3465, 2
        %v3712 = vrot.slane %v3466, 2
        %v3713 = vsel %vm960, %v3711, %v3712
        %v3714 = vrot.slane %v3467, 2
        %v3715 = vsel %vm960, %v3712, %v3714
        %v3716 = vrot.slane %v3468, 2
        %v3717 = vrot.slane %v3469, 2
        %v3718 = vsel %vm960, %v3716, %v3717
        %v3719 = vrot.slane %v3470, 2
        %v3720 = vsel %vm960, %v3717, %v3719
        %v3721 = vrot.slane %v3471, 2
        %v3722 = vrot.slane %v3472, 2
        %v3723 = vsel %vm960, %v3721, %v3722
        %v3724 = vrot.slane %v3473, 2
        %v3725 = vsel %vm960, %v3722, %v3724
        %v3726 = vrot.slane %v3474, 2
        %v3727 = vrot.slane %v3475, 2
        %v3728 = vsel %vm960, %v3726, %v3727
        %v3729 = vrot.slane %v3476, 2
        %v3730 = vsel %vm960, %v3727, %v3729
        %v3731 = vrot.slane %v3477, 2
        %v3732 = vrot.slane %v3478, 2
        %v3733 = vsel %vm960, %v3731, %v3732
        %v3734 = vrot.slane %v3479, 2
        %v3735 = vsel %vm960, %v3732, %v3734
        %v3736 = vrot.slane %v3480, 2
        %v3737 = vrot.slane %v3481, 2
        %v3738 = vsel %vm960, %v3736, %v3737
        %v3739 = vrot.slane %v3482, 2
        %v3740 = vsel %vm960, %v3737, %v3739
        %v3741 = vrot.slane %v3483, 2
        %v3742 = vrot.slane %v3484, 2
        %v3743 = vsel %vm960, %v3741, %v3742
        %v3744 = vrot.slane %v3485, 2
        %v3745 = vsel %vm960, %v3742, %v3744
        %v3746 = vrot.slane %v3486, 2
        %v3747 = vrot.slane %v3487, 2
        %v3748 = vsel %vm960, %v3746, %v3747
        %v3749 = vrot.slane %v3488, 2
        %v3750 = vsel %vm960, %v3747, %v3749
        %v3751 = vrot.slane %v3489, 2
        %v3752 = vrot.slane %v3490, 2
        %v3753 = vsel %vm960, %v3751, %v3752
        %v3754 = vrot.slane %v3491, 2
        %v3755 = vsel %vm960, %v3752, %v3754
        %v3756 = vrot.slane %v3492, 2
        %v3757 = vrot.slane %v3493, 2
        %v3758 = vsel %vm960, %v3756, %v3757
        %v3759 = vrot.slane %v3494, 2
        %v3760 = vsel %vm960, %v3757, %v3759
        %v3761 = vrot.slane %v3495, 2
        %v3762 = vrot.slane %v3496, 2
        %v3763 = vsel %vm960, %v3761, %v3762
        %v3764 = vrot.slane %v3497, 2
        %v3765 = vsel %vm960, %v3762, %v3764
        %v3766 = vrot.slane %v3498, 2
        %v3767 = vrot.slane %v3499, 2
        %v3768 = vsel %vm960, %v3766, %v3767
        %v3769 = vrot.slane %v3500, 2
        %v3770 = vsel %vm960, %v3767, %v3769
        %v3807 = vld [vmem:[%s3] sm:$0xff]
        %v3808 = vld [vmem:[%s3 + $0x8] sm:$0xff]
        %v3809 = vld [vmem:[%s3 + $0x10] sm:$0xff]
        %v3810 = vld [vmem:[%s3 + $0x18] sm:$0xff]
        %v3811 = vld [vmem:[%s3 + $0x20] sm:$0xff]
        %v3812 = vld [vmem:[%s3 + $0x28] sm:$0xff]
        %v3813 = vld [vmem:[%s3 + $0x30] sm:$0xff]
        %v3814 = vld [vmem:[%s3 + $0x38] sm:$0xff]
        %v3815 = vld [vmem:[%s3 + $0x40] sm:$0xff]
        %v3816 = vld [vmem:[%s3 + $0x48] sm:$0xff]
        %v3817 = vld [vmem:[%s3 + $0x50] sm:$0xff]
        %v3818 = vld [vmem:[%s3 + $0x58] sm:$0xff]
        %v3819 = vld [vmem:[%s3 + $0x60] sm:$0xff]
        %v3820 = vld [vmem:[%s3 + $0x68] sm:$0xff]
        %v3821 = vld [vmem:[%s3 + $0x70] sm:$0xff]
        %v3822 = vld [vmem:[%s3 + $0x78] sm:$0xff]
        %v3823 = vld [vmem:[%s3 + $0x80] sm:$0xff]
        %v3824 = vld [vmem:[%s3 + $0x88] sm:$0xff]
        %v3825 = vld [vmem:[%s3 + $0x90] sm:$0xff]
        %v3826 = vld [vmem:[%s3 + $0x98] sm:$0xff]
        %v3827 = vld [vmem:[%s3 + $0xa0] sm:$0xff]
        %v3828 = vld [vmem:[%s3 + $0xa8] sm:$0xff]
        %v3829 = vld [vmem:[%s3 + $0xb0] sm:$0xff]
        %v3830 = vld [vmem:[%s3 + $0xb8] sm:$0xff]
        %v3831 = vld [vmem:[%s3 + $0xc0] sm:$0xff]
        %v3832 = vld [vmem:[%s3 + $0xc8] sm:$0xff]
        %v3833 = vld [vmem:[%s3 + $0xd0] sm:$0xff]
        %v3834 = vld [vmem:[%s3 + $0xd8] sm:$0xff]
        %v3835 = vld [vmem:[%s3 + $0xe0] sm:$0xff]
        %v3836 = vld [vmem:[%s3 + $0xe8] sm:$0xff]
        %v3837 = vld [vmem:[%s3 + $0xf0] sm:$0xff]
        %v3838 = vld [vmem:[%s3 + $0xf8] sm:$0xff]
        %v3839 = vld [vmem:[%s3 + $0x100] sm:$0xff]
        %v3840 = vld [vmem:[%s3 + $0x108] sm:$0xff]
        %v3841 = vld [vmem:[%s3 + $0x110] sm:$0xff]
        %v3842 = vld [vmem:[%s3 + $0x118] sm:$0xff]
        %v3843 = vld [vmem:[%s3 + $0x120] sm:$0xff]
        %v3844 = vld [vmem:[%s3 + $0x128] sm:$0xff]
        %v3845 = vld [vmem:[%s3 + $0x130] sm:$0xff]
        %v3846 = vld [vmem:[%s3 + $0x138] sm:$0xff]
        %v3847 = vld [vmem:[%s3 + $0x140] sm:$0xff]
        %v3848 = vld [vmem:[%s3 + $0x148] sm:$0xff]
        %v3849 = vld [vmem:[%s3 + $0x150] sm:$0xff]
        %v3850 = vld [vmem:[%s3 + $0x158] sm:$0xff]
        %v3851 = vld [vmem:[%s3 + $0x160] sm:$0xff]
        %v3852 = vld [vmem:[%s3 + $0x168] sm:$0xff]
        %v3853 = vld [vmem:[%s3 + $0x170] sm:$0xff]
        %v3854 = vld [vmem:[%s3 + $0x178] sm:$0xff]
        %s3855 = scalar_lea.vmem %s3, 384
        %v3856 = vld [vmem:[%s3855] sm:$0xff]
        %v3857 = vld [vmem:[%s3855 + $0x8] sm:$0xff]
        %v3858 = vld [vmem:[%s3855 + $0x10] sm:$0xff]
        %v3859 = vld [vmem:[%s3855 + $0x18] sm:$0xff]
        %v3860 = vld [vmem:[%s3855 + $0x20] sm:$0xff]
        %v3861 = vld [vmem:[%s3855 + $0x28] sm:$0xff]
        %v3862 = vld [vmem:[%s3855 + $0x30] sm:$0xff]
        %v3863 = vld [vmem:[%s3855 + $0x38] sm:$0xff]
        %v3864 = vld [vmem:[%s3855 + $0x40] sm:$0xff]
        %v3865 = vld [vmem:[%s3855 + $0x48] sm:$0xff]
        %v3866 = vld [vmem:[%s3855 + $0x50] sm:$0xff]
        %v3867 = vld [vmem:[%s3855 + $0x58] sm:$0xff]
        %v3868 = vld [vmem:[%s3855 + $0x60] sm:$0xff]
        %v3869 = vld [vmem:[%s3855 + $0x68] sm:$0xff]
        %v3870 = vld [vmem:[%s3855 + $0x70] sm:$0xff]
        %v3871 = vld [vmem:[%s3855 + $0x78] sm:$0xff]
        %v3872 = vld [vmem:[%s3855 + $0x80] sm:$0xff]
        %v3873 = vld [vmem:[%s3855 + $0x88] sm:$0xff]
        %v3874 = vld [vmem:[%s3855 + $0x90] sm:$0xff]
        %v3875 = vld [vmem:[%s3855 + $0x98] sm:$0xff]
        %v3876 = vld [vmem:[%s3855 + $0xa0] sm:$0xff]
        %v3877 = vld [vmem:[%s3855 + $0xa8] sm:$0xff]
        %v3878 = vld [vmem:[%s3855 + $0xb0] sm:$0xff]
        %v3879 = vld [vmem:[%s3855 + $0xb8] sm:$0xff]
        %v3880 = vld [vmem:[%s3855 + $0xc0] sm:$0xff]
        %v3881 = vld [vmem:[%s3855 + $0xc8] sm:$0xff]
        %v3882 = vld [vmem:[%s3855 + $0xd0] sm:$0xff]
        %v3883 = vld [vmem:[%s3855 + $0xd8] sm:$0xff]
        %v3884 = vld [vmem:[%s3855 + $0xe0] sm:$0xff]
        %v3885 = vld [vmem:[%s3855 + $0xe8] sm:$0xff]
        %v3886 = vld [vmem:[%s3855 + $0xf0] sm:$0xff]
        %v3887 = vld [vmem:[%s3855 + $0xf8] sm:$0xff]
        %v3888 = vld [vmem:[%s3855 + $0x100] sm:$0xff]
        %v3889 = vld [vmem:[%s3855 + $0x108] sm:$0xff]
        %v3890 = vld [vmem:[%s3855 + $0x110] sm:$0xff]
        %v3891 = vld [vmem:[%s3855 + $0x118] sm:$0xff]
        %v3892 = vld [vmem:[%s3855 + $0x120] sm:$0xff]
        %v3893 = vld [vmem:[%s3855 + $0x128] sm:$0xff]
        %v3894 = vld [vmem:[%s3855 + $0x130] sm:$0xff]
        %v3895 = vld [vmem:[%s3855 + $0x138] sm:$0xff]
        %v3896 = vld [vmem:[%s3855 + $0x140] sm:$0xff]
        %v3897 = vld [vmem:[%s3855 + $0x148] sm:$0xff]
        %v3898 = vld [vmem:[%s3855 + $0x150] sm:$0xff]
        %v3899 = vld [vmem:[%s3855 + $0x158] sm:$0xff]
        %v3900 = vld [vmem:[%s3855 + $0x160] sm:$0xff]
        %v3901 = vld [vmem:[%s3855 + $0x168] sm:$0xff]
        %v3902 = vld [vmem:[%s3855 + $0x170] sm:$0xff]
        %v3903 = vld [vmem:[%s3855 + $0x178] sm:$0xff]
        %3904 = vmatpush.msra.mxu0 %v3871
        %3905 = vmatpush.msra.mxu0 %v3870
        %3906 = vmatpush.msra.mxu0 %v3869
        %3907 = vmatpush.msra.mxu0 %v3868
        %3908 = vmatpush.msra.mxu0 %v3867
        %3909 = vmatpush.msra.mxu0 %v3866
        %3910 = vmatpush.msra.mxu0 %v3865
        %3911 = vmatpush.msra.mxu0 %v3864
        %3912 = vmatpush.msra.mxu0 %v3863
        %3913 = vmatpush.msra.mxu0 %v3862
        %3914 = vmatpush.msra.mxu0 %v3861
        %3915 = vmatpush.msra.mxu0 %v3860
        %3916 = vmatpush.msra.mxu0 %v3859
        %3917 = vmatpush.msra.mxu0 %v3858
        %3918 = vmatpush.msra.mxu0 %v3857
        %3919 = vmatpush.msra.mxu0 %v3856
        %3920 = vmatmul.f32.gmra.mxu0 %v3450
        %v3921 = vpop.f32.mrf.mxu0
        %v3922 = vadd.f32 0.0, %v3921
        %3923 = vmatmul.f32.gmra.mxu0 %v3451
        %v3924 = vpop.f32.mrf.mxu0
        %v3925 = vadd.f32 0.0, %v3924
        %3926 = vmatmul.f32.gmra.mxu0 %v3453
        %v3927 = vpop.f32.mrf.mxu0
        %v3928 = vadd.f32 0.0, %v3927
        %3929 = vmatmul.f32.gmra.mxu0 %v3454
        %v3930 = vpop.f32.mrf.mxu0
        %v3931 = vadd.f32 0.0, %v3930
        %3932 = vmatmul.f32.gmra.mxu0 %v3456
        %v3933 = vpop.f32.mrf.mxu0
        %v3934 = vadd.f32 0.0, %v3933
        %3935 = vmatmul.f32.gmra.mxu0 %v3457
        %v3936 = vpop.f32.mrf.mxu0
        %v3937 = vadd.f32 0.0, %v3936
        %3938 = vmatmul.f32.gmra.mxu0 %v3459
        %v3939 = vpop.f32.mrf.mxu0
        %v3940 = vadd.f32 0.0, %v3939
        %3941 = vmatmul.f32.gmra.mxu0 %v3460
        %v3942 = vpop.f32.mrf.mxu0
        %v3943 = vadd.f32 0.0, %v3942
        %3944 = vmatmul.f32.gmra.mxu0 %v3462
        %v3945 = vpop.f32.mrf.mxu0
        %v3946 = vadd.f32 0.0, %v3945
        %3947 = vmatmul.f32.gmra.mxu0 %v3463
        %v3948 = vpop.f32.mrf.mxu0
        %v3949 = vadd.f32 0.0, %v3948
        %3950 = vmatmul.f32.gmra.mxu0 %v3465
        %v3951 = vpop.f32.mrf.mxu0
        %v3952 = vadd.f32 0.0, %v3951
        %3953 = vmatmul.f32.gmra.mxu0 %v3466
        %v3954 = vpop.f32.mrf.mxu0
        %v3955 = vadd.f32 0.0, %v3954
        %3956 = vmatmul.f32.gmra.mxu0 %v3468
        %v3957 = vpop.f32.mrf.mxu0
        %v3958 = vadd.f32 0.0, %v3957
        %3959 = vmatmul.f32.gmra.mxu0 %v3469
        %v3960 = vpop.f32.mrf.mxu0
        %v3961 = vadd.f32 0.0, %v3960
        %3962 = vmatmul.f32.gmra.mxu0 %v3471
        %v3963 = vpop.f32.mrf.mxu0
        %v3964 = vadd.f32 0.0, %v3963
        %3965 = vmatmul.f32.gmra.mxu0 %v3472
        %v3966 = vpop.f32.mrf.mxu0
        %v3967 = vadd.f32 0.0, %v3966
        %3968 = vmatmul.f32.gmra.mxu0 %v3474
        %v3969 = vpop.f32.mrf.mxu0
        %v3970 = vadd.f32 0.0, %v3969
        %3971 = vmatmul.f32.gmra.mxu0 %v3475
        %v3972 = vpop.f32.mrf.mxu0
        %v3973 = vadd.f32 0.0, %v3972
        %3974 = vmatmul.f32.gmra.mxu0 %v3477
        %v3975 = vpop.f32.mrf.mxu0
        %v3976 = vadd.f32 0.0, %v3975
        %3977 = vmatmul.f32.gmra.mxu0 %v3478
        %v3978 = vpop.f32.mrf.mxu0
        %v3979 = vadd.f32 0.0, %v3978
        %3980 = vmatmul.f32.gmra.mxu0 %v3480
        %v3981 = vpop.f32.mrf.mxu0
        %v3982 = vadd.f32 0.0, %v3981
        %3983 = vmatmul.f32.gmra.mxu0 %v3481
        %v3984 = vpop.f32.mrf.mxu0
        %v3985 = vadd.f32 0.0, %v3984
        %3986 = vmatmul.f32.gmra.mxu0 %v3483
        %v3987 = vpop.f32.mrf.mxu0
        %v3988 = vadd.f32 0.0, %v3987
        %3989 = vmatmul.f32.gmra.mxu0 %v3484
        %v3990 = vpop.f32.mrf.mxu0
        %v3991 = vadd.f32 0.0, %v3990
        %3992 = vmatmul.f32.gmra.mxu0 %v3486
        %v3993 = vpop.f32.mrf.mxu0
        %v3994 = vadd.f32 0.0, %v3993
        %3995 = vmatmul.f32.gmra.mxu0 %v3487
        %v3996 = vpop.f32.mrf.mxu0
        %v3997 = vadd.f32 0.0, %v3996
        %3998 = vmatmul.f32.gmra.mxu0 %v3489
        %v3999 = vpop.f32.mrf.mxu0
        %v4000 = vadd.f32 0.0, %v3999
        %4001 = vmatmul.f32.gmra.mxu0 %v3490
        %v4002 = vpop.f32.mrf.mxu0
        %v4003 = vadd.f32 0.0, %v4002
        %4004 = vmatmul.f32.gmra.mxu0 %v3492
        %v4005 = vpop.f32.mrf.mxu0
        %v4006 = vadd.f32 0.0, %v4005
        %4007 = vmatmul.f32.gmra.mxu0 %v3493
        %v4008 = vpop.f32.mrf.mxu0
        %v4009 = vadd.f32 0.0, %v4008
        %4010 = vmatmul.f32.gmra.mxu0 %v3495
        %v4011 = vpop.f32.mrf.mxu0
        %v4012 = vadd.f32 0.0, %v4011
        %4013 = vmatmul.f32.gmra.mxu0 %v3496
        %v4014 = vpop.f32.mrf.mxu0
        %v4015 = vadd.f32 0.0, %v4014
        %4016 = vdwg.mxu0
        %4017 = vmatpush.msra.mxu0 %v3887
        %4018 = vmatpush.msra.mxu0 %v3886
        %4019 = vmatpush.msra.mxu0 %v3885
        %4020 = vmatpush.msra.mxu0 %v3884
        %4021 = vmatpush.msra.mxu0 %v3883
        %4022 = vmatpush.msra.mxu0 %v3882
        %4023 = vmatpush.msra.mxu0 %v3881
        %4024 = vmatpush.msra.mxu0 %v3880
        %4025 = vmatpush.msra.mxu0 %v3879
        %4026 = vmatpush.msra.mxu0 %v3878
        %4027 = vmatpush.msra.mxu0 %v3877
        %4028 = vmatpush.msra.mxu0 %v3876
        %4029 = vmatpush.msra.mxu0 %v3875
        %4030 = vmatpush.msra.mxu0 %v3874
        %4031 = vmatpush.msra.mxu0 %v3873
        %4032 = vmatpush.msra.mxu0 %v3872
        %4033 = vmatmul.f32.gmra.mxu0 %v3562
        %v4034 = vpop.f32.mrf.mxu0
        %v4035 = vadd.f32 %v3922, %v4034
        %4036 = vmatmul.f32.gmra.mxu0 %v3564
        %v4037 = vpop.f32.mrf.mxu0
        %v4038 = vadd.f32 %v3925, %v4037
        %4039 = vmatmul.f32.gmra.mxu0 %v3567
        %v4040 = vpop.f32.mrf.mxu0
        %v4041 = vadd.f32 %v3928, %v4040
        %4042 = vmatmul.f32.gmra.mxu0 %v3569
        %v4043 = vpop.f32.mrf.mxu0
        %v4044 = vadd.f32 %v3931, %v4043
        %4045 = vmatmul.f32.gmra.mxu0 %v3572
        %v4046 = vpop.f32.mrf.mxu0
        %v4047 = vadd.f32 %v3934, %v4046
        %4048 = vmatmul.f32.gmra.mxu0 %v3574
        %v4049 = vpop.f32.mrf.mxu0
        %v4050 = vadd.f32 %v3937, %v4049
        %4051 = vmatmul.f32.gmra.mxu0 %v3577
        %v4052 = vpop.f32.mrf.mxu0
        %v4053 = vadd.f32 %v3940, %v4052
        %4054 = vmatmul.f32.gmra.mxu0 %v3579
        %v4055 = vpop.f32.mrf.mxu0
        %v4056 = vadd.f32 %v3943, %v4055
        %4057 = vmatmul.f32.gmra.mxu0 %v3582
        %v4058 = vpop.f32.mrf.mxu0
        %v4059 = vadd.f32 %v3946, %v4058
        %4060 = vmatmul.f32.gmra.mxu0 %v3584
        %v4061 = vpop.f32.mrf.mxu0
        %v4062 = vadd.f32 %v3949, %v4061
        %4063 = vmatmul.f32.gmra.mxu0 %v3587
        %v4064 = vpop.f32.mrf.mxu0
        %v4065 = vadd.f32 %v3952, %v4064
        %4066 = vmatmul.f32.gmra.mxu0 %v3589
        %v4067 = vpop.f32.mrf.mxu0
        %v4068 = vadd.f32 %v3955, %v4067
        %4069 = vmatmul.f32.gmra.mxu0 %v3592
        %v4070 = vpop.f32.mrf.mxu0
        %v4071 = vadd.f32 %v3958, %v4070
        %4072 = vmatmul.f32.gmra.mxu0 %v3594
        %v4073 = vpop.f32.mrf.mxu0
        %v4074 = vadd.f32 %v3961, %v4073
        %4075 = vmatmul.f32.gmra.mxu0 %v3597
        %v4076 = vpop.f32.mrf.mxu0
        %v4077 = vadd.f32 %v3964, %v4076
        %4078 = vmatmul.f32.gmra.mxu0 %v3599
        %v4079 = vpop.f32.mrf.mxu0
        %v4080 = vadd.f32 %v3967, %v4079
        %4081 = vmatmul.f32.gmra.mxu0 %v3602
        %v4082 = vpop.f32.mrf.mxu0
        %v4083 = vadd.f32 %v3970, %v4082
        %4084 = vmatmul.f32.gmra.mxu0 %v3604
        %v4085 = vpop.f32.mrf.mxu0
        %v4086 = vadd.f32 %v3973, %v4085
        %4087 = vmatmul.f32.gmra.mxu0 %v3607
        %v4088 = vpop.f32.mrf.mxu0
        %v4089 = vadd.f32 %v3976, %v4088
        %4090 = vmatmul.f32.gmra.mxu0 %v3609
        %v4091 = vpop.f32.mrf.mxu0
        %v4092 = vadd.f32 %v3979, %v4091
        %4093 = vmatmul.f32.gmra.mxu0 %v3612
        %v4094 = vpop.f32.mrf.mxu0
        %v4095 = vadd.f32 %v3982, %v4094
        %4096 = vmatmul.f32.gmra.mxu0 %v3614
        %v4097 = vpop.f32.mrf.mxu0
        %v4098 = vadd.f32 %v3985, %v4097
        %4099 = vmatmul.f32.gmra.mxu0 %v3617
        %v4100 = vpop.f32.mrf.mxu0
        %v4101 = vadd.f32 %v3988, %v4100
        %4102 = vmatmul.f32.gmra.mxu0 %v3619
        %v4103 = vpop.f32.mrf.mxu0
        %v4104 = vadd.f32 %v3991, %v4103
        %4105 = vmatmul.f32.gmra.mxu0 %v3622
        %v4106 = vpop.f32.mrf.mxu0
        %v4107 = vadd.f32 %v3994, %v4106
        %4108 = vmatmul.f32.gmra.mxu0 %v3624
        %v4109 = vpop.f32.mrf.mxu0
        %v4110 = vadd.f32 %v3997, %v4109
        %4111 = vmatmul.f32.gmra.mxu0 %v3627
        %v4112 = vpop.f32.mrf.mxu0
        %v4113 = vadd.f32 %v4000, %v4112
        %4114 = vmatmul.f32.gmra.mxu0 %v3629
        %v4115 = vpop.f32.mrf.mxu0
        %v4116 = vadd.f32 %v4003, %v4115
        %4117 = vmatmul.f32.gmra.mxu0 %v3632
        %v4118 = vpop.f32.mrf.mxu0
        %v4119 = vadd.f32 %v4006, %v4118
        %4120 = vmatmul.f32.gmra.mxu0 %v3634
        %v4121 = vpop.f32.mrf.mxu0
        %v4122 = vadd.f32 %v4009, %v4121
        %4123 = vmatmul.f32.gmra.mxu0 %v3637
        %v4124 = vpop.f32.mrf.mxu0
        %v4125 = vadd.f32 %v4012, %v4124
        %4126 = vmatmul.f32.gmra.mxu0 %v3639
        %v4127 = vpop.f32.mrf.mxu0
        %v4128 = vadd.f32 %v4015, %v4127
        %4129 = vdwg.mxu0
        %4130 = vmatpush.msra.mxu0 %v3903
        %4131 = vmatpush.msra.mxu0 %v3902
        %4132 = vmatpush.msra.mxu0 %v3901
        %4133 = vmatpush.msra.mxu0 %v3900
        %4134 = vmatpush.msra.mxu0 %v3899
        %4135 = vmatpush.msra.mxu0 %v3898
        %4136 = vmatpush.msra.mxu0 %v3897
        %4137 = vmatpush.msra.mxu0 %v3896
        %4138 = vmatpush.msra.mxu0 %v3895
        %4139 = vmatpush.msra.mxu0 %v3894
        %4140 = vmatpush.msra.mxu0 %v3893
        %4141 = vmatpush.msra.mxu0 %v3892
        %4142 = vmatpush.msra.mxu0 %v3891
        %4143 = vmatpush.msra.mxu0 %v3890
        %4144 = vmatpush.msra.mxu0 %v3889
        %4145 = vmatpush.msra.mxu0 %v3888
        %4146 = vmatmul.f32.gmra.mxu0 %v3688
        %v4147 = vpop.f32.mrf.mxu0
        %v4148 = vadd.f32 %v4035, %v4147
        %4149 = vmatmul.f32.gmra.mxu0 %v3690
        %v4150 = vpop.f32.mrf.mxu0
        %v4151 = vadd.f32 %v4038, %v4150
        %4152 = vmatmul.f32.gmra.mxu0 %v3693
        %v4153 = vpop.f32.mrf.mxu0
        %v4154 = vadd.f32 %v4041, %v4153
        %4155 = vmatmul.f32.gmra.mxu0 %v3695
        %v4156 = vpop.f32.mrf.mxu0
        %v4157 = vadd.f32 %v4044, %v4156
        %4158 = vmatmul.f32.gmra.mxu0 %v3698
        %v4159 = vpop.f32.mrf.mxu0
        %v4160 = vadd.f32 %v4047, %v4159
        %4161 = vmatmul.f32.gmra.mxu0 %v3700
        %v4162 = vpop.f32.mrf.mxu0
        %v4163 = vadd.f32 %v4050, %v4162
        %4164 = vmatmul.f32.gmra.mxu0 %v3703
        %v4165 = vpop.f32.mrf.mxu0
        %v4166 = vadd.f32 %v4053, %v4165
        %4167 = vmatmul.f32.gmra.mxu0 %v3705
        %v4168 = vpop.f32.mrf.mxu0
        %v4169 = vadd.f32 %v4056, %v4168
        %4170 = vmatmul.f32.gmra.mxu0 %v3708
        %v4171 = vpop.f32.mrf.mxu0
        %v4172 = vadd.f32 %v4059, %v4171
        %4173 = vmatmul.f32.gmra.mxu0 %v3710
        %v4174 = vpop.f32.mrf.mxu0
        %v4175 = vadd.f32 %v4062, %v4174
        %4176 = vmatmul.f32.gmra.mxu0 %v3713
        %v4177 = vpop.f32.mrf.mxu0
        %v4178 = vadd.f32 %v4065, %v4177
        %4179 = vmatmul.f32.gmra.mxu0 %v3715
        %v4180 = vpop.f32.mrf.mxu0
        %v4181 = vadd.f32 %v4068, %v4180
        %4182 = vmatmul.f32.gmra.mxu0 %v3718
        %v4183 = vpop.f32.mrf.mxu0
        %v4184 = vadd.f32 %v4071, %v4183
        %4185 = vmatmul.f32.gmra.mxu0 %v3720
        %v4186 = vpop.f32.mrf.mxu0
        %v4187 = vadd.f32 %v4074, %v4186
        %4188 = vmatmul.f32.gmra.mxu0 %v3723
        %v4189 = vpop.f32.mrf.mxu0
        %v4190 = vadd.f32 %v4077, %v4189
        %4191 = vmatmul.f32.gmra.mxu0 %v3725
        %v4192 = vpop.f32.mrf.mxu0
        %v4193 = vadd.f32 %v4080, %v4192
        %4194 = vmatmul.f32.gmra.mxu0 %v3728
        %v4195 = vpop.f32.mrf.mxu0
        %v4196 = vadd.f32 %v4083, %v4195
        %4197 = vmatmul.f32.gmra.mxu0 %v3730
        %v4198 = vpop.f32.mrf.mxu0
        %v4199 = vadd.f32 %v4086, %v4198
        %4200 = vmatmul.f32.gmra.mxu0 %v3733
        %v4201 = vpop.f32.mrf.mxu0
        %v4202 = vadd.f32 %v4089, %v4201
        %4203 = vmatmul.f32.gmra.mxu0 %v3735
        %v4204 = vpop.f32.mrf.mxu0
        %v4205 = vadd.f32 %v4092, %v4204
        %4206 = vmatmul.f32.gmra.mxu0 %v3738
        %v4207 = vpop.f32.mrf.mxu0
        %v4208 = vadd.f32 %v4095, %v4207
        %4209 = vmatmul.f32.gmra.mxu0 %v3740
        %v4210 = vpop.f32.mrf.mxu0
        %v4211 = vadd.f32 %v4098, %v4210
        %4212 = vmatmul.f32.gmra.mxu0 %v3743
        %v4213 = vpop.f32.mrf.mxu0
        %v4214 = vadd.f32 %v4101, %v4213
        %4215 = vmatmul.f32.gmra.mxu0 %v3745
        %v4216 = vpop.f32.mrf.mxu0
        %v4217 = vadd.f32 %v4104, %v4216
        %4218 = vmatmul.f32.gmra.mxu0 %v3748
        %v4219 = vpop.f32.mrf.mxu0
        %v4220 = vadd.f32 %v4107, %v4219
        %4221 = vmatmul.f32.gmra.mxu0 %v3750
        %v4222 = vpop.f32.mrf.mxu0
        %v4223 = vadd.f32 %v4110, %v4222
        %4224 = vmatmul.f32.gmra.mxu0 %v3753
        %v4225 = vpop.f32.mrf.mxu0
        %v4226 = vadd.f32 %v4113, %v4225
        %4227 = vmatmul.f32.gmra.mxu0 %v3755
        %v4228 = vpop.f32.mrf.mxu0
        %v4229 = vadd.f32 %v4116, %v4228
        %4230 = vmatmul.f32.gmra.mxu0 %v3758
        %v4231 = vpop.f32.mrf.mxu0
        %v4232 = vadd.f32 %v4119, %v4231
        %4233 = vmatmul.f32.gmra.mxu0 %v3760
        %v4234 = vpop.f32.mrf.mxu0
        %v4235 = vadd.f32 %v4122, %v4234
        %4236 = vmatmul.f32.gmra.mxu0 %v3763
        %v4237 = vpop.f32.mrf.mxu0
        %v4238 = vadd.f32 %v4125, %v4237
        %4239 = vmatmul.f32.gmra.mxu0 %v3765
        %v4240 = vpop.f32.mrf.mxu0
        %v4241 = vadd.f32 %v4128, %v4240
        %4242 = vdwg.mxu0
        %4243 = vmatpush.msra.mxu0 %v3822
        %4244 = vmatpush.msra.mxu0 %v3821
        %4245 = vmatpush.msra.mxu0 %v3820
        %4246 = vmatpush.msra.mxu0 %v3819
        %4247 = vmatpush.msra.mxu0 %v3818
        %4248 = vmatpush.msra.mxu0 %v3817
        %4249 = vmatpush.msra.mxu0 %v3816
        %4250 = vmatpush.msra.mxu0 %v3815
        %4251 = vmatpush.msra.mxu0 %v3814
        %4252 = vmatpush.msra.mxu0 %v3813
        %4253 = vmatpush.msra.mxu0 %v3812
        %4254 = vmatpush.msra.mxu0 %v3811
        %4255 = vmatpush.msra.mxu0 %v3810
        %4256 = vmatpush.msra.mxu0 %v3809
        %4257 = vmatpush.msra.mxu0 %v3808
        %4258 = vmatpush.msra.mxu0 %v3807
        %4259 = vmatmul.f32.gmra.mxu0 %v3447
        %v4260 = vpop.f32.mrf.mxu0
        %v4261 = vadd.f32 %v4148, %v4260
        %4262 = vmatmul.f32.gmra.mxu0 %v3448
        %v4263 = vpop.f32.mrf.mxu0
        %v4264 = vadd.f32 %v4151, %v4263
        %4265 = vmatmul.f32.gmra.mxu0 %v3450
        %v4266 = vpop.f32.mrf.mxu0
        %v4267 = vadd.f32 %v4154, %v4266
        %4268 = vmatmul.f32.gmra.mxu0 %v3451
        %v4269 = vpop.f32.mrf.mxu0
        %v4270 = vadd.f32 %v4157, %v4269
        %4271 = vmatmul.f32.gmra.mxu0 %v3453
        %v4272 = vpop.f32.mrf.mxu0
        %v4273 = vadd.f32 %v4160, %v4272
        %4274 = vmatmul.f32.gmra.mxu0 %v3454
        %v4275 = vpop.f32.mrf.mxu0
        %v4276 = vadd.f32 %v4163, %v4275
        %4277 = vmatmul.f32.gmra.mxu0 %v3456
        %v4278 = vpop.f32.mrf.mxu0
        %v4279 = vadd.f32 %v4166, %v4278
        %4280 = vmatmul.f32.gmra.mxu0 %v3457
        %v4281 = vpop.f32.mrf.mxu0
        %v4282 = vadd.f32 %v4169, %v4281
        %4283 = vmatmul.f32.gmra.mxu0 %v3459
        %v4284 = vpop.f32.mrf.mxu0
        %v4285 = vadd.f32 %v4172, %v4284
        %4286 = vmatmul.f32.gmra.mxu0 %v3460
        %v4287 = vpop.f32.mrf.mxu0
        %v4288 = vadd.f32 %v4175, %v4287
        %4289 = vmatmul.f32.gmra.mxu0 %v3462
        %v4290 = vpop.f32.mrf.mxu0
        %v4291 = vadd.f32 %v4178, %v4290
        %4292 = vmatmul.f32.gmra.mxu0 %v3463
        %v4293 = vpop.f32.mrf.mxu0
        %v4294 = vadd.f32 %v4181, %v4293
        %4295 = vmatmul.f32.gmra.mxu0 %v3465
        %v4296 = vpop.f32.mrf.mxu0
        %v4297 = vadd.f32 %v4184, %v4296
        %4298 = vmatmul.f32.gmra.mxu0 %v3466
        %v4299 = vpop.f32.mrf.mxu0
        %v4300 = vadd.f32 %v4187, %v4299
        %4301 = vmatmul.f32.gmra.mxu0 %v3468
        %v4302 = vpop.f32.mrf.mxu0
        %v4303 = vadd.f32 %v4190, %v4302
        %4304 = vmatmul.f32.gmra.mxu0 %v3469
        %v4305 = vpop.f32.mrf.mxu0
        %v4306 = vadd.f32 %v4193, %v4305
        %4307 = vmatmul.f32.gmra.mxu0 %v3471
        %v4308 = vpop.f32.mrf.mxu0
        %v4309 = vadd.f32 %v4196, %v4308
        %4310 = vmatmul.f32.gmra.mxu0 %v3472
        %v4311 = vpop.f32.mrf.mxu0
        %v4312 = vadd.f32 %v4199, %v4311
        %4313 = vmatmul.f32.gmra.mxu0 %v3474
        %v4314 = vpop.f32.mrf.mxu0
        %v4315 = vadd.f32 %v4202, %v4314
        %4316 = vmatmul.f32.gmra.mxu0 %v3475
        %v4317 = vpop.f32.mrf.mxu0
        %v4318 = vadd.f32 %v4205, %v4317
        %4319 = vmatmul.f32.gmra.mxu0 %v3477
        %v4320 = vpop.f32.mrf.mxu0
        %v4321 = vadd.f32 %v4208, %v4320
        %4322 = vmatmul.f32.gmra.mxu0 %v3478
        %v4323 = vpop.f32.mrf.mxu0
        %v4324 = vadd.f32 %v4211, %v4323
        %4325 = vmatmul.f32.gmra.mxu0 %v3480
        %v4326 = vpop.f32.mrf.mxu0
        %v4327 = vadd.f32 %v4214, %v4326
        %4328 = vmatmul.f32.gmra.mxu0 %v3481
        %v4329 = vpop.f32.mrf.mxu0
        %v4330 = vadd.f32 %v4217, %v4329
        %4331 = vmatmul.f32.gmra.mxu0 %v3483
        %v4332 = vpop.f32.mrf.mxu0
        %v4333 = vadd.f32 %v4220, %v4332
        %4334 = vmatmul.f32.gmra.mxu0 %v3484
        %v4335 = vpop.f32.mrf.mxu0
        %v4336 = vadd.f32 %v4223, %v4335
        %4337 = vmatmul.f32.gmra.mxu0 %v3486
        %v4338 = vpop.f32.mrf.mxu0
        %v4339 = vadd.f32 %v4226, %v4338
        %4340 = vmatmul.f32.gmra.mxu0 %v3487
        %v4341 = vpop.f32.mrf.mxu0
        %v4342 = vadd.f32 %v4229, %v4341
        %4343 = vmatmul.f32.gmra.mxu0 %v3489
        %v4344 = vpop.f32.mrf.mxu0
        %v4345 = vadd.f32 %v4232, %v4344
        %4346 = vmatmul.f32.gmra.mxu0 %v3490
        %v4347 = vpop.f32.mrf.mxu0
        %v4348 = vadd.f32 %v4235, %v4347
        %4349 = vmatmul.f32.gmra.mxu0 %v3492
        %v4350 = vpop.f32.mrf.mxu0
        %v4351 = vadd.f32 %v4238, %v4350
        %4352 = vmatmul.f32.gmra.mxu0 %v3493
        %v4353 = vpop.f32.mrf.mxu0
        %v4354 = vadd.f32 %v4241, %v4353
        %4355 = vdwg.mxu0
        %4356 = vmatpush.msra.mxu0 %v3838
        %4357 = vmatpush.msra.mxu0 %v3837
        %4358 = vmatpush.msra.mxu0 %v3836
        %4359 = vmatpush.msra.mxu0 %v3835
        %4360 = vmatpush.msra.mxu0 %v3834
        %4361 = vmatpush.msra.mxu0 %v3833
        %4362 = vmatpush.msra.mxu0 %v3832
        %4363 = vmatpush.msra.mxu0 %v3831
        %4364 = vmatpush.msra.mxu0 %v3830
        %4365 = vmatpush.msra.mxu0 %v3829
        %4366 = vmatpush.msra.mxu0 %v3828
        %4367 = vmatpush.msra.mxu0 %v3827
        %4368 = vmatpush.msra.mxu0 %v3826
        %4369 = vmatpush.msra.mxu0 %v3825
        %4370 = vmatpush.msra.mxu0 %v3824
        %4371 = vmatpush.msra.mxu0 %v3823
        %4372 = vmatmul.f32.gmra.mxu0 %v3557
        %v4373 = vpop.f32.mrf.mxu0
        %v4374 = vadd.f32 %v4261, %v4373
        %4375 = vmatmul.f32.gmra.mxu0 %v3559
        %v4376 = vpop.f32.mrf.mxu0
        %v4377 = vadd.f32 %v4264, %v4376
        %4378 = vmatmul.f32.gmra.mxu0 %v3562
        %v4379 = vpop.f32.mrf.mxu0
        %v4380 = vadd.f32 %v4267, %v4379
        %4381 = vmatmul.f32.gmra.mxu0 %v3564
        %v4382 = vpop.f32.mrf.mxu0
        %v4383 = vadd.f32 %v4270, %v4382
        %4384 = vmatmul.f32.gmra.mxu0 %v3567
        %v4385 = vpop.f32.mrf.mxu0
        %v4386 = vadd.f32 %v4273, %v4385
        %4387 = vmatmul.f32.gmra.mxu0 %v3569
        %v4388 = vpop.f32.mrf.mxu0
        %v4389 = vadd.f32 %v4276, %v4388
        %4390 = vmatmul.f32.gmra.mxu0 %v3572
        %v4391 = vpop.f32.mrf.mxu0
        %v4392 = vadd.f32 %v4279, %v4391
        %4393 = vmatmul.f32.gmra.mxu0 %v3574
        %v4394 = vpop.f32.mrf.mxu0
        %v4395 = vadd.f32 %v4282, %v4394
        %4396 = vmatmul.f32.gmra.mxu0 %v3577
        %v4397 = vpop.f32.mrf.mxu0
        %v4398 = vadd.f32 %v4285, %v4397
        %4399 = vmatmul.f32.gmra.mxu0 %v3579
        %v4400 = vpop.f32.mrf.mxu0
        %v4401 = vadd.f32 %v4288, %v4400
        %4402 = vmatmul.f32.gmra.mxu0 %v3582
        %v4403 = vpop.f32.mrf.mxu0
        %v4404 = vadd.f32 %v4291, %v4403
        %4405 = vmatmul.f32.gmra.mxu0 %v3584
        %v4406 = vpop.f32.mrf.mxu0
        %v4407 = vadd.f32 %v4294, %v4406
        %4408 = vmatmul.f32.gmra.mxu0 %v3587
        %v4409 = vpop.f32.mrf.mxu0
        %v4410 = vadd.f32 %v4297, %v4409
        %4411 = vmatmul.f32.gmra.mxu0 %v3589
        %v4412 = vpop.f32.mrf.mxu0
        %v4413 = vadd.f32 %v4300, %v4412
        %4414 = vmatmul.f32.gmra.mxu0 %v3592
        %v4415 = vpop.f32.mrf.mxu0
        %v4416 = vadd.f32 %v4303, %v4415
        %4417 = vmatmul.f32.gmra.mxu0 %v3594
        %v4418 = vpop.f32.mrf.mxu0
        %v4419 = vadd.f32 %v4306, %v4418
        %4420 = vmatmul.f32.gmra.mxu0 %v3597
        %v4421 = vpop.f32.mrf.mxu0
        %v4422 = vadd.f32 %v4309, %v4421
        %4423 = vmatmul.f32.gmra.mxu0 %v3599
        %v4424 = vpop.f32.mrf.mxu0
        %v4425 = vadd.f32 %v4312, %v4424
        %4426 = vmatmul.f32.gmra.mxu0 %v3602
        %v4427 = vpop.f32.mrf.mxu0
        %v4428 = vadd.f32 %v4315, %v4427
        %4429 = vmatmul.f32.gmra.mxu0 %v3604
        %v4430 = vpop.f32.mrf.mxu0
        %v4431 = vadd.f32 %v4318, %v4430
        %4432 = vmatmul.f32.gmra.mxu0 %v3607
        %v4433 = vpop.f32.mrf.mxu0
        %v4434 = vadd.f32 %v4321, %v4433
        %4435 = vmatmul.f32.gmra.mxu0 %v3609
        %v4436 = vpop.f32.mrf.mxu0
        %v4437 = vadd.f32 %v4324, %v4436
        %4438 = vmatmul.f32.gmra.mxu0 %v3612
        %v4439 = vpop.f32.mrf.mxu0
        %v4440 = vadd.f32 %v4327, %v4439
        %4441 = vmatmul.f32.gmra.mxu0 %v3614
        %v4442 = vpop.f32.mrf.mxu0
        %v4443 = vadd.f32 %v4330, %v4442
        %4444 = vmatmul.f32.gmra.mxu0 %v3617
        %v4445 = vpop.f32.mrf.mxu0
        %v4446 = vadd.f32 %v4333, %v4445
        %4447 = vmatmul.f32.gmra.mxu0 %v3619
        %v4448 = vpop.f32.mrf.mxu0
        %v4449 = vadd.f32 %v4336, %v4448
        %4450 = vmatmul.f32.gmra.mxu0 %v3622
        %v4451 = vpop.f32.mrf.mxu0
        %v4452 = vadd.f32 %v4339, %v4451
        %4453 = vmatmul.f32.gmra.mxu0 %v3624
        %v4454 = vpop.f32.mrf.mxu0
        %v4455 = vadd.f32 %v4342, %v4454
        %4456 = vmatmul.f32.gmra.mxu0 %v3627
        %v4457 = vpop.f32.mrf.mxu0
        %v4458 = vadd.f32 %v4345, %v4457
        %4459 = vmatmul.f32.gmra.mxu0 %v3629
        %v4460 = vpop.f32.mrf.mxu0
        %v4461 = vadd.f32 %v4348, %v4460
        %4462 = vmatmul.f32.gmra.mxu0 %v3632
        %v4463 = vpop.f32.mrf.mxu0
        %v4464 = vadd.f32 %v4351, %v4463
        %4465 = vmatmul.f32.gmra.mxu0 %v3634
        %v4466 = vpop.f32.mrf.mxu0
        %v4467 = vadd.f32 %v4354, %v4466
        %4468 = vdwg.mxu0
        %4469 = vmatpush.msra.mxu0 %v3854
        %4470 = vmatpush.msra.mxu0 %v3853
        %4471 = vmatpush.msra.mxu0 %v3852
        %4472 = vmatpush.msra.mxu0 %v3851
        %4473 = vmatpush.msra.mxu0 %v3850
        %4474 = vmatpush.msra.mxu0 %v3849
        %4475 = vmatpush.msra.mxu0 %v3848
        %4476 = vmatpush.msra.mxu0 %v3847
        %4477 = vmatpush.msra.mxu0 %v3846
        %4478 = vmatpush.msra.mxu0 %v3845
        %4479 = vmatpush.msra.mxu0 %v3844
        %4480 = vmatpush.msra.mxu0 %v3843
        %4481 = vmatpush.msra.mxu0 %v3842
        %4482 = vmatpush.msra.mxu0 %v3841
        %4483 = vmatpush.msra.mxu0 %v3840
        %4484 = vmatpush.msra.mxu0 %v3839
        %4485 = vmatmul.f32.gmra.mxu0 %v3683
        %v4486 = vpop.f32.mrf.mxu0
        %v4487 = vadd.f32 %v4374, %v4486
        %4488 = vmatmul.f32.gmra.mxu0 %v3685
        %v4489 = vpop.f32.mrf.mxu0
        %v4490 = vadd.f32 %v4377, %v4489
        %4491 = vmatmul.f32.gmra.mxu0 %v3688
        %v4492 = vpop.f32.mrf.mxu0
        %v4493 = vadd.f32 %v4380, %v4492
        %4494 = vmatmul.f32.gmra.mxu0 %v3690
        %v4495 = vpop.f32.mrf.mxu0
        %v4496 = vadd.f32 %v4383, %v4495
        %4497 = vmatmul.f32.gmra.mxu0 %v3693
        %v4498 = vpop.f32.mrf.mxu0
        %v4499 = vadd.f32 %v4386, %v4498
        %4500 = vmatmul.f32.gmra.mxu0 %v3695
        %v4501 = vpop.f32.mrf.mxu0
        %v4502 = vadd.f32 %v4389, %v4501
        %4503 = vmatmul.f32.gmra.mxu0 %v3698
        %v4504 = vpop.f32.mrf.mxu0
        %v4505 = vadd.f32 %v4392, %v4504
        %4506 = vmatmul.f32.gmra.mxu0 %v3700
        %v4507 = vpop.f32.mrf.mxu0
        %v4508 = vadd.f32 %v4395, %v4507
        %4509 = vmatmul.f32.gmra.mxu0 %v3703
        %v4510 = vpop.f32.mrf.mxu0
        %v4511 = vadd.f32 %v4398, %v4510
        %4512 = vmatmul.f32.gmra.mxu0 %v3705
        %v4513 = vpop.f32.mrf.mxu0
        %v4514 = vadd.f32 %v4401, %v4513
        %4515 = vmatmul.f32.gmra.mxu0 %v3708
        %v4516 = vpop.f32.mrf.mxu0
        %v4517 = vadd.f32 %v4404, %v4516
        %4518 = vmatmul.f32.gmra.mxu0 %v3710
        %v4519 = vpop.f32.mrf.mxu0
        %v4520 = vadd.f32 %v4407, %v4519
        %4521 = vmatmul.f32.gmra.mxu0 %v3713
        %v4522 = vpop.f32.mrf.mxu0
        %v4523 = vadd.f32 %v4410, %v4522
        %4524 = vmatmul.f32.gmra.mxu0 %v3715
        %v4525 = vpop.f32.mrf.mxu0
        %v4526 = vadd.f32 %v4413, %v4525
        %4527 = vmatmul.f32.gmra.mxu0 %v3718
        %v4528 = vpop.f32.mrf.mxu0
        %v4529 = vadd.f32 %v4416, %v4528
        %4530 = vmatmul.f32.gmra.mxu0 %v3720
        %v4531 = vpop.f32.mrf.mxu0
        %v4532 = vadd.f32 %v4419, %v4531
        %4533 = vmatmul.f32.gmra.mxu0 %v3723
        %v4534 = vpop.f32.mrf.mxu0
        %v4535 = vadd.f32 %v4422, %v4534
        %4536 = vmatmul.f32.gmra.mxu0 %v3725
        %v4537 = vpop.f32.mrf.mxu0
        %v4538 = vadd.f32 %v4425, %v4537
        %4539 = vmatmul.f32.gmra.mxu0 %v3728
        %v4540 = vpop.f32.mrf.mxu0
        %v4541 = vadd.f32 %v4428, %v4540
        %4542 = vmatmul.f32.gmra.mxu0 %v3730
        %v4543 = vpop.f32.mrf.mxu0
        %v4544 = vadd.f32 %v4431, %v4543
        %4545 = vmatmul.f32.gmra.mxu0 %v3733
        %v4546 = vpop.f32.mrf.mxu0
        %v4547 = vadd.f32 %v4434, %v4546
        %4548 = vmatmul.f32.gmra.mxu0 %v3735
        %v4549 = vpop.f32.mrf.mxu0
        %v4550 = vadd.f32 %v4437, %v4549
        %4551 = vmatmul.f32.gmra.mxu0 %v3738
        %v4552 = vpop.f32.mrf.mxu0
        %v4553 = vadd.f32 %v4440, %v4552
        %4554 = vmatmul.f32.gmra.mxu0 %v3740
        %v4555 = vpop.f32.mrf.mxu0
        %v4556 = vadd.f32 %v4443, %v4555
        %4557 = vmatmul.f32.gmra.mxu0 %v3743
        %v4558 = vpop.f32.mrf.mxu0
        %v4559 = vadd.f32 %v4446, %v4558
        %4560 = vmatmul.f32.gmra.mxu0 %v3745
        %v4561 = vpop.f32.mrf.mxu0
        %v4562 = vadd.f32 %v4449, %v4561
        %4563 = vmatmul.f32.gmra.mxu0 %v3748
        %v4564 = vpop.f32.mrf.mxu0
        %v4565 = vadd.f32 %v4452, %v4564
        %4566 = vmatmul.f32.gmra.mxu0 %v3750
        %v4567 = vpop.f32.mrf.mxu0
        %v4568 = vadd.f32 %v4455, %v4567
        %4569 = vmatmul.f32.gmra.mxu0 %v3753
        %v4570 = vpop.f32.mrf.mxu0
        %v4571 = vadd.f32 %v4458, %v4570
        %4572 = vmatmul.f32.gmra.mxu0 %v3755
        %v4573 = vpop.f32.mrf.mxu0
        %v4574 = vadd.f32 %v4461, %v4573
        %4575 = vmatmul.f32.gmra.mxu0 %v3758
        %v4576 = vpop.f32.mrf.mxu0
        %v4577 = vadd.f32 %v4464, %v4576
        %4578 = vmatmul.f32.gmra.mxu0 %v3760
        %v4579 = vpop.f32.mrf.mxu0
        %v4580 = vadd.f32 %v4467, %v4579
        %4581 = vdwg.mxu0
        %s4582 = scalar_lea.vmem %s3, 768
        %v4583 = vld [vmem:[%s4582] sm:$0xff]
        %v4584 = vld [vmem:[%s4582 + $0x8] sm:$0xff]
        %v4585 = vld [vmem:[%s4582 + $0x10] sm:$0xff]
        %v4586 = vld [vmem:[%s4582 + $0x18] sm:$0xff]
        %v4587 = vld [vmem:[%s4582 + $0x20] sm:$0xff]
        %v4588 = vld [vmem:[%s4582 + $0x28] sm:$0xff]
        %v4589 = vld [vmem:[%s4582 + $0x30] sm:$0xff]
        %v4590 = vld [vmem:[%s4582 + $0x38] sm:$0xff]
        %v4591 = vld [vmem:[%s4582 + $0x40] sm:$0xff]
        %v4592 = vld [vmem:[%s4582 + $0x48] sm:$0xff]
        %v4593 = vld [vmem:[%s4582 + $0x50] sm:$0xff]
        %v4594 = vld [vmem:[%s4582 + $0x58] sm:$0xff]
        %v4595 = vld [vmem:[%s4582 + $0x60] sm:$0xff]
        %v4596 = vld [vmem:[%s4582 + $0x68] sm:$0xff]
        %v4597 = vld [vmem:[%s4582 + $0x70] sm:$0xff]
        %v4598 = vld [vmem:[%s4582 + $0x78] sm:$0xff]
        %v4599 = vld [vmem:[%s4582 + $0x80] sm:$0xff]
        %v4600 = vld [vmem:[%s4582 + $0x88] sm:$0xff]
        %v4601 = vld [vmem:[%s4582 + $0x90] sm:$0xff]
        %v4602 = vld [vmem:[%s4582 + $0x98] sm:$0xff]
        %v4603 = vld [vmem:[%s4582 + $0xa0] sm:$0xff]
        %v4604 = vld [vmem:[%s4582 + $0xa8] sm:$0xff]
        %v4605 = vld [vmem:[%s4582 + $0xb0] sm:$0xff]
        %v4606 = vld [vmem:[%s4582 + $0xb8] sm:$0xff]
        %v4607 = vld [vmem:[%s4582 + $0xc0] sm:$0xff]
        %v4608 = vld [vmem:[%s4582 + $0xc8] sm:$0xff]
        %v4609 = vld [vmem:[%s4582 + $0xd0] sm:$0xff]
        %v4610 = vld [vmem:[%s4582 + $0xd8] sm:$0xff]
        %v4611 = vld [vmem:[%s4582 + $0xe0] sm:$0xff]
        %v4612 = vld [vmem:[%s4582 + $0xe8] sm:$0xff]
        %v4613 = vld [vmem:[%s4582 + $0xf0] sm:$0xff]
        %v4614 = vld [vmem:[%s4582 + $0xf8] sm:$0xff]
        %v4615 = vld [vmem:[%s4582 + $0x100] sm:$0xff]
        %v4616 = vld [vmem:[%s4582 + $0x108] sm:$0xff]
        %v4617 = vld [vmem:[%s4582 + $0x110] sm:$0xff]
        %v4618 = vld [vmem:[%s4582 + $0x118] sm:$0xff]
        %v4619 = vld [vmem:[%s4582 + $0x120] sm:$0xff]
        %v4620 = vld [vmem:[%s4582 + $0x128] sm:$0xff]
        %v4621 = vld [vmem:[%s4582 + $0x130] sm:$0xff]
        %v4622 = vld [vmem:[%s4582 + $0x138] sm:$0xff]
        %v4623 = vld [vmem:[%s4582 + $0x140] sm:$0xff]
        %v4624 = vld [vmem:[%s4582 + $0x148] sm:$0xff]
        %v4625 = vld [vmem:[%s4582 + $0x150] sm:$0xff]
        %v4626 = vld [vmem:[%s4582 + $0x158] sm:$0xff]
        %v4627 = vld [vmem:[%s4582 + $0x160] sm:$0xff]
        %v4628 = vld [vmem:[%s4582 + $0x168] sm:$0xff]
        %v4629 = vld [vmem:[%s4582 + $0x170] sm:$0xff]
        %v4630 = vld [vmem:[%s4582 + $0x178] sm:$0xff]
        %4631 = vmatpush.msra.mxu0 %v4598
        %4632 = vmatpush.msra.mxu0 %v4597
        %4633 = vmatpush.msra.mxu0 %v4596
        %4634 = vmatpush.msra.mxu0 %v4595
        %4635 = vmatpush.msra.mxu0 %v4594
        %4636 = vmatpush.msra.mxu0 %v4593
        %4637 = vmatpush.msra.mxu0 %v4592
        %4638 = vmatpush.msra.mxu0 %v4591
        %4639 = vmatpush.msra.mxu0 %v4590
        %4640 = vmatpush.msra.mxu0 %v4589
        %4641 = vmatpush.msra.mxu0 %v4588
        %4642 = vmatpush.msra.mxu0 %v4587
        %4643 = vmatpush.msra.mxu0 %v4586
        %4644 = vmatpush.msra.mxu0 %v4585
        %4645 = vmatpush.msra.mxu0 %v4584
        %4646 = vmatpush.msra.mxu0 %v4583
        %4647 = vmatmul.f32.gmra.mxu0 %v3453
        %v4648 = vpop.f32.mrf.mxu0
        %v4649 = vadd.f32 0.0, %v4648
        %4650 = vmatmul.f32.gmra.mxu0 %v3454
        %v4651 = vpop.f32.mrf.mxu0
        %v4652 = vadd.f32 0.0, %v4651
        %4653 = vmatmul.f32.gmra.mxu0 %v3456
        %v4654 = vpop.f32.mrf.mxu0
        %v4655 = vadd.f32 0.0, %v4654
        %4656 = vmatmul.f32.gmra.mxu0 %v3457
        %v4657 = vpop.f32.mrf.mxu0
        %v4658 = vadd.f32 0.0, %v4657
        %4659 = vmatmul.f32.gmra.mxu0 %v3459
        %v4660 = vpop.f32.mrf.mxu0
        %v4661 = vadd.f32 0.0, %v4660
        %4662 = vmatmul.f32.gmra.mxu0 %v3460
        %v4663 = vpop.f32.mrf.mxu0
        %v4664 = vadd.f32 0.0, %v4663
        %4665 = vmatmul.f32.gmra.mxu0 %v3462
        %v4666 = vpop.f32.mrf.mxu0
        %v4667 = vadd.f32 0.0, %v4666
        %4668 = vmatmul.f32.gmra.mxu0 %v3463
        %v4669 = vpop.f32.mrf.mxu0
        %v4670 = vadd.f32 0.0, %v4669
        %4671 = vmatmul.f32.gmra.mxu0 %v3465
        %v4672 = vpop.f32.mrf.mxu0
        %v4673 = vadd.f32 0.0, %v4672
        %4674 = vmatmul.f32.gmra.mxu0 %v3466
        %v4675 = vpop.f32.mrf.mxu0
        %v4676 = vadd.f32 0.0, %v4675
        %4677 = vmatmul.f32.gmra.mxu0 %v3468
        %v4678 = vpop.f32.mrf.mxu0
        %v4679 = vadd.f32 0.0, %v4678
        %4680 = vmatmul.f32.gmra.mxu0 %v3469
        %v4681 = vpop.f32.mrf.mxu0
        %v4682 = vadd.f32 0.0, %v4681
        %4683 = vmatmul.f32.gmra.mxu0 %v3471
        %v4684 = vpop.f32.mrf.mxu0
        %v4685 = vadd.f32 0.0, %v4684
        %4686 = vmatmul.f32.gmra.mxu0 %v3472
        %v4687 = vpop.f32.mrf.mxu0
        %v4688 = vadd.f32 0.0, %v4687
        %4689 = vmatmul.f32.gmra.mxu0 %v3474
        %v4690 = vpop.f32.mrf.mxu0
        %v4691 = vadd.f32 0.0, %v4690
        %4692 = vmatmul.f32.gmra.mxu0 %v3475
        %v4693 = vpop.f32.mrf.mxu0
        %v4694 = vadd.f32 0.0, %v4693
        %4695 = vmatmul.f32.gmra.mxu0 %v3477
        %v4696 = vpop.f32.mrf.mxu0
        %v4697 = vadd.f32 0.0, %v4696
        %4698 = vmatmul.f32.gmra.mxu0 %v3478
        %v4699 = vpop.f32.mrf.mxu0
        %v4700 = vadd.f32 0.0, %v4699
        %4701 = vmatmul.f32.gmra.mxu0 %v3480
        %v4702 = vpop.f32.mrf.mxu0
        %v4703 = vadd.f32 0.0, %v4702
        %4704 = vmatmul.f32.gmra.mxu0 %v3481
        %v4705 = vpop.f32.mrf.mxu0
        %v4706 = vadd.f32 0.0, %v4705
        %4707 = vmatmul.f32.gmra.mxu0 %v3483
        %v4708 = vpop.f32.mrf.mxu0
        %v4709 = vadd.f32 0.0, %v4708
        %4710 = vmatmul.f32.gmra.mxu0 %v3484
        %v4711 = vpop.f32.mrf.mxu0
        %v4712 = vadd.f32 0.0, %v4711
        %4713 = vmatmul.f32.gmra.mxu0 %v3486
        %v4714 = vpop.f32.mrf.mxu0
        %v4715 = vadd.f32 0.0, %v4714
        %4716 = vmatmul.f32.gmra.mxu0 %v3487
        %v4717 = vpop.f32.mrf.mxu0
        %v4718 = vadd.f32 0.0, %v4717
        %4719 = vmatmul.f32.gmra.mxu0 %v3489
        %v4720 = vpop.f32.mrf.mxu0
        %v4721 = vadd.f32 0.0, %v4720
        %4722 = vmatmul.f32.gmra.mxu0 %v3490
        %v4723 = vpop.f32.mrf.mxu0
        %v4724 = vadd.f32 0.0, %v4723
        %4725 = vmatmul.f32.gmra.mxu0 %v3492
        %v4726 = vpop.f32.mrf.mxu0
        %v4727 = vadd.f32 0.0, %v4726
        %4728 = vmatmul.f32.gmra.mxu0 %v3493
        %v4729 = vpop.f32.mrf.mxu0
        %v4730 = vadd.f32 0.0, %v4729
        %4731 = vmatmul.f32.gmra.mxu0 %v3495
        %v4732 = vpop.f32.mrf.mxu0
        %v4733 = vadd.f32 0.0, %v4732
        %4734 = vmatmul.f32.gmra.mxu0 %v3496
        %v4735 = vpop.f32.mrf.mxu0
        %v4736 = vadd.f32 0.0, %v4735
        %4737 = vmatmul.f32.gmra.mxu0 %v3498
        %v4738 = vpop.f32.mrf.mxu0
        %v4739 = vadd.f32 0.0, %v4738
        %4740 = vmatmul.f32.gmra.mxu0 %v3499
        %v4741 = vpop.f32.mrf.mxu0
        %v4742 = vadd.f32 0.0, %v4741
        %4743 = vdwg.mxu0
        %4744 = vmatpush.msra.mxu0 %v4614
        %4745 = vmatpush.msra.mxu0 %v4613
        %4746 = vmatpush.msra.mxu0 %v4612
        %4747 = vmatpush.msra.mxu0 %v4611
        %4748 = vmatpush.msra.mxu0 %v4610
        %4749 = vmatpush.msra.mxu0 %v4609
        %4750 = vmatpush.msra.mxu0 %v4608
        %4751 = vmatpush.msra.mxu0 %v4607
        %4752 = vmatpush.msra.mxu0 %v4606
        %4753 = vmatpush.msra.mxu0 %v4605
        %4754 = vmatpush.msra.mxu0 %v4604
        %4755 = vmatpush.msra.mxu0 %v4603
        %4756 = vmatpush.msra.mxu0 %v4602
        %4757 = vmatpush.msra.mxu0 %v4601
        %4758 = vmatpush.msra.mxu0 %v4600
        %4759 = vmatpush.msra.mxu0 %v4599
        %4760 = vmatmul.f32.gmra.mxu0 %v3567
        %v4761 = vpop.f32.mrf.mxu0
        %v4762 = vadd.f32 %v4649, %v4761
        %4763 = vmatmul.f32.gmra.mxu0 %v3569
        %v4764 = vpop.f32.mrf.mxu0
        %v4765 = vadd.f32 %v4652, %v4764
        %4766 = vmatmul.f32.gmra.mxu0 %v3572
        %v4767 = vpop.f32.mrf.mxu0
        %v4768 = vadd.f32 %v4655, %v4767
        %4769 = vmatmul.f32.gmra.mxu0 %v3574
        %v4770 = vpop.f32.mrf.mxu0
        %v4771 = vadd.f32 %v4658, %v4770
        %4772 = vmatmul.f32.gmra.mxu0 %v3577
        %v4773 = vpop.f32.mrf.mxu0
        %v4774 = vadd.f32 %v4661, %v4773
        %4775 = vmatmul.f32.gmra.mxu0 %v3579
        %v4776 = vpop.f32.mrf.mxu0
        %v4777 = vadd.f32 %v4664, %v4776
        %4778 = vmatmul.f32.gmra.mxu0 %v3582
        %v4779 = vpop.f32.mrf.mxu0
        %v4780 = vadd.f32 %v4667, %v4779
        %4781 = vmatmul.f32.gmra.mxu0 %v3584
        %v4782 = vpop.f32.mrf.mxu0
        %v4783 = vadd.f32 %v4670, %v4782
        %4784 = vmatmul.f32.gmra.mxu0 %v3587
        %v4785 = vpop.f32.mrf.mxu0
        %v4786 = vadd.f32 %v4673, %v4785
        %4787 = vmatmul.f32.gmra.mxu0 %v3589
        %v4788 = vpop.f32.mrf.mxu0
        %v4789 = vadd.f32 %v4676, %v4788
        %4790 = vmatmul.f32.gmra.mxu0 %v3592
        %v4791 = vpop.f32.mrf.mxu0
        %v4792 = vadd.f32 %v4679, %v4791
        %4793 = vmatmul.f32.gmra.mxu0 %v3594
        %v4794 = vpop.f32.mrf.mxu0
        %v4795 = vadd.f32 %v4682, %v4794
        %4796 = vmatmul.f32.gmra.mxu0 %v3597
        %v4797 = vpop.f32.mrf.mxu0
        %v4798 = vadd.f32 %v4685, %v4797
        %4799 = vmatmul.f32.gmra.mxu0 %v3599
        %v4800 = vpop.f32.mrf.mxu0
        %v4801 = vadd.f32 %v4688, %v4800
        %4802 = vmatmul.f32.gmra.mxu0 %v3602
        %v4803 = vpop.f32.mrf.mxu0
        %v4804 = vadd.f32 %v4691, %v4803
        %4805 = vmatmul.f32.gmra.mxu0 %v3604
        %v4806 = vpop.f32.mrf.mxu0
        %v4807 = vadd.f32 %v4694, %v4806
        %4808 = vmatmul.f32.gmra.mxu0 %v3607
        %v4809 = vpop.f32.mrf.mxu0
        %v4810 = vadd.f32 %v4697, %v4809
        %4811 = vmatmul.f32.gmra.mxu0 %v3609
        %v4812 = vpop.f32.mrf.mxu0
        %v4813 = vadd.f32 %v4700, %v4812
        %4814 = vmatmul.f32.gmra.mxu0 %v3612
        %v4815 = vpop.f32.mrf.mxu0
        %v4816 = vadd.f32 %v4703, %v4815
        %4817 = vmatmul.f32.gmra.mxu0 %v3614
        %v4818 = vpop.f32.mrf.mxu0
        %v4819 = vadd.f32 %v4706, %v4818
        %4820 = vmatmul.f32.gmra.mxu0 %v3617
        %v4821 = vpop.f32.mrf.mxu0
        %v4822 = vadd.f32 %v4709, %v4821
        %4823 = vmatmul.f32.gmra.mxu0 %v3619
        %v4824 = vpop.f32.mrf.mxu0
        %v4825 = vadd.f32 %v4712, %v4824
        %4826 = vmatmul.f32.gmra.mxu0 %v3622
        %v4827 = vpop.f32.mrf.mxu0
        %v4828 = vadd.f32 %v4715, %v4827
        %4829 = vmatmul.f32.gmra.mxu0 %v3624
        %v4830 = vpop.f32.mrf.mxu0
        %v4831 = vadd.f32 %v4718, %v4830
        %4832 = vmatmul.f32.gmra.mxu0 %v3627
        %v4833 = vpop.f32.mrf.mxu0
        %v4834 = vadd.f32 %v4721, %v4833
        %4835 = vmatmul.f32.gmra.mxu0 %v3629
        %v4836 = vpop.f32.mrf.mxu0
        %v4837 = vadd.f32 %v4724, %v4836
        %4838 = vmatmul.f32.gmra.mxu0 %v3632
        %v4839 = vpop.f32.mrf.mxu0
        %v4840 = vadd.f32 %v4727, %v4839
        %4841 = vmatmul.f32.gmra.mxu0 %v3634
        %v4842 = vpop.f32.mrf.mxu0
        %v4843 = vadd.f32 %v4730, %v4842
        %4844 = vmatmul.f32.gmra.mxu0 %v3637
        %v4845 = vpop.f32.mrf.mxu0
        %v4846 = vadd.f32 %v4733, %v4845
        %4847 = vmatmul.f32.gmra.mxu0 %v3639
        %v4848 = vpop.f32.mrf.mxu0
        %v4849 = vadd.f32 %v4736, %v4848
        %4850 = vmatmul.f32.gmra.mxu0 %v3642
        %v4851 = vpop.f32.mrf.mxu0
        %v4852 = vadd.f32 %v4739, %v4851
        %4853 = vmatmul.f32.gmra.mxu0 %v3644
        %v4854 = vpop.f32.mrf.mxu0
        %v4855 = vadd.f32 %v4742, %v4854
        %4856 = vdwg.mxu0
        %4857 = vmatpush.msra.mxu0 %v4630
        %4858 = vmatpush.msra.mxu0 %v4629
        %4859 = vmatpush.msra.mxu0 %v4628
        %4860 = vmatpush.msra.mxu0 %v4627
        %4861 = vmatpush.msra.mxu0 %v4626
        %4862 = vmatpush.msra.mxu0 %v4625
        %4863 = vmatpush.msra.mxu0 %v4624
        %4864 = vmatpush.msra.mxu0 %v4623
        %4865 = vmatpush.msra.mxu0 %v4622
        %4866 = vmatpush.msra.mxu0 %v4621
        %4867 = vmatpush.msra.mxu0 %v4620
        %4868 = vmatpush.msra.mxu0 %v4619
        %4869 = vmatpush.msra.mxu0 %v4618
        %4870 = vmatpush.msra.mxu0 %v4617
        %4871 = vmatpush.msra.mxu0 %v4616
        %4872 = vmatpush.msra.mxu0 %v4615
        %4873 = vmatmul.f32.gmra.mxu0 %v3693
        %v4874 = vpop.f32.mrf.mxu0
        %v4875 = vadd.f32 %v4762, %v4874
        %4876 = vmatmul.f32.gmra.mxu0 %v3695
        %v4877 = vpop.f32.mrf.mxu0
        %v4878 = vadd.f32 %v4765, %v4877
        %4879 = vmatmul.f32.gmra.mxu0 %v3698
        %v4880 = vpop.f32.mrf.mxu0
        %v4881 = vadd.f32 %v4768, %v4880
        %4882 = vmatmul.f32.gmra.mxu0 %v3700
        %v4883 = vpop.f32.mrf.mxu0
        %v4884 = vadd.f32 %v4771, %v4883
        %4885 = vmatmul.f32.gmra.mxu0 %v3703
        %v4886 = vpop.f32.mrf.mxu0
        %v4887 = vadd.f32 %v4774, %v4886
        %4888 = vmatmul.f32.gmra.mxu0 %v3705
        %v4889 = vpop.f32.mrf.mxu0
        %v4890 = vadd.f32 %v4777, %v4889
        %4891 = vmatmul.f32.gmra.mxu0 %v3708
        %v4892 = vpop.f32.mrf.mxu0
        %v4893 = vadd.f32 %v4780, %v4892
        %4894 = vmatmul.f32.gmra.mxu0 %v3710
        %v4895 = vpop.f32.mrf.mxu0
        %v4896 = vadd.f32 %v4783, %v4895
        %4897 = vmatmul.f32.gmra.mxu0 %v3713
        %v4898 = vpop.f32.mrf.mxu0
        %v4899 = vadd.f32 %v4786, %v4898
        %4900 = vmatmul.f32.gmra.mxu0 %v3715
        %v4901 = vpop.f32.mrf.mxu0
        %v4902 = vadd.f32 %v4789, %v4901
        %4903 = vmatmul.f32.gmra.mxu0 %v3718
        %v4904 = vpop.f32.mrf.mxu0
        %v4905 = vadd.f32 %v4792, %v4904
        %4906 = vmatmul.f32.gmra.mxu0 %v3720
        %v4907 = vpop.f32.mrf.mxu0
        %v4908 = vadd.f32 %v4795, %v4907
        %4909 = vmatmul.f32.gmra.mxu0 %v3723
        %v4910 = vpop.f32.mrf.mxu0
        %v4911 = vadd.f32 %v4798, %v4910
        %4912 = vmatmul.f32.gmra.mxu0 %v3725
        %v4913 = vpop.f32.mrf.mxu0
        %v4914 = vadd.f32 %v4801, %v4913
        %4915 = vmatmul.f32.gmra.mxu0 %v3728
        %v4916 = vpop.f32.mrf.mxu0
        %v4917 = vadd.f32 %v4804, %v4916
        %4918 = vmatmul.f32.gmra.mxu0 %v3730
        %v4919 = vpop.f32.mrf.mxu0
        %v4920 = vadd.f32 %v4807, %v4919
        %4921 = vmatmul.f32.gmra.mxu0 %v3733
        %v4922 = vpop.f32.mrf.mxu0
        %v4923 = vadd.f32 %v4810, %v4922
        %4924 = vmatmul.f32.gmra.mxu0 %v3735
        %v4925 = vpop.f32.mrf.mxu0
        %v4926 = vadd.f32 %v4813, %v4925
        %4927 = vmatmul.f32.gmra.mxu0 %v3738
        %v4928 = vpop.f32.mrf.mxu0
        %v4929 = vadd.f32 %v4816, %v4928
        %4930 = vmatmul.f32.gmra.mxu0 %v3740
        %v4931 = vpop.f32.mrf.mxu0
        %v4932 = vadd.f32 %v4819, %v4931
        %4933 = vmatmul.f32.gmra.mxu0 %v3743
        %v4934 = vpop.f32.mrf.mxu0
        %v4935 = vadd.f32 %v4822, %v4934
        %4936 = vmatmul.f32.gmra.mxu0 %v3745
        %v4937 = vpop.f32.mrf.mxu0
        %v4938 = vadd.f32 %v4825, %v4937
        %4939 = vmatmul.f32.gmra.mxu0 %v3748
        %v4940 = vpop.f32.mrf.mxu0
        %v4941 = vadd.f32 %v4828, %v4940
        %4942 = vmatmul.f32.gmra.mxu0 %v3750
        %v4943 = vpop.f32.mrf.mxu0
        %v4944 = vadd.f32 %v4831, %v4943
        %4945 = vmatmul.f32.gmra.mxu0 %v3753
        %v4946 = vpop.f32.mrf.mxu0
        %v4947 = vadd.f32 %v4834, %v4946
        %4948 = vmatmul.f32.gmra.mxu0 %v3755
        %v4949 = vpop.f32.mrf.mxu0
        %v4950 = vadd.f32 %v4837, %v4949
        %4951 = vmatmul.f32.gmra.mxu0 %v3758
        %v4952 = vpop.f32.mrf.mxu0
        %v4953 = vadd.f32 %v4840, %v4952
        %4954 = vmatmul.f32.gmra.mxu0 %v3760
        %v4955 = vpop.f32.mrf.mxu0
        %v4956 = vadd.f32 %v4843, %v4955
        %4957 = vmatmul.f32.gmra.mxu0 %v3763
        %v4958 = vpop.f32.mrf.mxu0
        %v4959 = vadd.f32 %v4846, %v4958
        %4960 = vmatmul.f32.gmra.mxu0 %v3765
        %v4961 = vpop.f32.mrf.mxu0
        %v4962 = vadd.f32 %v4849, %v4961
        %4963 = vmatmul.f32.gmra.mxu0 %v3768
        %v4964 = vpop.f32.mrf.mxu0
        %v4965 = vadd.f32 %v4852, %v4964
        %4966 = vmatmul.f32.gmra.mxu0 %v3770
        %v4967 = vpop.f32.mrf.mxu0
        %v4968 = vadd.f32 %v4855, %v4967
        %4969 = vdwg.mxu0
        %v4970 = vadd.f32 %v4487, %v4875
        %v4971 = vadd.f32 %v4490, %v4878
        %v4972 = vadd.f32 %v4493, %v4881
        %v4973 = vadd.f32 %v4496, %v4884
        %v4974 = vadd.f32 %v4499, %v4887
        %v4975 = vadd.f32 %v4502, %v4890
        %v4976 = vadd.f32 %v4505, %v4893
        %v4977 = vadd.f32 %v4508, %v4896
        %v4978 = vadd.f32 %v4511, %v4899
        %v4979 = vadd.f32 %v4514, %v4902
        %v4980 = vadd.f32 %v4517, %v4905
        %v4981 = vadd.f32 %v4520, %v4908
        %v4982 = vadd.f32 %v4523, %v4911
        %v4983 = vadd.f32 %v4526, %v4914
        %v4984 = vadd.f32 %v4529, %v4917
        %v4985 = vadd.f32 %v4532, %v4920
        %v4986 = vadd.f32 %v4535, %v4923
        %v4987 = vadd.f32 %v4538, %v4926
        %v4988 = vadd.f32 %v4541, %v4929
        %v4989 = vadd.f32 %v4544, %v4932
        %v4990 = vadd.f32 %v4547, %v4935
        %v4991 = vadd.f32 %v4550, %v4938
        %v4992 = vadd.f32 %v4553, %v4941
        %v4993 = vadd.f32 %v4556, %v4944
        %v4994 = vadd.f32 %v4559, %v4947
        %v4995 = vadd.f32 %v4562, %v4950
        %v4996 = vadd.f32 %v4565, %v4953
        %v4997 = vadd.f32 %v4568, %v4956
        %v4998 = vadd.f32 %v4571, %v4959
        %v4999 = vadd.f32 %v4574, %v4962
        %v5000 = vadd.f32 %v4577, %v4965
        %v5001 = vadd.f32 %v4580, %v4968
        %v5002 = vld [vmem:[%s4] sm:$0x1]
        %v5004 = vperm.slane %v5002, 0
        %v5006 = vadd.f32 %v4970, %v5004
        %v5007 = vadd.f32 %v4971, %v5004
        %v5008 = vadd.f32 %v4972, %v5004
        %v5009 = vadd.f32 %v4973, %v5004
        %v5010 = vadd.f32 %v4974, %v5004
        %v5011 = vadd.f32 %v4975, %v5004
        %v5012 = vadd.f32 %v4976, %v5004
        %v5013 = vadd.f32 %v4977, %v5004
        %v5014 = vadd.f32 %v4978, %v5004
        %v5015 = vadd.f32 %v4979, %v5004
        %v5016 = vadd.f32 %v4980, %v5004
        %v5017 = vadd.f32 %v4981, %v5004
        %v5018 = vadd.f32 %v4982, %v5004
        %v5019 = vadd.f32 %v4983, %v5004
        %v5020 = vadd.f32 %v4984, %v5004
        %v5021 = vadd.f32 %v4985, %v5004
        %v5022 = vadd.f32 %v4986, %v5004
        %v5023 = vadd.f32 %v4987, %v5004
        %v5024 = vadd.f32 %v4988, %v5004
        %v5025 = vadd.f32 %v4989, %v5004
        %v5026 = vadd.f32 %v4990, %v5004
        %v5027 = vadd.f32 %v4991, %v5004
        %v5028 = vadd.f32 %v4992, %v5004
        %v5029 = vadd.f32 %v4993, %v5004
        %v5030 = vadd.f32 %v4994, %v5004
        %v5031 = vadd.f32 %v4995, %v5004
        %v5032 = vadd.f32 %v4996, %v5004
        %v5033 = vadd.f32 %v4997, %v5004
        %v5034 = vadd.f32 %v4998, %v5004
        %v5035 = vadd.f32 %v4999, %v5004
        %v5036 = vadd.f32 %v5000, %v5004
        %v5037 = vadd.f32 %v5001, %v5004
        %v5038 = vadd.f32 %v5006, %v977
        %v5039 = vadd.f32 %v5007, %v979
        %v5040 = vadd.f32 %v5008, %v984
        %v5041 = vadd.f32 %v5009, %v986
        %v5042 = vadd.f32 %v5010, %v991
        %v5043 = vadd.f32 %v5011, %v993
        %v5044 = vadd.f32 %v5012, %v998
        %v5045 = vadd.f32 %v5013, %v1000
        %v5046 = vadd.f32 %v5014, %v1005
        %v5047 = vadd.f32 %v5015, %v1007
        %v5048 = vadd.f32 %v5016, %v1012
        %v5049 = vadd.f32 %v5017, %v1014
        %v5050 = vadd.f32 %v5018, %v1019
        %v5051 = vadd.f32 %v5019, %v1021
        %v5052 = vadd.f32 %v5020, %v1026
        %v5053 = vadd.f32 %v5021, %v1028
        %v5054 = vadd.f32 %v5022, %v1033
        %v5055 = vadd.f32 %v5023, %v1035
        %v5056 = vadd.f32 %v5024, %v1040
        %v5057 = vadd.f32 %v5025, %v1042
        %v5058 = vadd.f32 %v5026, %v1047
        %v5059 = vadd.f32 %v5027, %v1049
        %v5060 = vadd.f32 %v5028, %v1054
        %v5061 = vadd.f32 %v5029, %v1056
        %v5062 = vadd.f32 %v5030, %v1061
        %v5063 = vadd.f32 %v5031, %v1063
        %v5064 = vadd.f32 %v5032, %v1068
        %v5065 = vadd.f32 %v5033, %v1070
        %v5066 = vadd.f32 %v5034, %v1075
        %v5067 = vadd.f32 %v5035, %v1077
        %v5068 = vadd.f32 %v5036, %v1082
        %v5069 = vadd.f32 %v5037, %v1084
        %v5070 = vmax.f32 %v5038, 0.0
        %v5071 = vmax.f32 %v5039, 0.0
        %v5072 = vmax.f32 %v5040, 0.0
        %v5073 = vmax.f32 %v5041, 0.0
        %v5074 = vmax.f32 %v5042, 0.0
        %v5075 = vmax.f32 %v5043, 0.0
        %v5076 = vmax.f32 %v5044, 0.0
        %v5077 = vmax.f32 %v5045, 0.0
        %v5078 = vmax.f32 %v5046, 0.0
        %v5079 = vmax.f32 %v5047, 0.0
        %v5080 = vmax.f32 %v5048, 0.0
        %v5081 = vmax.f32 %v5049, 0.0
        %v5082 = vmax.f32 %v5050, 0.0
        %v5083 = vmax.f32 %v5051, 0.0
        %v5084 = vmax.f32 %v5052, 0.0
        %v5085 = vmax.f32 %v5053, 0.0
        %v5086 = vmax.f32 %v5054, 0.0
        %v5087 = vmax.f32 %v5055, 0.0
        %v5088 = vmax.f32 %v5056, 0.0
        %v5089 = vmax.f32 %v5057, 0.0
        %v5090 = vmax.f32 %v5058, 0.0
        %v5091 = vmax.f32 %v5059, 0.0
        %v5092 = vmax.f32 %v5060, 0.0
        %v5093 = vmax.f32 %v5061, 0.0
        %v5094 = vmax.f32 %v5062, 0.0
        %v5095 = vmax.f32 %v5063, 0.0
        %v5096 = vmax.f32 %v5064, 0.0
        %v5097 = vmax.f32 %v5065, 0.0
        %v5098 = vmax.f32 %v5066, 0.0
        %v5099 = vmax.f32 %v5067, 0.0
        %v5100 = vmax.f32 %v5068, 0.0
        %v5101 = vmax.f32 %v5069, 0.0
        %5102 = vst [vmem:[%s190] sm:$0xff] %v5070
        %5103 = vst [vmem:[%s190 + $0x8] sm:$0xff] %v5071
        %5104 = vst [vmem:[%s190 + $0x10] sm:$0xff] %v5072
        %5105 = vst [vmem:[%s190 + $0x18] sm:$0xff] %v5073
        %5106 = vst [vmem:[%s190 + $0x20] sm:$0xff] %v5074
        %5107 = vst [vmem:[%s190 + $0x28] sm:$0xff] %v5075
        %5108 = vst [vmem:[%s190 + $0x30] sm:$0xff] %v5076
        %5109 = vst [vmem:[%s190 + $0x38] sm:$0xff] %v5077
        %5110 = vst [vmem:[%s190 + $0x40] sm:$0xff] %v5078
        %5111 = vst [vmem:[%s190 + $0x48] sm:$0xff] %v5079
        %5112 = vst [vmem:[%s190 + $0x50] sm:$0xff] %v5080
        %5113 = vst [vmem:[%s190 + $0x58] sm:$0xff] %v5081
        %5114 = vst [vmem:[%s190 + $0x60] sm:$0xff] %v5082
        %5115 = vst [vmem:[%s190 + $0x68] sm:$0xff] %v5083
        %5116 = vst [vmem:[%s190 + $0x70] sm:$0xff] %v5084
        %5117 = vst [vmem:[%s190 + $0x78] sm:$0xff] %v5085
        %5118 = vst [vmem:[%s190 + $0x80] sm:$0xff] %v5086
        %5119 = vst [vmem:[%s190 + $0x88] sm:$0xff] %v5087
        %5120 = vst [vmem:[%s190 + $0x90] sm:$0xff] %v5088
        %5121 = vst [vmem:[%s190 + $0x98] sm:$0xff] %v5089
        %5122 = vst [vmem:[%s190 + $0xa0] sm:$0xff] %v5090
        %5123 = vst [vmem:[%s190 + $0xa8] sm:$0xff] %v5091
        %5124 = vst [vmem:[%s190 + $0xb0] sm:$0xff] %v5092
        %5125 = vst [vmem:[%s190 + $0xb8] sm:$0xff] %v5093
        %5126 = vst [vmem:[%s190 + $0xc0] sm:$0xff] %v5094
        %5127 = vst [vmem:[%s190 + $0xc8] sm:$0xff] %v5095
        %5128 = vst [vmem:[%s190 + $0xd0] sm:$0xff] %v5096
        %5129 = vst [vmem:[%s190 + $0xd8] sm:$0xff] %v5097
        %5130 = vst [vmem:[%s190 + $0xe0] sm:$0xff] %v5098
        %5131 = vst [vmem:[%s190 + $0xe8] sm:$0xff] %v5099
        %5132 = vst [vmem:[%s190 + $0xf0] sm:$0xff] %v5100
        %5133 = vst [vmem:[%s190 + $0xf8] sm:$0xff] %v5101
        %s5134 = sand.u32 %s125, 1
        %s5135 = scalar_lea.sflag [#allocation5], %s5134
        %s5136 = sand.u32 %s125, 1
        %s5137 = smul.addr %s5136, 256
        %s5138 = scalar_lea.vmem [#allocation4], %s5137
        // Predicated region
        $region89: #{tpu_custom_call.1} parent=35 // pred_check
          %p5139 = pneg %p135
        $region90: #{tpu_custom_call.1} parent=35 // pred_check_branch
          %5141 = sbr.rel (%p5139) target = $region92
        $region91: #{tpu_custom_call.1} parent=35 // pred_region
          %s5142 = smul.u32 16, %s24
          %5144 = vsyncadd %s5135, 0
          %s5145 = smul.addr %s5142, 2
          %s5146 = smul.addr %s23, 32
          %s5147 = sadd.s32 %s5145, %s5146
          %s5148 = smul.addr %s5147, 8
          %s5149 = scalar_lea.hbm %s5, %s5148
          %s5150 = sshll.u32 %s5138, 4
          %s5151 = int_to_ptr.vmem [resolvable:$true] %s5150
          %s5152 = sshll.u32 %s5149, 4
          %s5153 = int_to_ptr.hbm [resolvable:$true] %s5152
          %5158 = dma.vmem_to_hbm [thread:$0]  %s5151, 4096, %s5153, %s5135, 128, 128, 8
        $region92: #{tpu_custom_call.1} parent=35 // pred_fallthru
          _
      $region36: #{tpu_custom_call.1} parent=5 // pred_fallthru
        _
      %p5159 = scmp.le.s32.totalorder 2, %s14
      // Predicated region
      $region93: #{tpu_custom_call.1} parent=5 // pred_check
        %p5160 = pneg %p5159
      $region94: #{tpu_custom_call.1} parent=5 // pred_check_branch
        %5162 = sbr.rel (%p5160) target = $region96
      $region95: #{tpu_custom_call.1} parent=5 // pred_region
        %s5163 = ssub.s32 %s14, 2
        // Predicated region
        $region97: #{tpu_custom_call.1} parent=95 // pred_check
          %p5164 = pneg %p141
        $region98: #{tpu_custom_call.1} parent=95 // pred_check_branch
          %5166 = sbr.rel (%p5164) target = $region100
        $region99: #{tpu_custom_call.1} parent=95 // pred_region
          %s5167 = sand.u32 %s126, 1
          %s5168 = scalar_lea.sflag [#allocation5], %s5167
          %s5169 = sand.u32 %s126, 1
          %s5170 = smul.addr %s5169, 256
          %s5171 = scalar_lea.vmem [#allocation4], %s5170
          %5173 = dma.done %s5168, 4096
        $region100: #{tpu_custom_call.1} parent=95 // pred_fallthru
          _
      $region96: #{tpu_custom_call.1} parent=5 // pred_fallthru
        _
    $region6: #{tpu_custom_call.1} parent=1 // loop_footer
      %s18 = sadd.s32 1, %s14
    $region7: #{tpu_custom_call.1} parent=1 // loop_footer_branch
      %13 = sbr.rel target = $region3
    $region8: #{tpu_custom_call.1} parent=1 // loop_exit
      _
    %5174 = vsyncpa [#allocation5], 1
    %s5175 = scalar_lea.sflag [#allocation5], 1
    %5176 = vsyncpa %s5175, 1
  %5177 = vsyncmov [#allocation3]
  %s5178 = vpop.sfrf %5177
  %p5179 = scmp.eq.s32.totalorder %s5178, 0
  %p5180 = pneg %p5179
  %5182 = shalt.err (%p5180)
  %s5183 = scalar_lea.sflag [#allocation3], 1
  %5184 = vsyncmov %s5183
  %s5185 = vpop.sfrf %5184
  %p5186 = scmp.eq.s32.totalorder %s5185, 0
  %p5187 = pneg %p5186
  %5189 = shalt.err (%p5187)

</llo_original>
